<compile_context>
chip_gen: v7x
topology: tpu7x:2x2x1
jax: 0.10.0
libtpu: 0.0.40
codegen_flags: <defaults>
</compile_context>

<pallas_src>
import jax
import jax.numpy as jnp
from jax import lax
from jax.experimental import pallas as pl
from jax.experimental.pallas import tpu as pltpu

EPS = 1e-5


def _layernorm(x, gamma, beta):
    # x: (T, D), gamma/beta: (1, D). Biased variance, eps=1e-5 (PyTorch default).
    mu = jnp.mean(x, axis=-1, keepdims=True)
    xc = x - mu
    var = jnp.mean(xc * xc, axis=-1, keepdims=True)
    inv = lax.rsqrt(var + EPS)
    return xc * inv * gamma + beta


def encoder_layer_kernel(
    xq_ref, xkv_ref,
    wq_ref, bq_ref, wk_ref, bk_ref, wv_ref, bv_ref, wo_ref, bo_ref,
    g_ini_ref, b_ini_ref,
    w1_ref, b1_ref, w2_ref, b2_ref,
    g_fin_ref, b_fin_ref,
    out_ref,
    q_scr, m_scr, l_scr, acc_scr,
):
    ki = pl.program_id(2)
    nk = pl.num_programs(2)
    D = xq_ref.shape[-1]

    # ---- first kv tile: project Q (scale folded in), reset softmax accumulators ----
    @pl.when(ki == 0)
    def _init():
        xq = xq_ref[0]                                                # (TQ, D) f32
        q = jnp.dot(xq.astype(jnp.bfloat16), wq_ref[...],
                    preferred_element_type=jnp.float32) + bq_ref[...]
        q_scr[...] = (q * (D ** -0.5)).astype(jnp.bfloat16)
        m_scr[...] = jnp.full(m_scr.shape, -jnp.inf, dtype=m_scr.dtype)
        l_scr[...] = jnp.zeros(l_scr.shape, dtype=l_scr.dtype)
        acc_scr[...] = jnp.zeros(acc_scr.shape, dtype=acc_scr.dtype)

    # ---- K/V projection of this kv tile + online-softmax update ----
    xkv = xkv_ref[0].astype(jnp.bfloat16)                             # (TK, D)
    k = (jnp.dot(xkv, wk_ref[...], preferred_element_type=jnp.float32)
         + bk_ref[...]).astype(jnp.bfloat16)
    v = (jnp.dot(xkv, wv_ref[...], preferred_element_type=jnp.float32)
         + bv_ref[...]).astype(jnp.bfloat16)

    # Q @ K^T without materializing a transpose: contract last dims of both.
    s = lax.dot_general(q_scr[...], k,
                        dimension_numbers=(((1,), (1,)), ((), ())),
                        preferred_element_type=jnp.float32)           # (TQ, TK)

    m_prev = m_scr[...]
    m_new = jnp.maximum(m_prev, jnp.max(s, axis=-1, keepdims=True))
    alpha = jnp.exp(m_prev - m_new)
    p = jnp.exp(s - m_new)
    l_scr[...] = alpha * l_scr[...] + jnp.sum(p, axis=-1, keepdims=True)
    acc_scr[...] = alpha * acc_scr[...] + jnp.dot(
        p.astype(jnp.bfloat16), v, preferred_element_type=jnp.float32)
    m_scr[...] = m_new

    # ---- last kv tile: O-projection, residual + LN, FFN, residual + LN ----
    @pl.when(ki == nk - 1)
    def _finalize():
        ctx = acc_scr[...] * pl.reciprocal(l_scr[...], approx=True)   # (TQ, D) f32
        attn = jnp.dot(ctx.astype(jnp.bfloat16), wo_ref[...],
                       preferred_element_type=jnp.float32) + bo_ref[...]
        src = _layernorm(xq_ref[0] + attn, g_ini_ref[...], b_ini_ref[...])
        h = jnp.dot(src.astype(jnp.bfloat16), w1_ref[...],
                    preferred_element_type=jnp.float32) + b1_ref[...]
        h = jnp.maximum(h, 0.0)
        ffn = jnp.dot(h.astype(jnp.bfloat16), w2_ref[...],
                      preferred_element_type=jnp.float32) + b2_ref[...]
        src = _layernorm(src + ffn, g_fin_ref[...], b_fin_ref[...])
        out_ref[0] = src.astype(out_ref.dtype)


def _pick_tile(n, target=256):
    """Largest power-of-two tile <= target that divides n (>=8), else the full extent."""
    if n <= target:
        return n
    t = target
    while t >= 8:
        if n % t == 0:
            return t
        t //= 2
    return n


def _build_specs(D, TQ, TK, single_buffer_consts):
    const_kwargs = {}
    if single_buffer_consts:
        const_kwargs = dict(pipeline_mode=pl.Buffered(1))

    def const_spec(shape):
        return pl.BlockSpec(shape, lambda b, qi, ki: (0, 0), **const_kwargs)

    w_spec = const_spec((D, D))
    b_spec = const_spec((1, D))

    in_specs = [
        pl.BlockSpec((1, TQ, D), lambda b, qi, ki: (b, qi, 0)),   # x (query rows)
        pl.BlockSpec((1, TK, D), lambda b, qi, ki: (b, ki, 0)),   # x (kv rows)
        w_spec, b_spec,                                            # q proj
        w_spec, b_spec,                                            # k proj
        w_spec, b_spec,                                            # v proj
        w_spec, b_spec,                                            # o proj
        b_spec, b_spec,                                            # LN ini gamma/beta
        w_spec, b_spec,                                            # ffn one
        w_spec, b_spec,                                            # ffn two
        b_spec, b_spec,                                            # LN fin gamma/beta
    ]
    out_specs = pl.BlockSpec((1, TQ, D), lambda b, qi, ki: (b, qi, 0))
    return in_specs, out_specs


def _call(x, args, TQ, TK, single_buffer_consts):
    B, S, D = x.shape
    nq, nk = S // TQ, S // TK
    in_specs, out_specs = _build_specs(D, TQ, TK, single_buffer_consts)

    cost = pl.CostEstimate(
        flops=2 * B * S * D * D * 6 + 2 * B * S * S * D * 2,
        transcendentals=B * S * S,
        bytes_accessed=3 * B * S * D * 4 + 6 * D * D * 2 + 10 * D * 4,
    )

    return pl.pallas_call(
        encoder_layer_kernel,
        out_shape=jax.ShapeDtypeStruct((B, S, D), x.dtype),
        grid=(B, nq, nk),
        in_specs=in_specs,
        out_specs=out_specs,
        scratch_shapes=[
            pltpu.VMEM((TQ, D), jnp.bfloat16),   # scaled Q tile
            pltpu.VMEM((TQ, 1), jnp.float32),    # running max
            pltpu.VMEM((TQ, 1), jnp.float32),    # running denominator
            pltpu.VMEM((TQ, D), jnp.float32),    # attention accumulator
        ],
        compiler_params=pltpu.CompilerParams(
            dimension_semantics=("parallel", "parallel", "arbitrary"),
            vmem_limit_bytes=48 * 1024 * 1024,
        ),
        cost_estimate=cost,
    )(x, x, *args)


def encoder_layer(x, params):
    """x: (B, S, D) float32. params: dict of weights (linear weights stored as (in, out))."""
    B, S, D = x.shape
    TQ = _pick_tile(S)
    TK = _pick_tile(S)

    bf16 = jnp.bfloat16
    args = (
        params["wq"].astype(bf16), params["bq"],
        params["wk"].astype(bf16), params["bk"],
        params["wv"].astype(bf16), params["bv"],
        params["wo"].astype(bf16), params["bo"],
        params["g_ini"], params["b_ini"],
        params["w1"].astype(bf16), params["b1"],
        params["w2"].astype(bf16), params["b2"],
        params["g_fin"], params["b_fin"],
    )

    try:
        return _call(x, args, TQ, TK, single_buffer_consts=True)
    except Exception:
        # Fallback for JAX versions without BlockSpec pipeline_mode support.
        return _call(x, args, TQ, TK, single_buffer_consts=False)


def init_params(key, dim):
    """Deterministic synthetic parameters. Linear weights stored as (in, out)."""
    keys = jax.random.split(key, 12)
    s = 1.0 / jnp.sqrt(dim)

    def lin(kw, kb):
        w = jax.random.uniform(kw, (dim, dim), jnp.float32, -s, s)
        b = jax.random.uniform(kb, (1, dim), jnp.float32, -s, s)
        return w, b

    wq, bq = lin(keys[0], keys[1])
    wk, bk = lin(keys[2], keys[3])
    wv, bv = lin(keys[4], keys[5])
    wo, bo = lin(keys[6], keys[7])
    w1, b1 = lin(keys[8], keys[9])
    w2, b2 = lin(keys[10], keys[11])

    return {
        "wq": wq, "bq": bq, "wk": wk, "bk": bk,
        "wv": wv, "bv": bv, "wo": wo, "bo": bo,
        "g_ini": jnp.ones((1, dim), jnp.float32),
        "b_ini": jnp.zeros((1, dim), jnp.float32),
        "w1": w1, "b1": b1, "w2": w2, "b2": b2,
        "g_fin": jnp.ones((1, dim), jnp.float32),
        "b_fin": jnp.zeros((1, dim), jnp.float32),
    }


def encoder_layer_ref(x, p):
    """Plain-JAX (f32) reference for sanity checking."""
    def ln(y, g, b):
        mu = jnp.mean(y, -1, keepdims=True)
        var = jnp.mean((y - mu) ** 2, -1, keepdims=True)
        return (y - mu) / jnp.sqrt(var + EPS) * g + b

    D = x.shape[-1]
    q = x @ p["wq"] + p["bq"]
    k = x @ p["wk"] + p["bk"]
    v = x @ p["wv"] + p["bv"]
    att = jax.nn.softmax(jnp.einsum("bsd,btd->bst", q, k) * D ** -0.5, axis=-1)
    out = (jnp.einsum("bst,btd->bsd", att, v) @ p["wo"]) + p["bo"]
    src = ln(x + out, p["g_ini"], p["b_ini"])
    h = jnp.maximum(src @ p["w1"] + p["b1"], 0.0)
    out = h @ p["w2"] + p["b2"]
    return ln(src + out, p["g_fin"], p["b_fin"])


if __name__ == "__main__":
    # Small but lane-dense shapes (D multiple of 128 per the perf review).
    B, S, D = 2, 8, 128
    key = jax.random.PRNGKey(0)
    kx, kp = jax.random.split(key)
    x = jax.random.normal(kx, (B, S, D), jnp.float32)
    params = init_params(kp, D)

    y = jax.block_until_ready(encoder_layer(x, params))
    assert y.shape == (B, S, D)

    # bf16 MXU inputs + approx reciprocal => loosened tolerance vs the f32 reference.
    y_ref = encoder_layer_ref(x, params)
    rel_err = jnp.sqrt(jnp.sum((y - y_ref) ** 2) / jnp.sum(y_ref ** 2))
    assert rel_err < 5e-2, f"mismatch vs reference: rel_err={rel_err}"

    print("KERNEL_OK")
</pallas_src>

<mosaic_0001>
module attributes {stable_mosaic.version = 11 : i64} {
  func.func @encoder_layer_kernel(%arg0: i32, %arg1: i32, %arg2: i32, %arg3: memref<1x8x128xf32, #tpu.memory_space<vmem>>, %arg4: memref<1x8x128xf32, #tpu.memory_space<vmem>>, %arg5: memref<128x128xbf16, #tpu.memory_space<vmem>>, %arg6: memref<1x128xf32, #tpu.memory_space<vmem>>, %arg7: memref<128x128xbf16, #tpu.memory_space<vmem>>, %arg8: memref<1x128xf32, #tpu.memory_space<vmem>>, %arg9: memref<128x128xbf16, #tpu.memory_space<vmem>>, %arg10: memref<1x128xf32, #tpu.memory_space<vmem>>, %arg11: memref<128x128xbf16, #tpu.memory_space<vmem>>, %arg12: memref<1x128xf32, #tpu.memory_space<vmem>>, %arg13: memref<1x128xf32, #tpu.memory_space<vmem>>, %arg14: memref<1x128xf32, #tpu.memory_space<vmem>>, %arg15: memref<128x128xbf16, #tpu.memory_space<vmem>>, %arg16: memref<1x128xf32, #tpu.memory_space<vmem>>, %arg17: memref<128x128xbf16, #tpu.memory_space<vmem>>, %arg18: memref<1x128xf32, #tpu.memory_space<vmem>>, %arg19: memref<1x128xf32, #tpu.memory_space<vmem>>, %arg20: memref<1x128xf32, #tpu.memory_space<vmem>>, %arg21: memref<1x8x128xf32, #tpu.memory_space<vmem>>, %arg22: memref<8x128xbf16, #tpu.memory_space<vmem>>, %arg23: memref<8x1xf32, #tpu.memory_space<vmem>>, %arg24: memref<8x1xf32, #tpu.memory_space<vmem>>, %arg25: memref<8x128xf32, #tpu.memory_space<vmem>>) attributes {dimension_semantics = [#tpu.dimension_semantics<parallel>, #tpu.dimension_semantics<parallel>, #tpu.dimension_semantics<arbitrary>], iteration_bounds = array<i64: 2, 1, 1>, scalar_prefetch = 0 : i64, scratch_operands = 4 : i64, tpu.core_type = #tpu.core_type<tc>, window_params = [{transform_indices = @transform_0, window_bounds = array<i64: 1, 8, 128>}, {transform_indices = @transform_1, window_bounds = array<i64: 1, 8, 128>}, {pipeline_mode = #tpu.pipeline_mode<synchronous>, transform_indices = @transform_2, window_bounds = array<i64: 128, 128>}, {pipeline_mode = #tpu.pipeline_mode<synchronous>, transform_indices = @transform_3, window_bounds = array<i64: 1, 128>}, {pipeline_mode = #tpu.pipeline_mode<synchronous>, transform_indices = @transform_4, window_bounds = array<i64: 128, 128>}, {pipeline_mode = #tpu.pipeline_mode<synchronous>, transform_indices = @transform_5, window_bounds = array<i64: 1, 128>}, {pipeline_mode = #tpu.pipeline_mode<synchronous>, transform_indices = @transform_6, window_bounds = array<i64: 128, 128>}, {pipeline_mode = #tpu.pipeline_mode<synchronous>, transform_indices = @transform_7, window_bounds = array<i64: 1, 128>}, {pipeline_mode = #tpu.pipeline_mode<synchronous>, transform_indices = @transform_8, window_bounds = array<i64: 128, 128>}, {pipeline_mode = #tpu.pipeline_mode<synchronous>, transform_indices = @transform_9, window_bounds = array<i64: 1, 128>}, {pipeline_mode = #tpu.pipeline_mode<synchronous>, transform_indices = @transform_10, window_bounds = array<i64: 1, 128>}, {pipeline_mode = #tpu.pipeline_mode<synchronous>, transform_indices = @transform_11, window_bounds = array<i64: 1, 128>}, {pipeline_mode = #tpu.pipeline_mode<synchronous>, transform_indices = @transform_12, window_bounds = array<i64: 128, 128>}, {pipeline_mode = #tpu.pipeline_mode<synchronous>, transform_indices = @transform_13, window_bounds = array<i64: 1, 128>}, {pipeline_mode = #tpu.pipeline_mode<synchronous>, transform_indices = @transform_14, window_bounds = array<i64: 128, 128>}, {pipeline_mode = #tpu.pipeline_mode<synchronous>, transform_indices = @transform_15, window_bounds = array<i64: 1, 128>}, {pipeline_mode = #tpu.pipeline_mode<synchronous>, transform_indices = @transform_16, window_bounds = array<i64: 1, 128>}, {pipeline_mode = #tpu.pipeline_mode<synchronous>, transform_indices = @transform_17, window_bounds = array<i64: 1, 128>}, {transform_indices = @transform_18, window_bounds = array<i64: 1, 8, 128>}]} {
    %c0_i32 = arith.constant 0 : i32
    %0 = arith.cmpi eq, %arg2, %c0_i32 : i32
    %1 = arith.extui %0 : i1 to i32
    %c0_i32_0 = arith.constant 0 : i32
    %2 = arith.cmpi ne, %1, %c0_i32_0 : i32
    scf.if %2 {
      %c0_32 = arith.constant 0 : index
      %c0_33 = arith.constant 0 : index
      %c0_34 = arith.constant 0 : index
      %46 = vector.load %arg3[%c0_32, %c0_33, %c0_34] : memref<1x8x128xf32, #tpu.memory_space<vmem>>, vector<1x8x128xf32>
      %47 = vector.shape_cast %46 : vector<1x8x128xf32> to vector<8x128xf32>
      %48 = arith.truncf %47 : vector<8x128xf32> to vector<8x128xbf16>
      %c0_35 = arith.constant 0 : index
      %c0_36 = arith.constant 0 : index
      %49 = vector.load %arg5[%c0_35, %c0_36] : memref<128x128xbf16, #tpu.memory_space<vmem>>, vector<128x128xbf16>
      %cst_37 = arith.constant dense<0.000000e+00> : vector<8x128xf32>
      %50 = tpu.matmul %48, %49, %cst_37 {dimension_numbers = #tpu.dot_dimension_numbers<[1], [0], [0], [1], [0, 0, 1, 1], [], []>} : vector<8x128xbf16>, vector<128x128xbf16>, vector<8x128xf32> -> vector<8x128xf32>
      %c0_38 = arith.constant 0 : index
      %c0_39 = arith.constant 0 : index
      %51 = vector.load %arg6[%c0_38, %c0_39] : memref<1x128xf32, #tpu.memory_space<vmem>>, vector<1x128xf32>
      %52 = vector.broadcast %51 : vector<1x128xf32> to vector<8x128xf32>
      %53 = arith.addf %50, %52 : vector<8x128xf32>
      %cst_40 = arith.constant 0.0883883461 : f32
      %54 = vector.broadcast %cst_40 : f32 to vector<8x128xf32>
      %55 = arith.mulf %53, %54 : vector<8x128xf32>
      %56 = arith.truncf %55 : vector<8x128xf32> to vector<8x128xbf16>
      %c0_41 = arith.constant 0 : index
      %c0_42 = arith.constant 0 : index
      %57 = vector.load %arg22[%c0_41, %c0_42] : memref<8x128xbf16, #tpu.memory_space<vmem>>, vector<8x128xbf16>
      tpu.vector_store %arg22[%c0_41, %c0_42], %56 {strides = array<i32>} : memref<8x128xbf16, #tpu.memory_space<vmem>>, vector<8x128xbf16>,
      %cst_43 = arith.constant 0xFF800000 : f32
      %58 = vector.broadcast %cst_43 : f32 to vector<8x1xf32>
      %c0_44 = arith.constant 0 : index
      %c0_45 = arith.constant 0 : index
      %59 = vector.load %arg23[%c0_44, %c0_45] : memref<8x1xf32, #tpu.memory_space<vmem>>, vector<8x1xf32>
      tpu.vector_store %arg23[%c0_44, %c0_45], %58 {strides = array<i32>} : memref<8x1xf32, #tpu.memory_space<vmem>>, vector<8x1xf32>,
      %cst_46 = arith.constant 0.000000e+00 : f32
      %60 = vector.broadcast %cst_46 : f32 to vector<8x1xf32>
      %c0_47 = arith.constant 0 : index
      %c0_48 = arith.constant 0 : index
      %61 = vector.load %arg24[%c0_47, %c0_48] : memref<8x1xf32, #tpu.memory_space<vmem>>, vector<8x1xf32>
      tpu.vector_store %arg24[%c0_47, %c0_48], %60 {strides = array<i32>} : memref<8x1xf32, #tpu.memory_space<vmem>>, vector<8x1xf32>,
      %cst_49 = arith.constant 0.000000e+00 : f32
      %62 = vector.broadcast %cst_49 : f32 to vector<8x128xf32>
      %c0_50 = arith.constant 0 : index
      %c0_51 = arith.constant 0 : index
      %63 = vector.load %arg25[%c0_50, %c0_51] : memref<8x128xf32, #tpu.memory_space<vmem>>, vector<8x128xf32>
      tpu.vector_store %arg25[%c0_50, %c0_51], %62 {strides = array<i32>} : memref<8x128xf32, #tpu.memory_space<vmem>>, vector<8x128xf32>,
    } else {
    }
    %c0 = arith.constant 0 : index
    %c0_1 = arith.constant 0 : index
    %c0_2 = arith.constant 0 : index
    %3 = vector.load %arg4[%c0, %c0_1, %c0_2] : memref<1x8x128xf32, #tpu.memory_space<vmem>>, vector<1x8x128xf32>
    %4 = vector.shape_cast %3 : vector<1x8x128xf32> to vector<8x128xf32>
    %5 = arith.truncf %4 : vector<8x128xf32> to vector<8x128xbf16>
    %c0_3 = arith.constant 0 : index
    %c0_4 = arith.constant 0 : index
    %6 = vector.load %arg7[%c0_3, %c0_4] : memref<128x128xbf16, #tpu.memory_space<vmem>>, vector<128x128xbf16>
    %cst = arith.constant dense<0.000000e+00> : vector<8x128xf32>
    %7 = tpu.matmul %5, %6, %cst {dimension_numbers = #tpu.dot_dimension_numbers<[1], [0], [0], [1], [0, 0, 1, 1], [], []>} : vector<8x128xbf16>, vector<128x128xbf16>, vector<8x128xf32> -> vector<8x128xf32>
    %c0_5 = arith.constant 0 : index
    %c0_6 = arith.constant 0 : index
    %8 = vector.load %arg8[%c0_5, %c0_6] : memref<1x128xf32, #tpu.memory_space<vmem>>, vector<1x128xf32>
    %9 = vector.broadcast %8 : vector<1x128xf32> to vector<8x128xf32>
    %10 = arith.addf %7, %9 : vector<8x128xf32>
    %11 = arith.truncf %10 : vector<8x128xf32> to vector<8x128xbf16>
    %c0_7 = arith.constant 0 : index
    %c0_8 = arith.constant 0 : index
    %12 = vector.load %arg9[%c0_7, %c0_8] : memref<128x128xbf16, #tpu.memory_space<vmem>>, vector<128x128xbf16>
    %cst_9 = arith.constant dense<0.000000e+00> : vector<8x128xf32>
    %13 = tpu.matmul %5, %12, %cst_9 {dimension_numbers = #tpu.dot_dimension_numbers<[1], [0], [0], [1], [0, 0, 1, 1], [], []>} : vector<8x128xbf16>, vector<128x128xbf16>, vector<8x128xf32> -> vector<8x128xf32>
    %c0_10 = arith.constant 0 : index
    %c0_11 = arith.constant 0 : index
    %14 = vector.load %arg10[%c0_10, %c0_11] : memref<1x128xf32, #tpu.memory_space<vmem>>, vector<1x128xf32>
    %15 = vector.broadcast %14 : vector<1x128xf32> to vector<8x128xf32>
    %16 = arith.addf %13, %15 : vector<8x128xf32>
    %17 = arith.truncf %16 : vector<8x128xf32> to vector<8x128xbf16>
    %c0_12 = arith.constant 0 : index
    %c0_13 = arith.constant 0 : index
    %18 = vector.load %arg22[%c0_12, %c0_13] : memref<8x128xbf16, #tpu.memory_space<vmem>>, vector<8x128xbf16>
    %cst_14 = arith.constant dense<0.000000e+00> : vector<8x8xf32>
    %19 = tpu.matmul %18, %11, %cst_14 {dimension_numbers = #tpu.dot_dimension_numbers<[1], [1], [0], [0], [0, 0, 1, 0], [], []>} : vector<8x128xbf16>, vector<8x128xbf16>, vector<8x8xf32> -> vector<8x8xf32>
    %c0_15 = arith.constant 0 : index
    %c0_16 = arith.constant 0 : index
    %20 = vector.load %arg23[%c0_15, %c0_16] : memref<8x1xf32, #tpu.memory_space<vmem>>, vector<8x1xf32>
    %cst_17 = arith.constant dense<0xFF800000> : vector<8xf32>
    %21 = vector.multi_reduction <maximumf>, %19, %cst_17 [1] : vector<8x8xf32> to vector<8xf32>
    %22 = vector.shape_cast %21 : vector<8xf32> to vector<8x1xf32>
    %23 = arith.maximumf %20, %22 : vector<8x1xf32>
    %24 = arith.subf %20, %23 : vector<8x1xf32>
    %25 = math.exp %24 : vector<8x1xf32>
    %26 = vector.broadcast %23 : vector<8x1xf32> to vector<8x8xf32>
    %27 = arith.subf %19, %26 : vector<8x8xf32>
    %28 = math.exp %27 : vector<8x8xf32>
    %c0_18 = arith.constant 0 : index
    %c0_19 = arith.constant 0 : index
    %29 = vector.load %arg24[%c0_18, %c0_19] : memref<8x1xf32, #tpu.memory_space<vmem>>, vector<8x1xf32>
    %30 = arith.mulf %25, %29 : vector<8x1xf32>
    %cst_20 = arith.constant dense<0.000000e+00> : vector<8xf32>
    %31 = vector.multi_reduction <add>, %28, %cst_20 [1] : vector<8x8xf32> to vector<8xf32>
    %32 = vector.shape_cast %31 : vector<8xf32> to vector<8x1xf32>
    %33 = arith.addf %30, %32 : vector<8x1xf32>
    %c0_21 = arith.constant 0 : index
    %c0_22 = arith.constant 0 : index
    %34 = vector.load %arg24[%c0_21, %c0_22] : memref<8x1xf32, #tpu.memory_space<vmem>>, vector<8x1xf32>
    tpu.vector_store %arg24[%c0_21, %c0_22], %33 {strides = array<i32>} : memref<8x1xf32, #tpu.memory_space<vmem>>, vector<8x1xf32>,
    %c0_23 = arith.constant 0 : index
    %c0_24 = arith.constant 0 : index
    %35 = vector.load %arg25[%c0_23, %c0_24] : memref<8x128xf32, #tpu.memory_space<vmem>>, vector<8x128xf32>
    %36 = vector.broadcast %25 : vector<8x1xf32> to vector<8x128xf32>
    %37 = arith.mulf %36, %35 : vector<8x128xf32>
    %38 = arith.truncf %28 : vector<8x8xf32> to vector<8x8xbf16>
    %cst_25 = arith.constant dense<0.000000e+00> : vector<8x128xf32>
    %39 = tpu.matmul %38, %17, %cst_25 {dimension_numbers = #tpu.dot_dimension_numbers<[1], [0], [0], [1], [0, 0, 1, 1], [], []>} : vector<8x8xbf16>, vector<8x128xbf16>, vector<8x128xf32> -> vector<8x128xf32>
    %40 = arith.addf %37, %39 : vector<8x128xf32>
    %c0_26 = arith.constant 0 : index
    %c0_27 = arith.constant 0 : index
    %41 = vector.load %arg25[%c0_26, %c0_27] : memref<8x128xf32, #tpu.memory_space<vmem>>, vector<8x128xf32>
    tpu.vector_store %arg25[%c0_26, %c0_27], %40 {strides = array<i32>} : memref<8x128xf32, #tpu.memory_space<vmem>>, vector<8x128xf32>,
    %c0_28 = arith.constant 0 : index
    %c0_29 = arith.constant 0 : index
    %42 = vector.load %arg23[%c0_28, %c0_29] : memref<8x1xf32, #tpu.memory_space<vmem>>, vector<8x1xf32>
    tpu.vector_store %arg23[%c0_28, %c0_29], %23 {strides = array<i32>} : memref<8x1xf32, #tpu.memory_space<vmem>>, vector<8x1xf32>,
    %c0_i32_30 = arith.constant 0 : i32
    %43 = arith.cmpi eq, %arg2, %c0_i32_30 : i32
    %44 = arith.extui %43 : i1 to i32
    %c0_i32_31 = arith.constant 0 : i32
    %45 = arith.cmpi ne, %44, %c0_i32_31 : i32
    scf.if %45 {
      %c0_32 = arith.constant 0 : index
      %c0_33 = arith.constant 0 : index
      %46 = vector.load %arg25[%c0_32, %c0_33] : memref<8x128xf32, #tpu.memory_space<vmem>>, vector<8x128xf32>
      %c0_34 = arith.constant 0 : index
      %c0_35 = arith.constant 0 : index
      %47 = vector.load %arg24[%c0_34, %c0_35] : memref<8x1xf32, #tpu.memory_space<vmem>>, vector<8x1xf32>
      %48 = tpu.reciprocal %47 {approx = true} : vector<8x1xf32> -> vector<8x1xf32>
      %49 = vector.broadcast %48 : vector<8x1xf32> to vector<8x128xf32>
      %50 = arith.mulf %46, %49 : vector<8x128xf32>
      %51 = arith.truncf %50 : vector<8x128xf32> to vector<8x128xbf16>
      %c0_36 = arith.constant 0 : index
      %c0_37 = arith.constant 0 : index
      %52 = vector.load %arg11[%c0_36, %c0_37] : memref<128x128xbf16, #tpu.memory_space<vmem>>, vector<128x128xbf16>
      %cst_38 = arith.constant dense<0.000000e+00> : vector<8x128xf32>
      %53 = tpu.matmul %51, %52, %cst_38 {dimension_numbers = #tpu.dot_dimension_numbers<[1], [0], [0], [1], [0, 0, 1, 1], [], []>} : vector<8x128xbf16>, vector<128x128xbf16>, vector<8x128xf32> -> vector<8x128xf32>
      %c0_39 = arith.constant 0 : index
      %c0_40 = arith.constant 0 : index
      %54 = vector.load %arg12[%c0_39, %c0_40] : memref<1x128xf32, #tpu.memory_space<vmem>>, vector<1x128xf32>
      %55 = vector.broadcast %54 : vector<1x128xf32> to vector<8x128xf32>
      %56 = arith.addf %53, %55 : vector<8x128xf32>
      %c0_41 = arith.constant 0 : index
      %c0_42 = arith.constant 0 : index
      %c0_43 = arith.constant 0 : index
      %57 = vector.load %arg3[%c0_41, %c0_42, %c0_43] : memref<1x8x128xf32, #tpu.memory_space<vmem>>, vector<1x8x128xf32>
      %58 = vector.shape_cast %57 : vector<1x8x128xf32> to vector<8x128xf32>
      %59 = arith.addf %58, %56 : vector<8x128xf32>
      %c0_44 = arith.constant 0 : index
      %c0_45 = arith.constant 0 : index
      %60 = vector.load %arg13[%c0_44, %c0_45] : memref<1x128xf32, #tpu.memory_space<vmem>>, vector<1x128xf32>
      %c0_46 = arith.constant 0 : index
      %c0_47 = arith.constant 0 : index
      %61 = vector.load %arg14[%c0_46, %c0_47] : memref<1x128xf32, #tpu.memory_space<vmem>>, vector<1x128xf32>
      %cst_48 = arith.constant dense<0.000000e+00> : vector<8xf32>
      %62 = vector.multi_reduction <add>, %59, %cst_48 [1] : vector<8x128xf32> to vector<8xf32>
      %63 = vector.shape_cast %62 : vector<8xf32> to vector<8x1xf32>
      %cst_49 = arith.constant 1.280000e+02 : f32
      %64 = vector.broadcast %cst_49 : f32 to vector<8x1xf32>
      %65 = arith.divf %63, %64 : vector<8x1xf32>
      %66 = vector.broadcast %65 : vector<8x1xf32> to vector<8x128xf32>
      %67 = arith.subf %59, %66 : vector<8x128xf32>
      %68 = arith.mulf %67, %67 : vector<8x128xf32>
      %cst_50 = arith.constant dense<0.000000e+00> : vector<8xf32>
      %69 = vector.multi_reduction <add>, %68, %cst_50 [1] : vector<8x128xf32> to vector<8xf32>
      %70 = vector.shape_cast %69 : vector<8xf32> to vector<8x1xf32>
      %cst_51 = arith.constant 1.280000e+02 : f32
      %71 = vector.broadcast %cst_51 : f32 to vector<8x1xf32>
      %72 = arith.divf %70, %71 : vector<8x1xf32>
      %cst_52 = arith.constant 9.99999974E-6 : f32
      %73 = vector.broadcast %cst_52 : f32 to vector<8x1xf32>
      %74 = arith.addf %72, %73 : vector<8x1xf32>
      %75 = math.rsqrt %74 : vector<8x1xf32>
      %76 = vector.broadcast %75 : vector<8x1xf32> to vector<8x128xf32>
      %77 = arith.mulf %67, %76 : vector<8x128xf32>
      %78 = vector.broadcast %60 : vector<1x128xf32> to vector<8x128xf32>
      %79 = arith.mulf %77, %78 : vector<8x128xf32>
      %80 = vector.broadcast %61 : vector<1x128xf32> to vector<8x128xf32>
      %81 = arith.addf %79, %80 : vector<8x128xf32>
      %82 = arith.truncf %81 : vector<8x128xf32> to vector<8x128xbf16>
      %c0_53 = arith.constant 0 : index
      %c0_54 = arith.constant 0 : index
      %83 = vector.load %arg15[%c0_53, %c0_54] : memref<128x128xbf16, #tpu.memory_space<vmem>>, vector<128x128xbf16>
      %cst_55 = arith.constant dense<0.000000e+00> : vector<8x128xf32>
      %84 = tpu.matmul %82, %83, %cst_55 {dimension_numbers = #tpu.dot_dimension_numbers<[1], [0], [0], [1], [0, 0, 1, 1], [], []>} : vector<8x128xbf16>, vector<128x128xbf16>, vector<8x128xf32> -> vector<8x128xf32>
      %c0_56 = arith.constant 0 : index
      %c0_57 = arith.constant 0 : index
      %85 = vector.load %arg16[%c0_56, %c0_57] : memref<1x128xf32, #tpu.memory_space<vmem>>, vector<1x128xf32>
      %86 = vector.broadcast %85 : vector<1x128xf32> to vector<8x128xf32>
      %87 = arith.addf %84, %86 : vector<8x128xf32>
      %cst_58 = arith.constant 0.000000e+00 : f32
      %88 = vector.broadcast %cst_58 : f32 to vector<8x128xf32>
      %89 = arith.maximumf %87, %88 : vector<8x128xf32>
      %90 = arith.truncf %89 : vector<8x128xf32> to vector<8x128xbf16>
      %c0_59 = arith.constant 0 : index
      %c0_60 = arith.constant 0 : index
      %91 = vector.load %arg17[%c0_59, %c0_60] : memref<128x128xbf16, #tpu.memory_space<vmem>>, vector<128x128xbf16>
      %cst_61 = arith.constant dense<0.000000e+00> : vector<8x128xf32>
      %92 = tpu.matmul %90, %91, %cst_61 {dimension_numbers = #tpu.dot_dimension_numbers<[1], [0], [0], [1], [0, 0, 1, 1], [], []>} : vector<8x128xbf16>, vector<128x128xbf16>, vector<8x128xf32> -> vector<8x128xf32>
      %c0_62 = arith.constant 0 : index
      %c0_63 = arith.constant 0 : index
      %93 = vector.load %arg18[%c0_62, %c0_63] : memref<1x128xf32, #tpu.memory_space<vmem>>, vector<1x128xf32>
      %94 = vector.broadcast %93 : vector<1x128xf32> to vector<8x128xf32>
      %95 = arith.addf %92, %94 : vector<8x128xf32>
      %96 = arith.addf %81, %95 : vector<8x128xf32>
      %c0_64 = arith.constant 0 : index
      %c0_65 = arith.constant 0 : index
      %97 = vector.load %arg19[%c0_64, %c0_65] : memref<1x128xf32, #tpu.memory_space<vmem>>, vector<1x128xf32>
      %c0_66 = arith.constant 0 : index
      %c0_67 = arith.constant 0 : index
      %98 = vector.load %arg20[%c0_66, %c0_67] : memref<1x128xf32, #tpu.memory_space<vmem>>, vector<1x128xf32>
      %cst_68 = arith.constant dense<0.000000e+00> : vector<8xf32>
      %99 = vector.multi_reduction <add>, %96, %cst_68 [1] : vector<8x128xf32> to vector<8xf32>
      %100 = vector.shape_cast %99 : vector<8xf32> to vector<8x1xf32>
      %cst_69 = arith.constant 1.280000e+02 : f32
      %101 = vector.broadcast %cst_69 : f32 to vector<8x1xf32>
      %102 = arith.divf %100, %101 : vector<8x1xf32>
      %103 = vector.broadcast %102 : vector<8x1xf32> to vector<8x128xf32>
      %104 = arith.subf %96, %103 : vector<8x128xf32>
      %105 = arith.mulf %104, %104 : vector<8x128xf32>
      %cst_70 = arith.constant dense<0.000000e+00> : vector<8xf32>
      %106 = vector.multi_reduction <add>, %105, %cst_70 [1] : vector<8x128xf32> to vector<8xf32>
      %107 = vector.shape_cast %106 : vector<8xf32> to vector<8x1xf32>
      %cst_71 = arith.constant 1.280000e+02 : f32
      %108 = vector.broadcast %cst_71 : f32 to vector<8x1xf32>
      %109 = arith.divf %107, %108 : vector<8x1xf32>
      %cst_72 = arith.constant 9.99999974E-6 : f32
      %110 = vector.broadcast %cst_72 : f32 to vector<8x1xf32>
      %111 = arith.addf %109, %110 : vector<8x1xf32>
      %112 = math.rsqrt %111 : vector<8x1xf32>
      %113 = vector.broadcast %112 : vector<8x1xf32> to vector<8x128xf32>
      %114 = arith.mulf %104, %113 : vector<8x128xf32>
      %115 = vector.broadcast %97 : vector<1x128xf32> to vector<8x128xf32>
      %116 = arith.mulf %114, %115 : vector<8x128xf32>
      %117 = vector.broadcast %98 : vector<1x128xf32> to vector<8x128xf32>
      %118 = arith.addf %116, %117 : vector<8x128xf32>
      %c0_73 = arith.constant 0 : index
      %c0_74 = arith.constant 0 : index
      %c0_75 = arith.constant 0 : index
      %119 = vector.load %arg21[%c0_73, %c0_74, %c0_75] : memref<1x8x128xf32, #tpu.memory_space<vmem>>, vector<1x8x128xf32>
      %120 = vector.shape_cast %119 : vector<1x8x128xf32> to vector<8x128xf32>
      %121 = vector.shape_cast %118 : vector<8x128xf32> to vector<1x8x128xf32>
      tpu.vector_store %arg21[%c0_73, %c0_74, %c0_75], %121 {strides = array<i32>} : memref<1x8x128xf32, #tpu.memory_space<vmem>>, vector<1x8x128xf32>,
    } else {
    }
    return
  }
  func.func @transform_0(%arg0: i32, %arg1: i32, %arg2: i32) -> (i32, i32, i32) {
    %c0_i32 = arith.constant 0 : i32
    %c0_i32_0 = arith.constant 0 : i32
    return %arg0, %arg1, %c0_i32 : i32, i32, i32
  }
  func.func @transform_1(%arg0: i32, %arg1: i32, %arg2: i32) -> (i32, i32, i32) {
    %c0_i32 = arith.constant 0 : i32
    %c0_i32_0 = arith.constant 0 : i32
    return %arg0, %arg2, %c0_i32 : i32, i32, i32
  }
  func.func @transform_2(%arg0: i32, %arg1: i32, %arg2: i32) -> (i32, i32) {
    %c0_i32 = arith.constant 0 : i32
    %c0_i32_0 = arith.constant 0 : i32
    %c0_i32_1 = arith.constant 0 : i32
    return %c0_i32, %c0_i32_0 : i32, i32
  }
  func.func @transform_3(%arg0: i32, %arg1: i32, %arg2: i32) -> (i32, i32) {
    %c0_i32 = arith.constant 0 : i32
    %c0_i32_0 = arith.constant 0 : i32
    %c0_i32_1 = arith.constant 0 : i32
    return %c0_i32, %c0_i32_0 : i32, i32
  }
  func.func @transform_4(%arg0: i32, %arg1: i32, %arg2: i32) -> (i32, i32) {
    %c0_i32 = arith.constant 0 : i32
    %c0_i32_0 = arith.constant 0 : i32
    %c0_i32_1 = arith.constant 0 : i32
    return %c0_i32, %c0_i32_0 : i32, i32
  }
  func.func @transform_5(%arg0: i32, %arg1: i32, %arg2: i32) -> (i32, i32) {
    %c0_i32 = arith.constant 0 : i32
    %c0_i32_0 = arith.constant 0 : i32
    %c0_i32_1 = arith.constant 0 : i32
    return %c0_i32, %c0_i32_0 : i32, i32
  }
  func.func @transform_6(%arg0: i32, %arg1: i32, %arg2: i32) -> (i32, i32) {
    %c0_i32 = arith.constant 0 : i32
    %c0_i32_0 = arith.constant 0 : i32
    %c0_i32_1 = arith.constant 0 : i32
    return %c0_i32, %c0_i32_0 : i32, i32
  }
  func.func @transform_7(%arg0: i32, %arg1: i32, %arg2: i32) -> (i32, i32) {
    %c0_i32 = arith.constant 0 : i32
    %c0_i32_0 = arith.constant 0 : i32
    %c0_i32_1 = arith.constant 0 : i32
    return %c0_i32, %c0_i32_0 : i32, i32
  }
  func.func @transform_8(%arg0: i32, %arg1: i32, %arg2: i32) -> (i32, i32) {
    %c0_i32 = arith.constant 0 : i32
    %c0_i32_0 = arith.constant 0 : i32
    %c0_i32_1 = arith.constant 0 : i32
    return %c0_i32, %c0_i32_0 : i32, i32
  }
  func.func @transform_9(%arg0: i32, %arg1: i32, %arg2: i32) -> (i32, i32) {
    %c0_i32 = arith.constant 0 : i32
    %c0_i32_0 = arith.constant 0 : i32
    %c0_i32_1 = arith.constant 0 : i32
    return %c0_i32, %c0_i32_0 : i32, i32
  }
  func.func @transform_10(%arg0: i32, %arg1: i32, %arg2: i32) -> (i32, i32) {
    %c0_i32 = arith.constant 0 : i32
    %c0_i32_0 = arith.constant 0 : i32
    %c0_i32_1 = arith.constant 0 : i32
    return %c0_i32, %c0_i32_0 : i32, i32
  }
  func.func @transform_11(%arg0: i32, %arg1: i32, %arg2: i32) -> (i32, i32) {
    %c0_i32 = arith.constant 0 : i32
    %c0_i32_0 = arith.constant 0 : i32
    %c0_i32_1 = arith.constant 0 : i32
    return %c0_i32, %c0_i32_0 : i32, i32
  }
  func.func @transform_12(%arg0: i32, %arg1: i32, %arg2: i32) -> (i32, i32) {
    %c0_i32 = arith.constant 0 : i32
    %c0_i32_0 = arith.constant 0 : i32
    %c0_i32_1 = arith.constant 0 : i32
    return %c0_i32, %c0_i32_0 : i32, i32
  }
  func.func @transform_13(%arg0: i32, %arg1: i32, %arg2: i32) -> (i32, i32) {
    %c0_i32 = arith.constant 0 : i32
    %c0_i32_0 = arith.constant 0 : i32
    %c0_i32_1 = arith.constant 0 : i32
    return %c0_i32, %c0_i32_0 : i32, i32
  }
  func.func @transform_14(%arg0: i32, %arg1: i32, %arg2: i32) -> (i32, i32) {
    %c0_i32 = arith.constant 0 : i32
    %c0_i32_0 = arith.constant 0 : i32
    %c0_i32_1 = arith.constant 0 : i32
    return %c0_i32, %c0_i32_0 : i32, i32
  }
  func.func @transform_15(%arg0: i32, %arg1: i32, %arg2: i32) -> (i32, i32) {
    %c0_i32 = arith.constant 0 : i32
    %c0_i32_0 = arith.constant 0 : i32
    %c0_i32_1 = arith.constant 0 : i32
    return %c0_i32, %c0_i32_0 : i32, i32
  }
  func.func @transform_16(%arg0: i32, %arg1: i32, %arg2: i32) -> (i32, i32) {
    %c0_i32 = arith.constant 0 : i32
    %c0_i32_0 = arith.constant 0 : i32
    %c0_i32_1 = arith.constant 0 : i32
    return %c0_i32, %c0_i32_0 : i32, i32
  }
  func.func @transform_17(%arg0: i32, %arg1: i32, %arg2: i32) -> (i32, i32) {
    %c0_i32 = arith.constant 0 : i32
    %c0_i32_0 = arith.constant 0 : i32
    %c0_i32_1 = arith.constant 0 : i32
    return %c0_i32, %c0_i32_0 : i32, i32
  }
  func.func @transform_18(%arg0: i32, %arg1: i32, %arg2: i32) -> (i32, i32, i32) {
    %c0_i32 = arith.constant 0 : i32
    %c0_i32_0 = arith.constant 0 : i32
    return %arg0, %arg1, %c0_i32 : i32, i32, i32
  }
}

module attributes {stable_mosaic.version = 11 : i64} {
  func.func @encoder_layer_kernel(%arg0: i32, %arg1: i32, %arg2: i32, %arg3: memref<1x8x128xf32, #tpu.memory_space<vmem>>, %arg4: memref<1x8x128xf32, #tpu.memory_space<vmem>>, %arg5: memref<128x128xbf16, #tpu.memory_space<vmem>>, %arg6: memref<1x128xf32, #tpu.memory_space<vmem>>, %arg7: memref<128x128xbf16, #tpu.memory_space<vmem>>, %arg8: memref<1x128xf32, #tpu.memory_space<vmem>>, %arg9: memref<128x128xbf16, #tpu.memory_space<vmem>>, %arg10: memref<1x128xf32, #tpu.memory_space<vmem>>, %arg11: memref<128x128xbf16, #tpu.memory_space<vmem>>, %arg12: memref<1x128xf32, #tpu.memory_space<vmem>>, %arg13: memref<1x128xf32, #tpu.memory_space<vmem>>, %arg14: memref<1x128xf32, #tpu.memory_space<vmem>>, %arg15: memref<128x128xbf16, #tpu.memory_space<vmem>>, %arg16: memref<1x128xf32, #tpu.memory_space<vmem>>, %arg17: memref<128x128xbf16, #tpu.memory_space<vmem>>, %arg18: memref<1x128xf32, #tpu.memory_space<vmem>>, %arg19: memref<1x128xf32, #tpu.memory_space<vmem>>, %arg20: memref<1x128xf32, #tpu.memory_space<vmem>>, %arg21: memref<1x8x128xf32, #tpu.memory_space<vmem>>, %arg22: memref<8x128xbf16, #tpu.memory_space<vmem>>, %arg23: memref<8x1xf32, #tpu.memory_space<vmem>>, %arg24: memref<8x1xf32, #tpu.memory_space<vmem>>, %arg25: memref<8x128xf32, #tpu.memory_space<vmem>>) attributes {dimension_semantics = [#tpu.dimension_semantics<parallel>, #tpu.dimension_semantics<parallel>, #tpu.dimension_semantics<arbitrary>], iteration_bounds = array<i64: 2, 1, 1>, scalar_prefetch = 0 : i64, scratch_operands = 4 : i64, tpu.core_type = #tpu.core_type<tc>, window_params = [{transform_indices = @transform_0, window_bounds = array<i64: 1, 8, 128>}, {transform_indices = @transform_1, window_bounds = array<i64: 1, 8, 128>}, {pipeline_mode = #tpu.pipeline_mode<synchronous>, transform_indices = @transform_2, window_bounds = array<i64: 128, 128>}, {pipeline_mode = #tpu.pipeline_mode<synchronous>, transform_indices = @transform_3, window_bounds = array<i64: 1, 128>}, {pipeline_mode = #tpu.pipeline_mode<synchronous>, transform_indices = @transform_4, window_bounds = array<i64: 128, 128>}, {pipeline_mode = #tpu.pipeline_mode<synchronous>, transform_indices = @transform_5, window_bounds = array<i64: 1, 128>}, {pipeline_mode = #tpu.pipeline_mode<synchronous>, transform_indices = @transform_6, window_bounds = array<i64: 128, 128>}, {pipeline_mode = #tpu.pipeline_mode<synchronous>, transform_indices = @transform_7, window_bounds = array<i64: 1, 128>}, {pipeline_mode = #tpu.pipeline_mode<synchronous>, transform_indices = @transform_8, window_bounds = array<i64: 128, 128>}, {pipeline_mode = #tpu.pipeline_mode<synchronous>, transform_indices = @transform_9, window_bounds = array<i64: 1, 128>}, {pipeline_mode = #tpu.pipeline_mode<synchronous>, transform_indices = @transform_10, window_bounds = array<i64: 1, 128>}, {pipeline_mode = #tpu.pipeline_mode<synchronous>, transform_indices = @transform_11, window_bounds = array<i64: 1, 128>}, {pipeline_mode = #tpu.pipeline_mode<synchronous>, transform_indices = @transform_12, window_bounds = array<i64: 128, 128>}, {pipeline_mode = #tpu.pipeline_mode<synchronous>, transform_indices = @transform_13, window_bounds = array<i64: 1, 128>}, {pipeline_mode = #tpu.pipeline_mode<synchronous>, transform_indices = @transform_14, window_bounds = array<i64: 128, 128>}, {pipeline_mode = #tpu.pipeline_mode<synchronous>, transform_indices = @transform_15, window_bounds = array<i64: 1, 128>}, {pipeline_mode = #tpu.pipeline_mode<synchronous>, transform_indices = @transform_16, window_bounds = array<i64: 1, 128>}, {pipeline_mode = #tpu.pipeline_mode<synchronous>, transform_indices = @transform_17, window_bounds = array<i64: 1, 128>}, {transform_indices = @transform_18, window_bounds = array<i64: 1, 8, 128>}]} {
    %c0_i32 = arith.constant 0 : i32
    %0 = arith.cmpi eq, %arg2, %c0_i32 : i32
    %1 = arith.extui %0 : i1 to i32
    %c0_i32_0 = arith.constant 0 : i32
    %2 = arith.cmpi ne, %1, %c0_i32_0 : i32
    scf.if %2 {
      %c0_32 = arith.constant 0 : index
      %c0_33 = arith.constant 0 : index
      %c0_34 = arith.constant 0 : index
      %46 = vector.load %arg3[%c0_32, %c0_33, %c0_34] : memref<1x8x128xf32, #tpu.memory_space<vmem>>, vector<1x8x128xf32>
      %47 = vector.shape_cast %46 : vector<1x8x128xf32> to vector<8x128xf32>
      %48 = arith.truncf %47 : vector<8x128xf32> to vector<8x128xbf16>
      %c0_35 = arith.constant 0 : index
      %c0_36 = arith.constant 0 : index
      %49 = vector.load %arg5[%c0_35, %c0_36] : memref<128x128xbf16, #tpu.memory_space<vmem>>, vector<128x128xbf16>
      %cst_37 = arith.constant dense<0.000000e+00> : vector<8x128xf32>
      %50 = tpu.matmul %48, %49, %cst_37 {dimension_numbers = #tpu.dot_dimension_numbers<[1], [0], [0], [1], [0, 0, 1, 1], [], []>} : vector<8x128xbf16>, vector<128x128xbf16>, vector<8x128xf32> -> vector<8x128xf32>
      %c0_38 = arith.constant 0 : index
      %c0_39 = arith.constant 0 : index
      %51 = vector.load %arg6[%c0_38, %c0_39] : memref<1x128xf32, #tpu.memory_space<vmem>>, vector<1x128xf32>
      %52 = vector.broadcast %51 : vector<1x128xf32> to vector<8x128xf32>
      %53 = arith.addf %50, %52 : vector<8x128xf32>
      %cst_40 = arith.constant 0.0883883461 : f32
      %54 = vector.broadcast %cst_40 : f32 to vector<8x128xf32>
      %55 = arith.mulf %53, %54 : vector<8x128xf32>
      %56 = arith.truncf %55 : vector<8x128xf32> to vector<8x128xbf16>
      %c0_41 = arith.constant 0 : index
      %c0_42 = arith.constant 0 : index
      %57 = vector.load %arg22[%c0_41, %c0_42] : memref<8x128xbf16, #tpu.memory_space<vmem>>, vector<8x128xbf16>
      tpu.vector_store %arg22[%c0_41, %c0_42], %56 {strides = array<i32>} : memref<8x128xbf16, #tpu.memory_space<vmem>>, vector<8x128xbf16>,
      %cst_43 = arith.constant 0xFF800000 : f32
      %58 = vector.broadcast %cst_43 : f32 to vector<8x1xf32>
      %c0_44 = arith.constant 0 : index
      %c0_45 = arith.constant 0 : index
      %59 = vector.load %arg23[%c0_44, %c0_45] : memref<8x1xf32, #tpu.memory_space<vmem>>, vector<8x1xf32>
      tpu.vector_store %arg23[%c0_44, %c0_45], %58 {strides = array<i32>} : memref<8x1xf32, #tpu.memory_space<vmem>>, vector<8x1xf32>,
      %cst_46 = arith.constant 0.000000e+00 : f32
      %60 = vector.broadcast %cst_46 : f32 to vector<8x1xf32>
      %c0_47 = arith.constant 0 : index
      %c0_48 = arith.constant 0 : index
      %61 = vector.load %arg24[%c0_47, %c0_48] : memref<8x1xf32, #tpu.memory_space<vmem>>, vector<8x1xf32>
      tpu.vector_store %arg24[%c0_47, %c0_48], %60 {strides = array<i32>} : memref<8x1xf32, #tpu.memory_space<vmem>>, vector<8x1xf32>,
      %cst_49 = arith.constant 0.000000e+00 : f32
      %62 = vector.broadcast %cst_49 : f32 to vector<8x128xf32>
      %c0_50 = arith.constant 0 : index
      %c0_51 = arith.constant 0 : index
      %63 = vector.load %arg25[%c0_50, %c0_51] : memref<8x128xf32, #tpu.memory_space<vmem>>, vector<8x128xf32>
      tpu.vector_store %arg25[%c0_50, %c0_51], %62 {strides = array<i32>} : memref<8x128xf32, #tpu.memory_space<vmem>>, vector<8x128xf32>,
    } else {
    }
    %c0 = arith.constant 0 : index
    %c0_1 = arith.constant 0 : index
    %c0_2 = arith.constant 0 : index
    %3 = vector.load %arg4[%c0, %c0_1, %c0_2] : memref<1x8x128xf32, #tpu.memory_space<vmem>>, vector<1x8x128xf32>
    %4 = vector.shape_cast %3 : vector<1x8x128xf32> to vector<8x128xf32>
    %5 = arith.truncf %4 : vector<8x128xf32> to vector<8x128xbf16>
    %c0_3 = arith.constant 0 : index
    %c0_4 = arith.constant 0 : index
    %6 = vector.load %arg7[%c0_3, %c0_4] : memref<128x128xbf16, #tpu.memory_space<vmem>>, vector<128x128xbf16>
    %cst = arith.constant dense<0.000000e+00> : vector<8x128xf32>
    %7 = tpu.matmul %5, %6, %cst {dimension_numbers = #tpu.dot_dimension_numbers<[1], [0], [0], [1], [0, 0, 1, 1], [], []>} : vector<8x128xbf16>, vector<128x128xbf16>, vector<8x128xf32> -> vector<8x128xf32>
    %c0_5 = arith.constant 0 : index
    %c0_6 = arith.constant 0 : index
    %8 = vector.load %arg8[%c0_5, %c0_6] : memref<1x128xf32, #tpu.memory_space<vmem>>, vector<1x128xf32>
    %9 = vector.broadcast %8 : vector<1x128xf32> to vector<8x128xf32>
    %10 = arith.addf %7, %9 : vector<8x128xf32>
    %11 = arith.truncf %10 : vector<8x128xf32> to vector<8x128xbf16>
    %c0_7 = arith.constant 0 : index
    %c0_8 = arith.constant 0 : index
    %12 = vector.load %arg9[%c0_7, %c0_8] : memref<128x128xbf16, #tpu.memory_space<vmem>>, vector<128x128xbf16>
    %cst_9 = arith.constant dense<0.000000e+00> : vector<8x128xf32>
    %13 = tpu.matmul %5, %12, %cst_9 {dimension_numbers = #tpu.dot_dimension_numbers<[1], [0], [0], [1], [0, 0, 1, 1], [], []>} : vector<8x128xbf16>, vector<128x128xbf16>, vector<8x128xf32> -> vector<8x128xf32>
    %c0_10 = arith.constant 0 : index
    %c0_11 = arith.constant 0 : index
    %14 = vector.load %arg10[%c0_10, %c0_11] : memref<1x128xf32, #tpu.memory_space<vmem>>, vector<1x128xf32>
    %15 = vector.broadcast %14 : vector<1x128xf32> to vector<8x128xf32>
    %16 = arith.addf %13, %15 : vector<8x128xf32>
    %17 = arith.truncf %16 : vector<8x128xf32> to vector<8x128xbf16>
    %c0_12 = arith.constant 0 : index
    %c0_13 = arith.constant 0 : index
    %18 = vector.load %arg22[%c0_12, %c0_13] : memref<8x128xbf16, #tpu.memory_space<vmem>>, vector<8x128xbf16>
    %cst_14 = arith.constant dense<0.000000e+00> : vector<8x8xf32>
    %19 = tpu.matmul %18, %11, %cst_14 {dimension_numbers = #tpu.dot_dimension_numbers<[1], [1], [0], [0], [0, 0, 1, 0], [], []>} : vector<8x128xbf16>, vector<8x128xbf16>, vector<8x8xf32> -> vector<8x8xf32>
    %c0_15 = arith.constant 0 : index
    %c0_16 = arith.constant 0 : index
    %20 = vector.load %arg23[%c0_15, %c0_16] : memref<8x1xf32, #tpu.memory_space<vmem>>, vector<8x1xf32>
    %cst_17 = arith.constant dense<0xFF800000> : vector<8xf32>
    %21 = vector.multi_reduction <maximumf>, %19, %cst_17 [1] : vector<8x8xf32> to vector<8xf32>
    %22 = vector.shape_cast %21 : vector<8xf32> to vector<8x1xf32>
    %23 = arith.maximumf %20, %22 : vector<8x1xf32>
    %24 = arith.subf %20, %23 : vector<8x1xf32>
    %25 = math.exp %24 : vector<8x1xf32>
    %26 = vector.broadcast %23 : vector<8x1xf32> to vector<8x8xf32>
    %27 = arith.subf %19, %26 : vector<8x8xf32>
    %28 = math.exp %27 : vector<8x8xf32>
    %c0_18 = arith.constant 0 : index
    %c0_19 = arith.constant 0 : index
    %29 = vector.load %arg24[%c0_18, %c0_19] : memref<8x1xf32, #tpu.memory_space<vmem>>, vector<8x1xf32>
    %30 = arith.mulf %25, %29 : vector<8x1xf32>
    %cst_20 = arith.constant dense<0.000000e+00> : vector<8xf32>
    %31 = vector.multi_reduction <add>, %28, %cst_20 [1] : vector<8x8xf32> to vector<8xf32>
    %32 = vector.shape_cast %31 : vector<8xf32> to vector<8x1xf32>
    %33 = arith.addf %30, %32 : vector<8x1xf32>
    %c0_21 = arith.constant 0 : index
    %c0_22 = arith.constant 0 : index
    %34 = vector.load %arg24[%c0_21, %c0_22] : memref<8x1xf32, #tpu.memory_space<vmem>>, vector<8x1xf32>
    tpu.vector_store %arg24[%c0_21, %c0_22], %33 {strides = array<i32>} : memref<8x1xf32, #tpu.memory_space<vmem>>, vector<8x1xf32>,
    %c0_23 = arith.constant 0 : index
    %c0_24 = arith.constant 0 : index
    %35 = vector.load %arg25[%c0_23, %c0_24] : memref<8x128xf32, #tpu.memory_space<vmem>>, vector<8x128xf32>
    %36 = vector.broadcast %25 : vector<8x1xf32> to vector<8x128xf32>
    %37 = arith.mulf %36, %35 : vector<8x128xf32>
    %38 = arith.truncf %28 : vector<8x8xf32> to vector<8x8xbf16>
    %cst_25 = arith.constant dense<0.000000e+00> : vector<8x128xf32>
    %39 = tpu.matmul %38, %17, %cst_25 {dimension_numbers = #tpu.dot_dimension_numbers<[1], [0], [0], [1], [0, 0, 1, 1], [], []>} : vector<8x8xbf16>, vector<8x128xbf16>, vector<8x128xf32> -> vector<8x128xf32>
    %40 = arith.addf %37, %39 : vector<8x128xf32>
    %c0_26 = arith.constant 0 : index
    %c0_27 = arith.constant 0 : index
    %41 = vector.load %arg25[%c0_26, %c0_27] : memref<8x128xf32, #tpu.memory_space<vmem>>, vector<8x128xf32>
    tpu.vector_store %arg25[%c0_26, %c0_27], %40 {strides = array<i32>} : memref<8x128xf32, #tpu.memory_space<vmem>>, vector<8x128xf32>,
    %c0_28 = arith.constant 0 : index
    %c0_29 = arith.constant 0 : index
    %42 = vector.load %arg23[%c0_28, %c0_29] : memref<8x1xf32, #tpu.memory_space<vmem>>, vector<8x1xf32>
    tpu.vector_store %arg23[%c0_28, %c0_29], %23 {strides = array<i32>} : memref<8x1xf32, #tpu.memory_space<vmem>>, vector<8x1xf32>,
    %c0_i32_30 = arith.constant 0 : i32
    %43 = arith.cmpi eq, %arg2, %c0_i32_30 : i32
    %44 = arith.extui %43 : i1 to i32
    %c0_i32_31 = arith.constant 0 : i32
    %45 = arith.cmpi ne, %44, %c0_i32_31 : i32
    scf.if %45 {
      %c0_32 = arith.constant 0 : index
      %c0_33 = arith.constant 0 : index
      %46 = vector.load %arg25[%c0_32, %c0_33] : memref<8x128xf32, #tpu.memory_space<vmem>>, vector<8x128xf32>
      %c0_34 = arith.constant 0 : index
      %c0_35 = arith.constant 0 : index
      %47 = vector.load %arg24[%c0_34, %c0_35] : memref<8x1xf32, #tpu.memory_space<vmem>>, vector<8x1xf32>
      %48 = tpu.reciprocal %47 {approx = true} : vector<8x1xf32> -> vector<8x1xf32>
      %49 = vector.broadcast %48 : vector<8x1xf32> to vector<8x128xf32>
      %50 = arith.mulf %46, %49 : vector<8x128xf32>
      %51 = arith.truncf %50 : vector<8x128xf32> to vector<8x128xbf16>
      %c0_36 = arith.constant 0 : index
      %c0_37 = arith.constant 0 : index
      %52 = vector.load %arg11[%c0_36, %c0_37] : memref<128x128xbf16, #tpu.memory_space<vmem>>, vector<128x128xbf16>
      %cst_38 = arith.constant dense<0.000000e+00> : vector<8x128xf32>
      %53 = tpu.matmul %51, %52, %cst_38 {dimension_numbers = #tpu.dot_dimension_numbers<[1], [0], [0], [1], [0, 0, 1, 1], [], []>} : vector<8x128xbf16>, vector<128x128xbf16>, vector<8x128xf32> -> vector<8x128xf32>
      %c0_39 = arith.constant 0 : index
      %c0_40 = arith.constant 0 : index
      %54 = vector.load %arg12[%c0_39, %c0_40] : memref<1x128xf32, #tpu.memory_space<vmem>>, vector<1x128xf32>
      %55 = vector.broadcast %54 : vector<1x128xf32> to vector<8x128xf32>
      %56 = arith.addf %53, %55 : vector<8x128xf32>
      %c0_41 = arith.constant 0 : index
      %c0_42 = arith.constant 0 : index
      %c0_43 = arith.constant 0 : index
      %57 = vector.load %arg3[%c0_41, %c0_42, %c0_43] : memref<1x8x128xf32, #tpu.memory_space<vmem>>, vector<1x8x128xf32>
      %58 = vector.shape_cast %57 : vector<1x8x128xf32> to vector<8x128xf32>
      %59 = arith.addf %58, %56 : vector<8x128xf32>
      %c0_44 = arith.constant 0 : index
      %c0_45 = arith.constant 0 : index
      %60 = vector.load %arg13[%c0_44, %c0_45] : memref<1x128xf32, #tpu.memory_space<vmem>>, vector<1x128xf32>
      %c0_46 = arith.constant 0 : index
      %c0_47 = arith.constant 0 : index
      %61 = vector.load %arg14[%c0_46, %c0_47] : memref<1x128xf32, #tpu.memory_space<vmem>>, vector<1x128xf32>
      %cst_48 = arith.constant dense<0.000000e+00> : vector<8xf32>
      %62 = vector.multi_reduction <add>, %59, %cst_48 [1] : vector<8x128xf32> to vector<8xf32>
      %63 = vector.shape_cast %62 : vector<8xf32> to vector<8x1xf32>
      %cst_49 = arith.constant 1.280000e+02 : f32
      %64 = vector.broadcast %cst_49 : f32 to vector<8x1xf32>
      %65 = arith.divf %63, %64 : vector<8x1xf32>
      %66 = vector.broadcast %65 : vector<8x1xf32> to vector<8x128xf32>
      %67 = arith.subf %59, %66 : vector<8x128xf32>
      %68 = arith.mulf %67, %67 : vector<8x128xf32>
      %cst_50 = arith.constant dense<0.000000e+00> : vector<8xf32>
      %69 = vector.multi_reduction <add>, %68, %cst_50 [1] : vector<8x128xf32> to vector<8xf32>
      %70 = vector.shape_cast %69 : vector<8xf32> to vector<8x1xf32>
      %cst_51 = arith.constant 1.280000e+02 : f32
      %71 = vector.broadcast %cst_51 : f32 to vector<8x1xf32>
      %72 = arith.divf %70, %71 : vector<8x1xf32>
      %cst_52 = arith.constant 9.99999974E-6 : f32
      %73 = vector.broadcast %cst_52 : f32 to vector<8x1xf32>
      %74 = arith.addf %72, %73 : vector<8x1xf32>
      %75 = math.rsqrt %74 : vector<8x1xf32>
      %76 = vector.broadcast %75 : vector<8x1xf32> to vector<8x128xf32>
      %77 = arith.mulf %67, %76 : vector<8x128xf32>
      %78 = vector.broadcast %60 : vector<1x128xf32> to vector<8x128xf32>
      %79 = arith.mulf %77, %78 : vector<8x128xf32>
      %80 = vector.broadcast %61 : vector<1x128xf32> to vector<8x128xf32>
      %81 = arith.addf %79, %80 : vector<8x128xf32>
      %82 = arith.truncf %81 : vector<8x128xf32> to vector<8x128xbf16>
      %c0_53 = arith.constant 0 : index
      %c0_54 = arith.constant 0 : index
      %83 = vector.load %arg15[%c0_53, %c0_54] : memref<128x128xbf16, #tpu.memory_space<vmem>>, vector<128x128xbf16>
      %cst_55 = arith.constant dense<0.000000e+00> : vector<8x128xf32>
      %84 = tpu.matmul %82, %83, %cst_55 {dimension_numbers = #tpu.dot_dimension_numbers<[1], [0], [0], [1], [0, 0, 1, 1], [], []>} : vector<8x128xbf16>, vector<128x128xbf16>, vector<8x128xf32> -> vector<8x128xf32>
      %c0_56 = arith.constant 0 : index
      %c0_57 = arith.constant 0 : index
      %85 = vector.load %arg16[%c0_56, %c0_57] : memref<1x128xf32, #tpu.memory_space<vmem>>, vector<1x128xf32>
      %86 = vector.broadcast %85 : vector<1x128xf32> to vector<8x128xf32>
      %87 = arith.addf %84, %86 : vector<8x128xf32>
      %cst_58 = arith.constant 0.000000e+00 : f32
      %88 = vector.broadcast %cst_58 : f32 to vector<8x128xf32>
      %89 = arith.maximumf %87, %88 : vector<8x128xf32>
      %90 = arith.truncf %89 : vector<8x128xf32> to vector<8x128xbf16>
      %c0_59 = arith.constant 0 : index
      %c0_60 = arith.constant 0 : index
      %91 = vector.load %arg17[%c0_59, %c0_60] : memref<128x128xbf16, #tpu.memory_space<vmem>>, vector<128x128xbf16>
      %cst_61 = arith.constant dense<0.000000e+00> : vector<8x128xf32>
      %92 = tpu.matmul %90, %91, %cst_61 {dimension_numbers = #tpu.dot_dimension_numbers<[1], [0], [0], [1], [0, 0, 1, 1], [], []>} : vector<8x128xbf16>, vector<128x128xbf16>, vector<8x128xf32> -> vector<8x128xf32>
      %c0_62 = arith.constant 0 : index
      %c0_63 = arith.constant 0 : index
      %93 = vector.load %arg18[%c0_62, %c0_63] : memref<1x128xf32, #tpu.memory_space<vmem>>, vector<1x128xf32>
      %94 = vector.broadcast %93 : vector<1x128xf32> to vector<8x128xf32>
      %95 = arith.addf %92, %94 : vector<8x128xf32>
      %96 = arith.addf %81, %95 : vector<8x128xf32>
      %c0_64 = arith.constant 0 : index
      %c0_65 = arith.constant 0 : index
      %97 = vector.load %arg19[%c0_64, %c0_65] : memref<1x128xf32, #tpu.memory_space<vmem>>, vector<1x128xf32>
      %c0_66 = arith.constant 0 : index
      %c0_67 = arith.constant 0 : index
      %98 = vector.load %arg20[%c0_66, %c0_67] : memref<1x128xf32, #tpu.memory_space<vmem>>, vector<1x128xf32>
      %cst_68 = arith.constant dense<0.000000e+00> : vector<8xf32>
      %99 = vector.multi_reduction <add>, %96, %cst_68 [1] : vector<8x128xf32> to vector<8xf32>
      %100 = vector.shape_cast %99 : vector<8xf32> to vector<8x1xf32>
      %cst_69 = arith.constant 1.280000e+02 : f32
      %101 = vector.broadcast %cst_69 : f32 to vector<8x1xf32>
      %102 = arith.divf %100, %101 : vector<8x1xf32>
      %103 = vector.broadcast %102 : vector<8x1xf32> to vector<8x128xf32>
      %104 = arith.subf %96, %103 : vector<8x128xf32>
      %105 = arith.mulf %104, %104 : vector<8x128xf32>
      %cst_70 = arith.constant dense<0.000000e+00> : vector<8xf32>
      %106 = vector.multi_reduction <add>, %105, %cst_70 [1] : vector<8x128xf32> to vector<8xf32>
      %107 = vector.shape_cast %106 : vector<8xf32> to vector<8x1xf32>
      %cst_71 = arith.constant 1.280000e+02 : f32
      %108 = vector.broadcast %cst_71 : f32 to vector<8x1xf32>
      %109 = arith.divf %107, %108 : vector<8x1xf32>
      %cst_72 = arith.constant 9.99999974E-6 : f32
      %110 = vector.broadcast %cst_72 : f32 to vector<8x1xf32>
      %111 = arith.addf %109, %110 : vector<8x1xf32>
      %112 = math.rsqrt %111 : vector<8x1xf32>
      %113 = vector.broadcast %112 : vector<8x1xf32> to vector<8x128xf32>
      %114 = arith.mulf %104, %113 : vector<8x128xf32>
      %115 = vector.broadcast %97 : vector<1x128xf32> to vector<8x128xf32>
      %116 = arith.mulf %114, %115 : vector<8x128xf32>
      %117 = vector.broadcast %98 : vector<1x128xf32> to vector<8x128xf32>
      %118 = arith.addf %116, %117 : vector<8x128xf32>
      %c0_73 = arith.constant 0 : index
      %c0_74 = arith.constant 0 : index
      %c0_75 = arith.constant 0 : index
      %119 = vector.load %arg21[%c0_73, %c0_74, %c0_75] : memref<1x8x128xf32, #tpu.memory_space<vmem>>, vector<1x8x128xf32>
      %120 = vector.shape_cast %119 : vector<1x8x128xf32> to vector<8x128xf32>
      %121 = vector.shape_cast %118 : vector<8x128xf32> to vector<1x8x128xf32>
      tpu.vector_store %arg21[%c0_73, %c0_74, %c0_75], %121 {strides = array<i32>} : memref<1x8x128xf32, #tpu.memory_space<vmem>>, vector<1x8x128xf32>,
    } else {
    }
    return
  }
  func.func @transform_0(%arg0: i32, %arg1: i32, %arg2: i32) -> (i32, i32, i32) {
    %c0_i32 = arith.constant 0 : i32
    %c0_i32_0 = arith.constant 0 : i32
    return %arg0, %arg1, %c0_i32 : i32, i32, i32
  }
  func.func @transform_1(%arg0: i32, %arg1: i32, %arg2: i32) -> (i32, i32, i32) {
    %c0_i32 = arith.constant 0 : i32
    %c0_i32_0 = arith.constant 0 : i32
    return %arg0, %arg2, %c0_i32 : i32, i32, i32
  }
  func.func @transform_2(%arg0: i32, %arg1: i32, %arg2: i32) -> (i32, i32) {
    %c0_i32 = arith.constant 0 : i32
    %c0_i32_0 = arith.constant 0 : i32
    %c0_i32_1 = arith.constant 0 : i32
    return %c0_i32, %c0_i32_0 : i32, i32
  }
  func.func @transform_3(%arg0: i32, %arg1: i32, %arg2: i32) -> (i32, i32) {
    %c0_i32 = arith.constant 0 : i32
    %c0_i32_0 = arith.constant 0 : i32
    %c0_i32_1 = arith.constant 0 : i32
    return %c0_i32, %c0_i32_0 : i32, i32
  }
  func.func @transform_4(%arg0: i32, %arg1: i32, %arg2: i32) -> (i32, i32) {
    %c0_i32 = arith.constant 0 : i32
    %c0_i32_0 = arith.constant 0 : i32
    %c0_i32_1 = arith.constant 0 : i32
    return %c0_i32, %c0_i32_0 : i32, i32
  }
  func.func @transform_5(%arg0: i32, %arg1: i32, %arg2: i32) -> (i32, i32) {
    %c0_i32 = arith.constant 0 : i32
    %c0_i32_0 = arith.constant 0 : i32
    %c0_i32_1 = arith.constant 0 : i32
    return %c0_i32, %c0_i32_0 : i32, i32
  }
  func.func @transform_6(%arg0: i32, %arg1: i32, %arg2: i32) -> (i32, i32) {
    %c0_i32 = arith.constant 0 : i32
    %c0_i32_0 = arith.constant 0 : i32
    %c0_i32_1 = arith.constant 0 : i32
    return %c0_i32, %c0_i32_0 : i32, i32
  }
  func.func @transform_7(%arg0: i32, %arg1: i32, %arg2: i32) -> (i32, i32) {
    %c0_i32 = arith.constant 0 : i32
    %c0_i32_0 = arith.constant 0 : i32
    %c0_i32_1 = arith.constant 0 : i32
    return %c0_i32, %c0_i32_0 : i32, i32
  }
  func.func @transform_8(%arg0: i32, %arg1: i32, %arg2: i32) -> (i32, i32) {
    %c0_i32 = arith.constant 0 : i32
    %c0_i32_0 = arith.constant 0 : i32
    %c0_i32_1 = arith.constant 0 : i32
    return %c0_i32, %c0_i32_0 : i32, i32
  }
  func.func @transform_9(%arg0: i32, %arg1: i32, %arg2: i32) -> (i32, i32) {
    %c0_i32 = arith.constant 0 : i32
    %c0_i32_0 = arith.constant 0 : i32
    %c0_i32_1 = arith.constant 0 : i32
    return %c0_i32, %c0_i32_0 : i32, i32
  }
  func.func @transform_10(%arg0: i32, %arg1: i32, %arg2: i32) -> (i32, i32) {
    %c0_i32 = arith.constant 0 : i32
    %c0_i32_0 = arith.constant 0 : i32
    %c0_i32_1 = arith.constant 0 : i32
    return %c0_i32, %c0_i32_0 : i32, i32
  }
  func.func @transform_11(%arg0: i32, %arg1: i32, %arg2: i32) -> (i32, i32) {
    %c0_i32 = arith.constant 0 : i32
    %c0_i32_0 = arith.constant 0 : i32
    %c0_i32_1 = arith.constant 0 : i32
    return %c0_i32, %c0_i32_0 : i32, i32
  }
  func.func @transform_12(%arg0: i32, %arg1: i32, %arg2: i32) -> (i32, i32) {
    %c0_i32 = arith.constant 0 : i32
    %c0_i32_0 = arith.constant 0 : i32
    %c0_i32_1 = arith.constant 0 : i32
    return %c0_i32, %c0_i32_0 : i32, i32
  }
  func.func @transform_13(%arg0: i32, %arg1: i32, %arg2: i32) -> (i32, i32) {
    %c0_i32 = arith.constant 0 : i32
    %c0_i32_0 = arith.constant 0 : i32
    %c0_i32_1 = arith.constant 0 : i32
    return %c0_i32, %c0_i32_0 : i32, i32
  }
  func.func @transform_14(%arg0: i32, %arg1: i32, %arg2: i32) -> (i32, i32) {
    %c0_i32 = arith.constant 0 : i32
    %c0_i32_0 = arith.constant 0 : i32
    %c0_i32_1 = arith.constant 0 : i32
    return %c0_i32, %c0_i32_0 : i32, i32
  }
  func.func @transform_15(%arg0: i32, %arg1: i32, %arg2: i32) -> (i32, i32) {
    %c0_i32 = arith.constant 0 : i32
    %c0_i32_0 = arith.constant 0 : i32
    %c0_i32_1 = arith.constant 0 : i32
    return %c0_i32, %c0_i32_0 : i32, i32
  }
  func.func @transform_16(%arg0: i32, %arg1: i32, %arg2: i32) -> (i32, i32) {
    %c0_i32 = arith.constant 0 : i32
    %c0_i32_0 = arith.constant 0 : i32
    %c0_i32_1 = arith.constant 0 : i32
    return %c0_i32, %c0_i32_0 : i32, i32
  }
  func.func @transform_17(%arg0: i32, %arg1: i32, %arg2: i32) -> (i32, i32) {
    %c0_i32 = arith.constant 0 : i32
    %c0_i32_0 = arith.constant 0 : i32
    %c0_i32_1 = arith.constant 0 : i32
    return %c0_i32, %c0_i32_0 : i32, i32
  }
  func.func @transform_18(%arg0: i32, %arg1: i32, %arg2: i32) -> (i32, i32, i32) {
    %c0_i32 = arith.constant 0 : i32
    %c0_i32_0 = arith.constant 0 : i32
    return %arg0, %arg1, %c0_i32 : i32, i32, i32
  }
}

</mosaic_0001>

<llo_original>
// kernel: tpu_custom_call.1
$region0: #{tpu_custom_call.1}
  #allocation0 [shape = 'u32[]', space=smem, size = 0x4, offset = 0x4, fixed_abs, tag = 'smem constant byte address 0x4 - core index']
  #allocation1 [shape = 'u32[144,128]{1,0:T(1,128)}', space=vmem, size = 0x12000, scoped, tag = 'internal scratch']
  #allocation2 [shape = 'bf16[8,128]{1,0:T(8,128)(2,1)}', space=vmem, size = 0x800, scoped, tag = 'scratch operand']
  #allocation3 [shape = 'f32[8,1]{1,0:T(8,128)}', space=vmem, size = 0x1000, scoped, tag = 'scratch operand']
  #allocation4 [shape = 'f32[8,1]{1,0:T(8,128)}', space=vmem, size = 0x1000, scoped, tag = 'scratch operand']
  #allocation5 [shape = 'f32[8,128]{1,0:T(8,128)}', space=vmem, size = 0x1000, scoped, tag = 'scratch operand']
  %s0 = inlined_call_operand.hbm [shape: f32[2,8,128], index: 0, kind: input, shape index: {}]
  %s1 = inlined_call_operand.hbm [shape: f32[2,8,128], index: 1, kind: input, shape index: {}]
  %s2 = inlined_call_operand.hbm [shape: bf16[128,128], index: 2, kind: input, shape index: {}]
  %s3 = inlined_call_operand.vmem [shape: f32[1,128], index: 3, kind: input, shape index: {}]
  %s4 = inlined_call_operand.hbm [shape: bf16[128,128], index: 4, kind: input, shape index: {}]
  %s5 = inlined_call_operand.vmem [shape: f32[1,128], index: 5, kind: input, shape index: {}]
  %s6 = inlined_call_operand.hbm [shape: bf16[128,128], index: 6, kind: input, shape index: {}]
  %s7 = inlined_call_operand.vmem [shape: f32[1,128], index: 7, kind: input, shape index: {}]
  %s8 = inlined_call_operand.hbm [shape: bf16[128,128], index: 8, kind: input, shape index: {}]
  %s9 = inlined_call_operand.vmem [shape: f32[1,128], index: 9, kind: input, shape index: {}]
  %s10 = inlined_call_operand.vmem [shape: f32[1,128], index: 10, kind: input, shape index: {}]
  %s11 = inlined_call_operand.vmem [shape: f32[1,128], index: 11, kind: input, shape index: {}]
  %s12 = inlined_call_operand.hbm [shape: bf16[128,128], index: 12, kind: input, shape index: {}]
  %s13 = inlined_call_operand.vmem [shape: f32[1,128], index: 13, kind: input, shape index: {}]
  %s14 = inlined_call_operand.hbm [shape: bf16[128,128], index: 14, kind: input, shape index: {}]
  %s15 = inlined_call_operand.vmem [shape: f32[1,128], index: 15, kind: input, shape index: {}]
  %s16 = inlined_call_operand.vmem [shape: f32[1,128], index: 16, kind: input, shape index: {}]
  %s17 = inlined_call_operand.vmem [shape: f32[1,128], index: 17, kind: input, shape index: {}]
  %s18 = inlined_call_operand.hbm [shape: f32[2,8,128], index: 18, kind: output, shape index: {}]
  %s19 = sld [smem:[#allocation0]]
  $region145: #{tpu_custom_call.1} parent=0
    _
  %s21 = ssub.s32 1, %s19
  %s22 = scalar_select 0, %s21, %s19
  $region1: #{tpu_custom_call.1} parent=0
    #allocation6 [shape = 'u8[8192]{0}', space=vmem, size = 0x2000, scoped, tag = 'input window, operand 0']
    #allocation7 [shape = 's32[2]{0}', space=sflag, size = 0x8, scoped, tag = 'scoped memory for tpu_custom_call.1']
    #allocation8 [shape = 's32[2]{0}', space=sflag, size = 0x8, scoped, tag = 'scoped memory for tpu_custom_call.1']
    #allocation9 [shape = 'u8[8192]{0}', space=vmem, size = 0x2000, scoped, tag = 'input window, operand 1']
    #allocation10 [shape = 's32[2]{0}', space=sflag, size = 0x8, scoped, tag = 'scoped memory for tpu_custom_call.1']
    #allocation11 [shape = 'u8[32768]{0}', space=vmem, size = 0x8000, scoped, tag = 'input window, operand 2, single buffered']
    #allocation12 [shape = 'u8[32768]{0}', space=vmem, size = 0x8000, scoped, tag = 'input window, operand 4, single buffered']
    #allocation13 [shape = 's32[1]{0}', space=sflag, size = 0x4, scoped, tag = 'scoped memory for tpu_custom_call.1']
    #allocation14 [shape = 'u8[32768]{0}', space=vmem, size = 0x8000, scoped, tag = 'input window, operand 6, single buffered']
    #allocation15 [shape = 'u8[32768]{0}', space=vmem, size = 0x8000, scoped, tag = 'input window, operand 8, single buffered']
    #allocation16 [shape = 's32[1]{0}', space=sflag, size = 0x4, scoped, tag = 'scoped memory for tpu_custom_call.1']
    #allocation17 [shape = 'u8[32768]{0}', space=vmem, size = 0x8000, scoped, tag = 'input window, operand 12, single buffered']
    #allocation18 [shape = 'u8[32768]{0}', space=vmem, size = 0x8000, scoped, tag = 'input window, operand 14, single buffered']
    #allocation19 [shape = 's32[1]{0}', space=sflag, size = 0x4, scoped, tag = 'scoped memory for tpu_custom_call.1']
    #allocation20 [shape = 'u8[8192]{0}', space=vmem, size = 0x2000, scoped, tag = 'output window, operand 0']
    %23 = vsyncpa [#allocation7], 0
    %s24 = scalar_lea.sflag [#allocation7], 1
    %25 = vsyncpa %s24, 0
    %26 = vsyncpa [#allocation10], 0
    %s27 = scalar_lea.sflag [#allocation10], 1
    %28 = vsyncpa %s27, 0
    %29 = vsyncpa [#allocation13], 0
    %30 = vsyncpa [#allocation16], 0
    %31 = vsyncpa [#allocation19], 0
    %32 = vsyncpa [#allocation8], 0
    %s33 = scalar_lea.sflag [#allocation8], 1
    %34 = vsyncpa %s33, 0
    loop: start=0, step=1, limit=4
    $region2: #{tpu_custom_call.1} parent=1 // loop_pre_header
      _
    $region3: #{tpu_custom_call.1} parent=1 // loop_header
      %s36 = sphi 0, %s40
      %p37 = scmp.ge.s32.totalorder %s36, 4
      %s43 = sphi 0, %s62
      %s44 = sphi 0, %s58
      %s45 = sphi 0, %s54
      %s46 = sphi 0, %s43
      %s47 = sphi 0, %s44
      %s48 = sphi 0, %s45
      %s49 = sphi 0, %s46
      %s50 = sphi 0, %s47
      %s51 = sphi 0, %s48
      %s67 = sphi 0, %s69
      %s70 = sphi 0, %s67
      %s71 = sphi 0, %s70
      %s87 = sphi 0, %s71
      %s95 = sphi 0, %s97
      %s98 = sphi 0, %s95
      %s99 = sphi 0, %s98
      %s115 = sphi 0, %s99
      %s119 = sphi 0, %s119
      %s121 = sphi 0, %s119
      %s122 = sphi 0, %s121
      %s136 = sphi 0, %s122
      %s140 = sphi 0, %s140
      %s142 = sphi 0, %s140
      %s143 = sphi 0, %s142
      %s157 = sphi 0, %s143
      %s161 = sphi 0, %s161
      %s163 = sphi 0, %s161
      %s164 = sphi 0, %s163
      %s178 = sphi 0, %s164
      %s182 = sphi 0, %s182
      %s184 = sphi 0, %s182
      %s185 = sphi 0, %s184
      %s199 = sphi 0, %s185
      %s203 = sphi 0, %s203
      %s205 = sphi 0, %s203
      %s206 = sphi 0, %s205
      %s220 = sphi 0, %s206
      %s224 = sphi 0, %s224
      %s226 = sphi 0, %s224
      %s227 = sphi 0, %s226
      %s241 = sphi 0, %s227
      %s245 = sphi 0, %s245
      %s247 = sphi 0, %s245
      %s248 = sphi 0, %s247
      %s262 = sphi 0, %s248
      %s266 = sphi 0, %s266
      %s268 = sphi 0, %s266
      %s269 = sphi 0, %s268
      %s283 = sphi 0, %s269
      %s287 = sphi 0, %s287
      %s289 = sphi 0, %s287
      %s290 = sphi 0, %s289
      %s304 = sphi 0, %s290
      %s308 = sphi 0, %s308
      %s310 = sphi 0, %s308
      %s311 = sphi 0, %s310
      %s325 = sphi 0, %s311
      %s329 = sphi 0, %s329
      %s331 = sphi 0, %s329
      %s332 = sphi 0, %s331
      %s346 = sphi 0, %s332
      %s350 = sphi 0, %s350
      %s352 = sphi 0, %s350
      %s353 = sphi 0, %s352
      %s367 = sphi 0, %s353
      %s371 = sphi 0, %s371
      %s373 = sphi 0, %s371
      %s374 = sphi 0, %s373
      %s388 = sphi 0, %s374
      %s392 = sphi 0, %s392
      %s394 = sphi 0, %s392
      %s395 = sphi 0, %s394
      %s409 = sphi 0, %s395
      %s413 = sphi 0, %s413
      %s415 = sphi 0, %s413
      %s416 = sphi 0, %s415
      %s430 = sphi 0, %s416
      %s434 = sphi 0, %s434
      %s436 = sphi 0, %s434
      %s437 = sphi 0, %s436
      %s451 = sphi 0, %s437
      %s459 = sphi 0, %s461
      %s462 = sphi 0, %s459
      %s463 = sphi 0, %s462
      %s479 = sphi 0, %s463
    $region4: #{tpu_custom_call.1} parent=1 // loop_header_branch
      %39 = sbr.rel (%p37) target = $region8
    $region5: #{tpu_custom_call.1} parent=1 // loop_body
      %s41 = ssub.s32 %s36, 1
      %s42 = ssub.s32 %s36, 2
      %s52 = sadd.s32 1, %s45
      %p53 = scmp.ge.s32.totalorder %s52, 1
      %s54 = scalar_select %p53, 0, %s52
      %s55 = sadd.s32 1, %s44
      %s56 = scalar_select %p53, %s55, %s44
      %p57 = scmp.ge.s32.totalorder %s56, 1
      %s58 = scalar_select %p57, 0, %s56
      %s59 = sadd.s32 1, %s43
      %s60 = scalar_select %p57, %s59, %s43
      %p61 = scmp.ge.s32.totalorder %s60, 2
      %s62 = scalar_select %p61, 0, %s60
      %s63 = ssub.s32 %s43, %s62
      %s64 = ssub.s32 %s44, %s58
      %s65 = sor.u32 %s63, %s64
      %p66 = scmp.eq.s32.totalorder %s65, 0
      %s68 = sadd.s32 %s67, 1
      %s69 = scalar_select %p66, %s67, %s68
      %p72 = pneg %p66
      %p73 = scmp.eq.s32.totalorder %s36, 1
      %p74 = por %p72, %p73
      %p75 = scmp.ne.s32.totalorder %s67, %s70
      %p76 = scmp.eq.s32.totalorder %s36, 0
      %p77 = por %p75, %p76
      %p78 = scmp.ne.s32.totalorder %s67, %s70
      %p79 = scmp.eq.s32.totalorder %s41, 1
      %p80 = por %p78, %p79
      %p81 = scmp.ne.s32.totalorder %s70, %s71
      %p82 = scmp.eq.s32.totalorder %s41, 0
      %p83 = por %p81, %p82
      %p84 = scmp.ne.s32.totalorder %s70, %s71
      %p85 = scmp.eq.s32.totalorder %s42, 1
      %p86 = por %p84, %p85
      %p88 = scmp.ne.s32.totalorder %s71, %s87
      %p89 = scmp.eq.s32.totalorder %s42, 0
      %p90 = por %p88, %p89
      %s91 = ssub.s32 %s43, %s62
      %s92 = ssub.s32 %s45, %s54
      %s93 = sor.u32 %s91, %s92
      %p94 = scmp.eq.s32.totalorder %s93, 0
      %s96 = sadd.s32 %s95, 1
      %s97 = scalar_select %p94, %s95, %s96
      %p100 = pneg %p94
      %p101 = scmp.eq.s32.totalorder %s36, 1
      %p102 = por %p100, %p101
      %p103 = scmp.ne.s32.totalorder %s95, %s98
      %p104 = scmp.eq.s32.totalorder %s36, 0
      %p105 = por %p103, %p104
      %p106 = scmp.ne.s32.totalorder %s95, %s98
      %p107 = scmp.eq.s32.totalorder %s41, 1
      %p108 = por %p106, %p107
      %p109 = scmp.ne.s32.totalorder %s98, %s99
      %p110 = scmp.eq.s32.totalorder %s41, 0
      %p111 = por %p109, %p110
      %p112 = scmp.ne.s32.totalorder %s98, %s99
      %p113 = scmp.eq.s32.totalorder %s42, 1
      %p114 = por %p112, %p113
      %p116 = scmp.ne.s32.totalorder %s99, %s115
      %p117 = scmp.eq.s32.totalorder %s42, 0
      %p118 = por %p116, %p117
      %s120 = sadd.s32 %s119, 1
      %p123 = scmp.eq.s32.totalorder %s36, 1
      %p124 = scmp.ne.s32.totalorder %s119, %s121
      %p125 = scmp.eq.s32.totalorder %s36, 0
      %p126 = por %p124, %p125
      %p127 = scmp.ne.s32.totalorder %s119, %s121
      %p128 = scmp.eq.s32.totalorder %s41, 1
      %p129 = por %p127, %p128
      %p130 = scmp.ne.s32.totalorder %s121, %s122
      %p131 = scmp.eq.s32.totalorder %s41, 0
      %p132 = por %p130, %p131
      %p133 = scmp.ne.s32.totalorder %s121, %s122
      %p134 = scmp.eq.s32.totalorder %s42, 1
      %p135 = por %p133, %p134
      %p137 = scmp.ne.s32.totalorder %s122, %s136
      %p138 = scmp.eq.s32.totalorder %s42, 0
      %p139 = por %p137, %p138
      %s141 = sadd.s32 %s140, 1
      %p144 = scmp.eq.s32.totalorder %s36, 1
      %p145 = scmp.ne.s32.totalorder %s140, %s142
      %p146 = scmp.eq.s32.totalorder %s36, 0
      %p147 = por %p145, %p146
      %p148 = scmp.ne.s32.totalorder %s140, %s142
      %p149 = scmp.eq.s32.totalorder %s41, 1
      %p150 = por %p148, %p149
      %p151 = scmp.ne.s32.totalorder %s142, %s143
      %p152 = scmp.eq.s32.totalorder %s41, 0
      %p153 = por %p151, %p152
      %p154 = scmp.ne.s32.totalorder %s142, %s143
      %p155 = scmp.eq.s32.totalorder %s42, 1
      %p156 = por %p154, %p155
      %p158 = scmp.ne.s32.totalorder %s143, %s157
      %p159 = scmp.eq.s32.totalorder %s42, 0
      %p160 = por %p158, %p159
      %s162 = sadd.s32 %s161, 1
      %p165 = scmp.eq.s32.totalorder %s36, 1
      %p166 = scmp.ne.s32.totalorder %s161, %s163
      %p167 = scmp.eq.s32.totalorder %s36, 0
      %p168 = por %p166, %p167
      %p169 = scmp.ne.s32.totalorder %s161, %s163
      %p170 = scmp.eq.s32.totalorder %s41, 1
      %p171 = por %p169, %p170
      %p172 = scmp.ne.s32.totalorder %s163, %s164
      %p173 = scmp.eq.s32.totalorder %s41, 0
      %p174 = por %p172, %p173
      %p175 = scmp.ne.s32.totalorder %s163, %s164
      %p176 = scmp.eq.s32.totalorder %s42, 1
      %p177 = por %p175, %p176
      %p179 = scmp.ne.s32.totalorder %s164, %s178
      %p180 = scmp.eq.s32.totalorder %s42, 0
      %p181 = por %p179, %p180
      %s183 = sadd.s32 %s182, 1
      %p186 = scmp.eq.s32.totalorder %s36, 1
      %p187 = scmp.ne.s32.totalorder %s182, %s184
      %p188 = scmp.eq.s32.totalorder %s36, 0
      %p189 = por %p187, %p188
      %p190 = scmp.ne.s32.totalorder %s182, %s184
      %p191 = scmp.eq.s32.totalorder %s41, 1
      %p192 = por %p190, %p191
      %p193 = scmp.ne.s32.totalorder %s184, %s185
      %p194 = scmp.eq.s32.totalorder %s41, 0
      %p195 = por %p193, %p194
      %p196 = scmp.ne.s32.totalorder %s184, %s185
      %p197 = scmp.eq.s32.totalorder %s42, 1
      %p198 = por %p196, %p197
      %p200 = scmp.ne.s32.totalorder %s185, %s199
      %p201 = scmp.eq.s32.totalorder %s42, 0
      %p202 = por %p200, %p201
      %s204 = sadd.s32 %s203, 1
      %p207 = scmp.eq.s32.totalorder %s36, 1
      %p208 = scmp.ne.s32.totalorder %s203, %s205
      %p209 = scmp.eq.s32.totalorder %s36, 0
      %p210 = por %p208, %p209
      %p211 = scmp.ne.s32.totalorder %s203, %s205
      %p212 = scmp.eq.s32.totalorder %s41, 1
      %p213 = por %p211, %p212
      %p214 = scmp.ne.s32.totalorder %s205, %s206
      %p215 = scmp.eq.s32.totalorder %s41, 0
      %p216 = por %p214, %p215
      %p217 = scmp.ne.s32.totalorder %s205, %s206
      %p218 = scmp.eq.s32.totalorder %s42, 1
      %p219 = por %p217, %p218
      %p221 = scmp.ne.s32.totalorder %s206, %s220
      %p222 = scmp.eq.s32.totalorder %s42, 0
      %p223 = por %p221, %p222
      %s225 = sadd.s32 %s224, 1
      %p228 = scmp.eq.s32.totalorder %s36, 1
      %p229 = scmp.ne.s32.totalorder %s224, %s226
      %p230 = scmp.eq.s32.totalorder %s36, 0
      %p231 = por %p229, %p230
      %p232 = scmp.ne.s32.totalorder %s224, %s226
      %p233 = scmp.eq.s32.totalorder %s41, 1
      %p234 = por %p232, %p233
      %p235 = scmp.ne.s32.totalorder %s226, %s227
      %p236 = scmp.eq.s32.totalorder %s41, 0
      %p237 = por %p235, %p236
      %p238 = scmp.ne.s32.totalorder %s226, %s227
      %p239 = scmp.eq.s32.totalorder %s42, 1
      %p240 = por %p238, %p239
      %p242 = scmp.ne.s32.totalorder %s227, %s241
      %p243 = scmp.eq.s32.totalorder %s42, 0
      %p244 = por %p242, %p243
      %s246 = sadd.s32 %s245, 1
      %p249 = scmp.eq.s32.totalorder %s36, 1
      %p250 = scmp.ne.s32.totalorder %s245, %s247
      %p251 = scmp.eq.s32.totalorder %s36, 0
      %p252 = por %p250, %p251
      %p253 = scmp.ne.s32.totalorder %s245, %s247
      %p254 = scmp.eq.s32.totalorder %s41, 1
      %p255 = por %p253, %p254
      %p256 = scmp.ne.s32.totalorder %s247, %s248
      %p257 = scmp.eq.s32.totalorder %s41, 0
      %p258 = por %p256, %p257
      %p259 = scmp.ne.s32.totalorder %s247, %s248
      %p260 = scmp.eq.s32.totalorder %s42, 1
      %p261 = por %p259, %p260
      %p263 = scmp.ne.s32.totalorder %s248, %s262
      %p264 = scmp.eq.s32.totalorder %s42, 0
      %p265 = por %p263, %p264
      %s267 = sadd.s32 %s266, 1
      %p270 = scmp.eq.s32.totalorder %s36, 1
      %p271 = scmp.ne.s32.totalorder %s266, %s268
      %p272 = scmp.eq.s32.totalorder %s36, 0
      %p273 = por %p271, %p272
      %p274 = scmp.ne.s32.totalorder %s266, %s268
      %p275 = scmp.eq.s32.totalorder %s41, 1
      %p276 = por %p274, %p275
      %p277 = scmp.ne.s32.totalorder %s268, %s269
      %p278 = scmp.eq.s32.totalorder %s41, 0
      %p279 = por %p277, %p278
      %p280 = scmp.ne.s32.totalorder %s268, %s269
      %p281 = scmp.eq.s32.totalorder %s42, 1
      %p282 = por %p280, %p281
      %p284 = scmp.ne.s32.totalorder %s269, %s283
      %p285 = scmp.eq.s32.totalorder %s42, 0
      %p286 = por %p284, %p285
      %s288 = sadd.s32 %s287, 1
      %p291 = scmp.eq.s32.totalorder %s36, 1
      %p292 = scmp.ne.s32.totalorder %s287, %s289
      %p293 = scmp.eq.s32.totalorder %s36, 0
      %p294 = por %p292, %p293
      %p295 = scmp.ne.s32.totalorder %s287, %s289
      %p296 = scmp.eq.s32.totalorder %s41, 1
      %p297 = por %p295, %p296
      %p298 = scmp.ne.s32.totalorder %s289, %s290
      %p299 = scmp.eq.s32.totalorder %s41, 0
      %p300 = por %p298, %p299
      %p301 = scmp.ne.s32.totalorder %s289, %s290
      %p302 = scmp.eq.s32.totalorder %s42, 1
      %p303 = por %p301, %p302
      %p305 = scmp.ne.s32.totalorder %s290, %s304
      %p306 = scmp.eq.s32.totalorder %s42, 0
      %p307 = por %p305, %p306
      %s309 = sadd.s32 %s308, 1
      %p312 = scmp.eq.s32.totalorder %s36, 1
      %p313 = scmp.ne.s32.totalorder %s308, %s310
      %p314 = scmp.eq.s32.totalorder %s36, 0
      %p315 = por %p313, %p314
      %p316 = scmp.ne.s32.totalorder %s308, %s310
      %p317 = scmp.eq.s32.totalorder %s41, 1
      %p318 = por %p316, %p317
      %p319 = scmp.ne.s32.totalorder %s310, %s311
      %p320 = scmp.eq.s32.totalorder %s41, 0
      %p321 = por %p319, %p320
      %p322 = scmp.ne.s32.totalorder %s310, %s311
      %p323 = scmp.eq.s32.totalorder %s42, 1
      %p324 = por %p322, %p323
      %p326 = scmp.ne.s32.totalorder %s311, %s325
      %p327 = scmp.eq.s32.totalorder %s42, 0
      %p328 = por %p326, %p327
      %s330 = sadd.s32 %s329, 1
      %p333 = scmp.eq.s32.totalorder %s36, 1
      %p334 = scmp.ne.s32.totalorder %s329, %s331
      %p335 = scmp.eq.s32.totalorder %s36, 0
      %p336 = por %p334, %p335
      %p337 = scmp.ne.s32.totalorder %s329, %s331
      %p338 = scmp.eq.s32.totalorder %s41, 1
      %p339 = por %p337, %p338
      %p340 = scmp.ne.s32.totalorder %s331, %s332
      %p341 = scmp.eq.s32.totalorder %s41, 0
      %p342 = por %p340, %p341
      %p343 = scmp.ne.s32.totalorder %s331, %s332
      %p344 = scmp.eq.s32.totalorder %s42, 1
      %p345 = por %p343, %p344
      %p347 = scmp.ne.s32.totalorder %s332, %s346
      %p348 = scmp.eq.s32.totalorder %s42, 0
      %p349 = por %p347, %p348
      %s351 = sadd.s32 %s350, 1
      %p354 = scmp.eq.s32.totalorder %s36, 1
      %p355 = scmp.ne.s32.totalorder %s350, %s352
      %p356 = scmp.eq.s32.totalorder %s36, 0
      %p357 = por %p355, %p356
      %p358 = scmp.ne.s32.totalorder %s350, %s352
      %p359 = scmp.eq.s32.totalorder %s41, 1
      %p360 = por %p358, %p359
      %p361 = scmp.ne.s32.totalorder %s352, %s353
      %p362 = scmp.eq.s32.totalorder %s41, 0
      %p363 = por %p361, %p362
      %p364 = scmp.ne.s32.totalorder %s352, %s353
      %p365 = scmp.eq.s32.totalorder %s42, 1
      %p366 = por %p364, %p365
      %p368 = scmp.ne.s32.totalorder %s353, %s367
      %p369 = scmp.eq.s32.totalorder %s42, 0
      %p370 = por %p368, %p369
      %s372 = sadd.s32 %s371, 1
      %p375 = scmp.eq.s32.totalorder %s36, 1
      %p376 = scmp.ne.s32.totalorder %s371, %s373
      %p377 = scmp.eq.s32.totalorder %s36, 0
      %p378 = por %p376, %p377
      %p379 = scmp.ne.s32.totalorder %s371, %s373
      %p380 = scmp.eq.s32.totalorder %s41, 1
      %p381 = por %p379, %p380
      %p382 = scmp.ne.s32.totalorder %s373, %s374
      %p383 = scmp.eq.s32.totalorder %s41, 0
      %p384 = por %p382, %p383
      %p385 = scmp.ne.s32.totalorder %s373, %s374
      %p386 = scmp.eq.s32.totalorder %s42, 1
      %p387 = por %p385, %p386
      %p389 = scmp.ne.s32.totalorder %s374, %s388
      %p390 = scmp.eq.s32.totalorder %s42, 0
      %p391 = por %p389, %p390
      %s393 = sadd.s32 %s392, 1
      %p396 = scmp.eq.s32.totalorder %s36, 1
      %p397 = scmp.ne.s32.totalorder %s392, %s394
      %p398 = scmp.eq.s32.totalorder %s36, 0
      %p399 = por %p397, %p398
      %p400 = scmp.ne.s32.totalorder %s392, %s394
      %p401 = scmp.eq.s32.totalorder %s41, 1
      %p402 = por %p400, %p401
      %p403 = scmp.ne.s32.totalorder %s394, %s395
      %p404 = scmp.eq.s32.totalorder %s41, 0
      %p405 = por %p403, %p404
      %p406 = scmp.ne.s32.totalorder %s394, %s395
      %p407 = scmp.eq.s32.totalorder %s42, 1
      %p408 = por %p406, %p407
      %p410 = scmp.ne.s32.totalorder %s395, %s409
      %p411 = scmp.eq.s32.totalorder %s42, 0
      %p412 = por %p410, %p411
      %s414 = sadd.s32 %s413, 1
      %p417 = scmp.eq.s32.totalorder %s36, 1
      %p418 = scmp.ne.s32.totalorder %s413, %s415
      %p419 = scmp.eq.s32.totalorder %s36, 0
      %p420 = por %p418, %p419
      %p421 = scmp.ne.s32.totalorder %s413, %s415
      %p422 = scmp.eq.s32.totalorder %s41, 1
      %p423 = por %p421, %p422
      %p424 = scmp.ne.s32.totalorder %s415, %s416
      %p425 = scmp.eq.s32.totalorder %s41, 0
      %p426 = por %p424, %p425
      %p427 = scmp.ne.s32.totalorder %s415, %s416
      %p428 = scmp.eq.s32.totalorder %s42, 1
      %p429 = por %p427, %p428
      %p431 = scmp.ne.s32.totalorder %s416, %s430
      %p432 = scmp.eq.s32.totalorder %s42, 0
      %p433 = por %p431, %p432
      %s435 = sadd.s32 %s434, 1
      %p438 = scmp.eq.s32.totalorder %s36, 1
      %p439 = scmp.ne.s32.totalorder %s434, %s436
      %p440 = scmp.eq.s32.totalorder %s36, 0
      %p441 = por %p439, %p440
      %p442 = scmp.ne.s32.totalorder %s434, %s436
      %p443 = scmp.eq.s32.totalorder %s41, 1
      %p444 = por %p442, %p443
      %p445 = scmp.ne.s32.totalorder %s436, %s437
      %p446 = scmp.eq.s32.totalorder %s41, 0
      %p447 = por %p445, %p446
      %p448 = scmp.ne.s32.totalorder %s436, %s437
      %p449 = scmp.eq.s32.totalorder %s42, 1
      %p450 = por %p448, %p449
      %p452 = scmp.ne.s32.totalorder %s437, %s451
      %p453 = scmp.eq.s32.totalorder %s42, 0
      %p454 = por %p452, %p453
      %s455 = ssub.s32 %s43, %s62
      %s456 = ssub.s32 %s44, %s58
      %s457 = sor.u32 %s455, %s456
      %p458 = scmp.eq.s32.totalorder %s457, 0
      %s460 = sadd.s32 %s459, 1
      %s461 = scalar_select %p458, %s459, %s460
      %p464 = pneg %p458
      %p465 = scmp.eq.s32.totalorder %s36, 1
      %p466 = por %p464, %p465
      %p467 = scmp.ne.s32.totalorder %s459, %s462
      %p468 = scmp.eq.s32.totalorder %s36, 0
      %p469 = por %p467, %p468
      %p470 = scmp.ne.s32.totalorder %s459, %s462
      %p471 = scmp.eq.s32.totalorder %s41, 1
      %p472 = por %p470, %p471
      %p473 = scmp.ne.s32.totalorder %s462, %s463
      %p474 = scmp.eq.s32.totalorder %s41, 0
      %p475 = por %p473, %p474
      %p476 = scmp.ne.s32.totalorder %s462, %s463
      %p477 = scmp.eq.s32.totalorder %s42, 1
      %p478 = por %p476, %p477
      %p480 = scmp.ne.s32.totalorder %s463, %s479
      %p481 = scmp.eq.s32.totalorder %s42, 0
      %p482 = por %p480, %p481
      %p483 = scmp.le.s32.totalorder 1, %s36
      %p484 = scmp.lt.s32.totalorder %s36, 3
      %p485 = pnand %p483, %p484
      %p486 = pneg %p485
      // Predicated region
      $region9: #{tpu_custom_call.1} parent=5 // pred_check
        _
      $region10: #{tpu_custom_call.1} parent=5 // pred_check_branch
        %488 = sbr.rel (%p485) target = $region12
      $region11: #{tpu_custom_call.1} parent=5 // pred_region
        %s489 = ssub.s32 %s36, 1
        // Predicated region
        $region13: #{tpu_custom_call.1} parent=11 // pred_check
          %p490 = pneg %p132
        $region14: #{tpu_custom_call.1} parent=11 // pred_check_branch
          %492 = sbr.rel (%p490) target = $region16
        $region15: #{tpu_custom_call.1} parent=11 // pred_region
          %s494 = ssub.s32 1024, 1024
          %495 = vsyncadd [#allocation10], %s494
          %s496 = sshll.u32 [#allocation11], 4
          %s497 = int_to_ptr.vmem [resolvable:$true] %s496
          %502 = dma.hbm_to_vmem [thread:$0]  %s2, 1024, %s497, [#allocation10], 64, 64, 4
        $region16: #{tpu_custom_call.1} parent=11 // pred_fallthru
          _
        // Predicated region
        $region17: #{tpu_custom_call.1} parent=11 // pred_check
          %p503 = pneg %p153
        $region18: #{tpu_custom_call.1} parent=11 // pred_check_branch
          %505 = sbr.rel (%p503) target = $region20
        $region19: #{tpu_custom_call.1} parent=11 // pred_region
          _
        $region20: #{tpu_custom_call.1} parent=11 // pred_fallthru
          _
        // Predicated region
        $region21: #{tpu_custom_call.1} parent=11 // pred_check
          %p506 = pneg %p174
        $region22: #{tpu_custom_call.1} parent=11 // pred_check_branch
          %508 = sbr.rel (%p506) target = $region24
        $region23: #{tpu_custom_call.1} parent=11 // pred_region
          %s510 = ssub.s32 1024, 1024
          %511 = vsyncadd [#allocation13], %s510
          %s512 = sshll.u32 [#allocation12], 4
          %s513 = int_to_ptr.vmem [resolvable:$true] %s512
          %518 = dma.hbm_to_vmem [thread:$0]  %s4, 1024, %s513, [#allocation13], 64, 64, 4
        $region24: #{tpu_custom_call.1} parent=11 // pred_fallthru
          _
        // Predicated region
        $region25: #{tpu_custom_call.1} parent=11 // pred_check
          %p519 = pneg %p195
        $region26: #{tpu_custom_call.1} parent=11 // pred_check_branch
          %521 = sbr.rel (%p519) target = $region28
        $region27: #{tpu_custom_call.1} parent=11 // pred_region
          _
        $region28: #{tpu_custom_call.1} parent=11 // pred_fallthru
          _
        // Predicated region
        $region29: #{tpu_custom_call.1} parent=11 // pred_check
          %p522 = pneg %p216
        $region30: #{tpu_custom_call.1} parent=11 // pred_check_branch
          %524 = sbr.rel (%p522) target = $region32
        $region31: #{tpu_custom_call.1} parent=11 // pred_region
          %s526 = ssub.s32 1024, 1024
          %527 = vsyncadd [#allocation13], %s526
          %s528 = sshll.u32 [#allocation14], 4
          %s529 = int_to_ptr.vmem [resolvable:$true] %s528
          %534 = dma.hbm_to_vmem [thread:$0]  %s6, 1024, %s529, [#allocation13], 64, 64, 4
        $region32: #{tpu_custom_call.1} parent=11 // pred_fallthru
          _
        // Predicated region
        $region33: #{tpu_custom_call.1} parent=11 // pred_check
          %p535 = pneg %p237
        $region34: #{tpu_custom_call.1} parent=11 // pred_check_branch
          %537 = sbr.rel (%p535) target = $region36
        $region35: #{tpu_custom_call.1} parent=11 // pred_region
          _
        $region36: #{tpu_custom_call.1} parent=11 // pred_fallthru
          _
        // Predicated region
        $region37: #{tpu_custom_call.1} parent=11 // pred_check
          %p538 = pneg %p258
        $region38: #{tpu_custom_call.1} parent=11 // pred_check_branch
          %540 = sbr.rel (%p538) target = $region40
        $region39: #{tpu_custom_call.1} parent=11 // pred_region
          %s542 = ssub.s32 1024, 1024
          %543 = vsyncadd [#allocation16], %s542
          %s544 = sshll.u32 [#allocation15], 4
          %s545 = int_to_ptr.vmem [resolvable:$true] %s544
          %550 = dma.hbm_to_vmem [thread:$0]  %s8, 1024, %s545, [#allocation16], 64, 64, 4
        $region40: #{tpu_custom_call.1} parent=11 // pred_fallthru
          _
        // Predicated region
        $region41: #{tpu_custom_call.1} parent=11 // pred_check
          %p551 = pneg %p279
        $region42: #{tpu_custom_call.1} parent=11 // pred_check_branch
          %553 = sbr.rel (%p551) target = $region44
        $region43: #{tpu_custom_call.1} parent=11 // pred_region
          _
        $region44: #{tpu_custom_call.1} parent=11 // pred_fallthru
          _
        // Predicated region
        $region45: #{tpu_custom_call.1} parent=11 // pred_check
          %p554 = pneg %p300
        $region46: #{tpu_custom_call.1} parent=11 // pred_check_branch
          %556 = sbr.rel (%p554) target = $region48
        $region47: #{tpu_custom_call.1} parent=11 // pred_region
          _
        $region48: #{tpu_custom_call.1} parent=11 // pred_fallthru
          _
        // Predicated region
        $region49: #{tpu_custom_call.1} parent=11 // pred_check
          %p557 = pneg %p321
        $region50: #{tpu_custom_call.1} parent=11 // pred_check_branch
          %559 = sbr.rel (%p557) target = $region52
        $region51: #{tpu_custom_call.1} parent=11 // pred_region
          _
        $region52: #{tpu_custom_call.1} parent=11 // pred_fallthru
          _
        // Predicated region
        $region53: #{tpu_custom_call.1} parent=11 // pred_check
          %p560 = pneg %p342
        $region54: #{tpu_custom_call.1} parent=11 // pred_check_branch
          %562 = sbr.rel (%p560) target = $region56
        $region55: #{tpu_custom_call.1} parent=11 // pred_region
          %s564 = ssub.s32 1024, 1024
          %565 = vsyncadd [#allocation16], %s564
          %s566 = sshll.u32 [#allocation17], 4
          %s567 = int_to_ptr.vmem [resolvable:$true] %s566
          %572 = dma.hbm_to_vmem [thread:$0]  %s12, 1024, %s567, [#allocation16], 64, 64, 4
        $region56: #{tpu_custom_call.1} parent=11 // pred_fallthru
          _
        // Predicated region
        $region57: #{tpu_custom_call.1} parent=11 // pred_check
          %p573 = pneg %p363
        $region58: #{tpu_custom_call.1} parent=11 // pred_check_branch
          %575 = sbr.rel (%p573) target = $region60
        $region59: #{tpu_custom_call.1} parent=11 // pred_region
          _
        $region60: #{tpu_custom_call.1} parent=11 // pred_fallthru
          _
        // Predicated region
        $region61: #{tpu_custom_call.1} parent=11 // pred_check
          %p576 = pneg %p384
        $region62: #{tpu_custom_call.1} parent=11 // pred_check_branch
          %578 = sbr.rel (%p576) target = $region64
        $region63: #{tpu_custom_call.1} parent=11 // pred_region
          %s580 = ssub.s32 1024, 1024
          %581 = vsyncadd [#allocation19], %s580
          %s582 = sshll.u32 [#allocation18], 4
          %s583 = int_to_ptr.vmem [resolvable:$true] %s582
          %588 = dma.hbm_to_vmem [thread:$0]  %s14, 1024, %s583, [#allocation19], 64, 64, 4
        $region64: #{tpu_custom_call.1} parent=11 // pred_fallthru
          _
        // Predicated region
        $region65: #{tpu_custom_call.1} parent=11 // pred_check
          %p589 = pneg %p405
        $region66: #{tpu_custom_call.1} parent=11 // pred_check_branch
          %591 = sbr.rel (%p589) target = $region68
        $region67: #{tpu_custom_call.1} parent=11 // pred_region
          _
        $region68: #{tpu_custom_call.1} parent=11 // pred_fallthru
          _
        // Predicated region
        $region69: #{tpu_custom_call.1} parent=11 // pred_check
          %p592 = pneg %p426
        $region70: #{tpu_custom_call.1} parent=11 // pred_check_branch
          %594 = sbr.rel (%p592) target = $region72
        $region71: #{tpu_custom_call.1} parent=11 // pred_region
          _
        $region72: #{tpu_custom_call.1} parent=11 // pred_fallthru
          _
        // Predicated region
        $region73: #{tpu_custom_call.1} parent=11 // pred_check
          %p595 = pneg %p447
        $region74: #{tpu_custom_call.1} parent=11 // pred_check_branch
          %597 = sbr.rel (%p595) target = $region76
        $region75: #{tpu_custom_call.1} parent=11 // pred_region
          _
        $region76: #{tpu_custom_call.1} parent=11 // pred_fallthru
          _
      $region12: #{tpu_custom_call.1} parent=5 // pred_fallthru
        _
      %p598 = scmp.lt.s32.totalorder %s36, 2
      // Predicated region
      $region77: #{tpu_custom_call.1} parent=5 // pred_check
        %p599 = pneg %p598
      $region78: #{tpu_custom_call.1} parent=5 // pred_check_branch
        %601 = sbr.rel (%p599) target = $region80
      $region79: #{tpu_custom_call.1} parent=5 // pred_region
        // Predicated region
        $region81: #{tpu_custom_call.1} parent=79 // pred_check
          %p602 = pneg %p77
        $region82: #{tpu_custom_call.1} parent=79 // pred_check_branch
          %604 = sbr.rel (%p602) target = $region84
        $region83: #{tpu_custom_call.1} parent=79 // pred_region
          %s605 = sand.u32 %s67, 1
          %s606 = scalar_lea.sflag [#allocation7], %s605
          %s607 = sand.u32 %s67, 1
          %s608 = smul.addr %s607, 8
          %s609 = scalar_lea.vmem [#allocation6], %s608
          %s611 = ssub.s32 128, 128
          %612 = vsyncadd %s606, %s611
          %s613 = sadd.s32 %s44, %s43
          %s614 = smul.addr %s613, 128
          %s615 = scalar_lea.hbm %s0, %s614
          %s617 = sshll.u32 %s609, 4
          %s618 = int_to_ptr.vmem [resolvable:$true] %s617
          %620 = dma.hbm_to_vmem [thread:$0]  %s615, 128, %s618, %s606
        $region84: #{tpu_custom_call.1} parent=79 // pred_fallthru
          _
        // Predicated region
        $region85: #{tpu_custom_call.1} parent=79 // pred_check
          %p621 = pneg %p105
        $region86: #{tpu_custom_call.1} parent=79 // pred_check_branch
          %623 = sbr.rel (%p621) target = $region88
        $region87: #{tpu_custom_call.1} parent=79 // pred_region
          %s624 = sand.u32 %s36, 1
          %s625 = scalar_lea.sflag [#allocation10], %s624
          %s626 = sand.u32 %s95, 1
          %s627 = smul.addr %s626, 8
          %s628 = scalar_lea.vmem [#allocation9], %s627
          %s630 = ssub.s32 128, 128
          %631 = vsyncadd %s625, %s630
          %s632 = sadd.s32 %s45, %s43
          %s633 = smul.addr %s632, 128
          %s634 = scalar_lea.hbm %s1, %s633
          %s636 = sshll.u32 %s628, 4
          %s637 = int_to_ptr.vmem [resolvable:$true] %s636
          %639 = dma.hbm_to_vmem [thread:$0]  %s634, 128, %s637, %s625
        $region88: #{tpu_custom_call.1} parent=79 // pred_fallthru
          _
      $region80: #{tpu_custom_call.1} parent=5 // pred_fallthru
        _
      %p640 = scmp.le.s32.totalorder 1, %s36
      %p641 = scmp.lt.s32.totalorder %s36, 3
      %p642 = pnand %p640, %p641
      %p643 = pneg %p642
      // Predicated region
      $region89: #{tpu_custom_call.1} parent=5 // pred_check
        _
      $region90: #{tpu_custom_call.1} parent=5 // pred_check_branch
        %645 = sbr.rel (%p642) target = $region92
      $region91: #{tpu_custom_call.1} parent=5 // pred_region
        %s646 = ssub.s32 %s36, 1
        %s647 = sand.u32 %s70, 1
        %s648 = scalar_lea.sflag [#allocation7], %s647
        %s649 = sand.u32 %s70, 1
        %s650 = smul.addr %s649, 8
        %s651 = scalar_lea.vmem [#allocation6], %s650
        // Predicated region
        $region93: #{tpu_custom_call.1} parent=91 // pred_check
          %p652 = pneg %p83
        $region94: #{tpu_custom_call.1} parent=91 // pred_check_branch
          %654 = sbr.rel (%p652) target = $region96
        $region95: #{tpu_custom_call.1} parent=91 // pred_region
          %655 = dma.done %s648, 128
        $region96: #{tpu_custom_call.1} parent=91 // pred_fallthru
          _
        %s656 = sand.u32 %s41, 1
        %s657 = scalar_lea.sflag [#allocation10], %s656
        %s658 = sand.u32 %s98, 1
        %s659 = smul.addr %s658, 8
        %s660 = scalar_lea.vmem [#allocation9], %s659
        // Predicated region
        $region97: #{tpu_custom_call.1} parent=91 // pred_check
          %p661 = pneg %p111
        $region98: #{tpu_custom_call.1} parent=91 // pred_check_branch
          %663 = sbr.rel (%p661) target = $region100
        $region99: #{tpu_custom_call.1} parent=91 // pred_region
          %664 = dma.done %s657, 128
        $region100: #{tpu_custom_call.1} parent=91 // pred_fallthru
          _
        // Predicated region
        $region101: #{tpu_custom_call.1} parent=91 // pred_check
          %p665 = pneg %p132
        $region102: #{tpu_custom_call.1} parent=91 // pred_check_branch
          %667 = sbr.rel (%p665) target = $region104
        $region103: #{tpu_custom_call.1} parent=91 // pred_region
          %668 = dma.done [#allocation10], 1024
        $region104: #{tpu_custom_call.1} parent=91 // pred_fallthru
          _
        // Predicated region
        $region105: #{tpu_custom_call.1} parent=91 // pred_check
          %p669 = pneg %p174
        $region106: #{tpu_custom_call.1} parent=91 // pred_check_branch
          %671 = sbr.rel (%p669) target = $region108
        $region107: #{tpu_custom_call.1} parent=91 // pred_region
          %672 = dma.done [#allocation13], 1024
        $region108: #{tpu_custom_call.1} parent=91 // pred_fallthru
          _
        // Predicated region
        $region109: #{tpu_custom_call.1} parent=91 // pred_check
          %p673 = pneg %p216
        $region110: #{tpu_custom_call.1} parent=91 // pred_check_branch
          %675 = sbr.rel (%p673) target = $region112
        $region111: #{tpu_custom_call.1} parent=91 // pred_region
          %676 = dma.done [#allocation13], 1024
        $region112: #{tpu_custom_call.1} parent=91 // pred_fallthru
          _
        // Predicated region
        $region113: #{tpu_custom_call.1} parent=91 // pred_check
          %p677 = pneg %p258
        $region114: #{tpu_custom_call.1} parent=91 // pred_check_branch
          %679 = sbr.rel (%p677) target = $region116
        $region115: #{tpu_custom_call.1} parent=91 // pred_region
          %680 = dma.done [#allocation16], 1024
        $region116: #{tpu_custom_call.1} parent=91 // pred_fallthru
          _
        // Predicated region
        $region117: #{tpu_custom_call.1} parent=91 // pred_check
          %p681 = pneg %p342
        $region118: #{tpu_custom_call.1} parent=91 // pred_check_branch
          %683 = sbr.rel (%p681) target = $region120
        $region119: #{tpu_custom_call.1} parent=91 // pred_region
          %684 = dma.done [#allocation16], 1024
        $region120: #{tpu_custom_call.1} parent=91 // pred_fallthru
          _
        // Predicated region
        $region121: #{tpu_custom_call.1} parent=91 // pred_check
          %p685 = pneg %p384
        $region122: #{tpu_custom_call.1} parent=91 // pred_check_branch
          %687 = sbr.rel (%p685) target = $region124
        $region123: #{tpu_custom_call.1} parent=91 // pred_region
          %688 = dma.done [#allocation19], 1024
        $region124: #{tpu_custom_call.1} parent=91 // pred_fallthru
          _
        %s689 = sand.u32 %s70, 1
        %s690 = scalar_lea.sflag [#allocation7], %s689
        %s691 = sand.u32 %s70, 1
        %s692 = smul.addr %s691, 8
        %s693 = scalar_lea.vmem [#allocation6], %s692
        %p694 = pneg %p83
        %p695 = pneg %p80
        %s696 = sand.u32 %s41, 1
        %s697 = scalar_lea.sflag [#allocation10], %s696
        %s698 = sand.u32 %s98, 1
        %s699 = smul.addr %s698, 8
        %s700 = scalar_lea.vmem [#allocation9], %s699
        %p701 = pneg %p111
        %p702 = pneg %p108
        %p703 = pneg %p132
        %p704 = pneg %p129
        %p705 = pneg %p153
        %p706 = pneg %p150
        %p707 = pneg %p174
        %p708 = pneg %p171
        %p709 = pneg %p195
        %p710 = pneg %p192
        %p711 = pneg %p216
        %p712 = pneg %p213
        %p713 = pneg %p237
        %p714 = pneg %p234
        %p715 = pneg %p258
        %p716 = pneg %p255
        %p717 = pneg %p279
        %p718 = pneg %p276
        %p719 = pneg %p300
        %p720 = pneg %p297
        %p721 = pneg %p321
        %p722 = pneg %p318
        %p723 = pneg %p342
        %p724 = pneg %p339
        %p725 = pneg %p363
        %p726 = pneg %p360
        %p727 = pneg %p384
        %p728 = pneg %p381
        %p729 = pneg %p405
        %p730 = pneg %p402
        %p731 = pneg %p426
        %p732 = pneg %p423
        %p733 = pneg %p447
        %p734 = pneg %p444
        %p735 = pneg %p475
        %p736 = pneg %p472
        %s737 = sand.u32 %s462, 1
        %s738 = scalar_lea.sflag [#allocation8], %s737
        %s739 = sand.u32 %s462, 1
        %s740 = smul.addr %s739, 8
        %s741 = scalar_lea.vmem [#allocation20], %s740
        %p743 = scmp.eq.s32.totalorder %s48, 0
        // Predicated region
        $region125: #{tpu_custom_call.1} parent=91 // pred_check
          %p744 = pneg %p743
        $region126: #{tpu_custom_call.1} parent=91 // pred_check_branch
          %746 = sbr.rel (%p744) target = $region128
        $region127: #{tpu_custom_call.1} parent=91 // pred_region
          %v747 = vld [vmem:[%s651] sm:$0xff]
          %v748 = vpack.c.bf16 %v747, %v747
          %v749 = vld [vmem:[#allocation11] sm:$0xf]
          %v750 = vld [vmem:[#allocation11 + $0x4] sm:$0xf]
          %v751 = vld [vmem:[#allocation11 + $0x8] sm:$0xf]
          %v752 = vld [vmem:[#allocation11 + $0xc] sm:$0xf]
          %v753 = vld [vmem:[#allocation11 + $0x10] sm:$0xf]
          %v754 = vld [vmem:[#allocation11 + $0x14] sm:$0xf]
          %v755 = vld [vmem:[#allocation11 + $0x18] sm:$0xf]
          %v756 = vld [vmem:[#allocation11 + $0x1c] sm:$0xf]
          %v757 = vld [vmem:[#allocation11 + $0x20] sm:$0xf]
          %v758 = vld [vmem:[#allocation11 + $0x24] sm:$0xf]
          %v759 = vld [vmem:[#allocation11 + $0x28] sm:$0xf]
          %v760 = vld [vmem:[#allocation11 + $0x2c] sm:$0xf]
          %v761 = vld [vmem:[#allocation11 + $0x30] sm:$0xf]
          %v762 = vld [vmem:[#allocation11 + $0x34] sm:$0xf]
          %v763 = vld [vmem:[#allocation11 + $0x38] sm:$0xf]
          %v764 = vld [vmem:[#allocation11 + $0x3c] sm:$0xf]
          %v765 = vld [vmem:[%s3] sm:$0x1]
          %v767 = vlaneseq
          %v768 = vshrl.u32 %v767, 7
          %v769 = vsub.s32 0, %v768
          %v770 = vrot.slane %v765, %v769
          %v788 = vunpack.c.l.b16 %v749
          %v789 = vunpack.c.l.b16 %v750
          %v790 = vunpack.c.l.b16 %v751
          %v791 = vunpack.c.l.b16 %v752
          %v792 = vunpack.c.l.b16 %v753
          %v793 = vunpack.c.l.b16 %v754
          %v794 = vunpack.c.l.b16 %v755
          %v795 = vunpack.c.l.b16 %v756
          %v796 = vunpack.c.l.b16 %v757
          %v797 = vunpack.c.l.b16 %v758
          %v798 = vunpack.c.l.b16 %v759
          %v799 = vunpack.c.l.b16 %v760
          %v800 = vunpack.c.l.b16 %v761
          %v801 = vunpack.c.l.b16 %v762
          %v802 = vunpack.c.l.b16 %v763
          %v803 = vunpack.c.l.b16 %v764
          %v804 = vpack.c.b16 %v789, %v788
          %v805 = vpack.c.b16 %v791, %v790
          %v806 = vpack.c.b16 %v793, %v792
          %v807 = vpack.c.b16 %v795, %v794
          %v808 = vpack.c.b16 %v797, %v796
          %v809 = vpack.c.b16 %v799, %v798
          %v810 = vpack.c.b16 %v801, %v800
          %v811 = vpack.c.b16 %v803, %v802
          %820 = vmatprep.subr.bf16.mxu0 0
          %821 = vmatpush1.bf16.msra.mxu0 %v804
          %822 = vmatprep.subr.bf16.mxu0 0
          %823 = vmatpush1.bf16.msra.mxu0 %v805
          %824 = vmatprep.subr.bf16.mxu0 0
          %825 = vmatpush1.bf16.msra.mxu0 %v806
          %826 = vmatprep.subr.bf16.mxu0 0
          %827 = vmatpush1.bf16.msra.mxu0 %v807
          %828 = vmatprep.subr.bf16.mxu0 0
          %829 = vmatpush1.bf16.msra.mxu0 %v808
          %830 = vmatprep.subr.bf16.mxu0 0
          %831 = vmatpush1.bf16.msra.mxu0 %v809
          %832 = vmatprep.subr.bf16.mxu0 0
          %833 = vmatpush1.bf16.msra.mxu0 %v810
          %834 = vmatprep.subr.bf16.mxu0 0
          %835 = vmatpush1.bf16.msra.mxu0 %v811
          %836 = vmatprep.subr.bf16.mxu0 0
          %837 = vmatpush1.bf16.msra.mxu0 0
          %838 = vmatprep.subr.bf16.mxu0 0
          %839 = vmatpush1.bf16.msra.mxu0 0
          %840 = vmatprep.subr.bf16.mxu0 0
          %841 = vmatpush1.bf16.msra.mxu0 0
          %842 = vmatprep.subr.bf16.mxu0 0
          %843 = vmatpush1.bf16.msra.mxu0 0
          %844 = vmatprep.subr.bf16.mxu0 0
          %845 = vmatpush1.bf16.msra.mxu0 0
          %846 = vmatprep.subr.bf16.mxu0 0
          %847 = vmatpush1.bf16.msra.mxu0 0
          %848 = vmatprep.subr.bf16.mxu0 0
          %849 = vmatpush1.bf16.msra.mxu0 0
          %850 = vmatprep.subr.bf16.mxu0 0
          %851 = vmatpush1.bf16.msra.mxu0 0
          %852 = vmatprep.mubr.bf16.mxu0 0
          %853 = vmatmul.mubr.bf16.gmra.mrb[0].mxu0 %v748
          %v854 = vpop.f32.mrb[0].mxu0
          %v855 = vadd.f32 %v770, %v854
          %v856 = vpop.f32.mrb[0].mxu0
          %v857 = vpop.f32.mrb[0].mxu0
          %v858 = vpop.f32.mrb[0].mxu0
          %859 = vdwg.mxu0
          %v860 = vmul.f32 %v855, 0.088388346
          %v861 = vpack.c.bf16 %v860, %v860
          %862 = vst [vmem:[#allocation2] sm:$0xf] %v861
          %vm863 = vcmask 7168
          %864 = vst.msk [vmem:[#allocation3] sm:$0xff] %vm863, -inf
          %865 = vst.msk [vmem:[#allocation4] sm:$0xff] %vm863, 0.0
          %866 = vst [vmem:[#allocation5] sm:$0xff] 0.0
        $region128: #{tpu_custom_call.1} parent=91 // pred_fallthru
          _
        %v867 = vld [vmem:[%s660] sm:$0xff]
        %v868 = vpack.c.bf16 %v867, %v867
        %v869 = vld [vmem:[#allocation12] sm:$0xf]
        %v870 = vld [vmem:[#allocation12 + $0x4] sm:$0xf]
        %v871 = vld [vmem:[#allocation12 + $0x8] sm:$0xf]
        %v872 = vld [vmem:[#allocation12 + $0xc] sm:$0xf]
        %v873 = vld [vmem:[#allocation12 + $0x10] sm:$0xf]
        %v874 = vld [vmem:[#allocation12 + $0x14] sm:$0xf]
        %v875 = vld [vmem:[#allocation12 + $0x18] sm:$0xf]
        %v876 = vld [vmem:[#allocation12 + $0x1c] sm:$0xf]
        %v877 = vld [vmem:[#allocation12 + $0x20] sm:$0xf]
        %v878 = vld [vmem:[#allocation12 + $0x24] sm:$0xf]
        %v879 = vld [vmem:[#allocation12 + $0x28] sm:$0xf]
        %v880 = vld [vmem:[#allocation12 + $0x2c] sm:$0xf]
        %v881 = vld [vmem:[#allocation12 + $0x30] sm:$0xf]
        %v882 = vld [vmem:[#allocation12 + $0x34] sm:$0xf]
        %v883 = vld [vmem:[#allocation12 + $0x38] sm:$0xf]
        %v884 = vld [vmem:[#allocation12 + $0x3c] sm:$0xf]
        %v885 = vld [vmem:[%s5] sm:$0x1]
        %v887 = vlaneseq
        %v888 = vshrl.u32 %v887, 7
        %v889 = vsub.s32 0, %v888
        %v890 = vrot.slane %v885, %v889
        %v908 = vunpack.c.l.b16 %v869
        %v909 = vunpack.c.l.b16 %v870
        %v910 = vunpack.c.l.b16 %v871
        %v911 = vunpack.c.l.b16 %v872
        %v912 = vunpack.c.l.b16 %v873
        %v913 = vunpack.c.l.b16 %v874
        %v914 = vunpack.c.l.b16 %v875
        %v915 = vunpack.c.l.b16 %v876
        %v916 = vunpack.c.l.b16 %v877
        %v917 = vunpack.c.l.b16 %v878
        %v918 = vunpack.c.l.b16 %v879
        %v919 = vunpack.c.l.b16 %v880
        %v920 = vunpack.c.l.b16 %v881
        %v921 = vunpack.c.l.b16 %v882
        %v922 = vunpack.c.l.b16 %v883
        %v923 = vunpack.c.l.b16 %v884
        %v924 = vpack.c.b16 %v909, %v908
        %v925 = vpack.c.b16 %v911, %v910
        %v926 = vpack.c.b16 %v913, %v912
        %v927 = vpack.c.b16 %v915, %v914
        %v928 = vpack.c.b16 %v917, %v916
        %v929 = vpack.c.b16 %v919, %v918
        %v930 = vpack.c.b16 %v921, %v920
        %v931 = vpack.c.b16 %v923, %v922
        %940 = vmatprep.subr.bf16.mxu0 0
        %941 = vmatpush1.bf16.msra.mxu0 %v924
        %942 = vmatprep.subr.bf16.mxu0 0
        %943 = vmatpush1.bf16.msra.mxu0 %v925
        %944 = vmatprep.subr.bf16.mxu0 0
        %945 = vmatpush1.bf16.msra.mxu0 %v926
        %946 = vmatprep.subr.bf16.mxu0 0
        %947 = vmatpush1.bf16.msra.mxu0 %v927
        %948 = vmatprep.subr.bf16.mxu0 0
        %949 = vmatpush1.bf16.msra.mxu0 %v928
        %950 = vmatprep.subr.bf16.mxu0 0
        %951 = vmatpush1.bf16.msra.mxu0 %v929
        %952 = vmatprep.subr.bf16.mxu0 0
        %953 = vmatpush1.bf16.msra.mxu0 %v930
        %954 = vmatprep.subr.bf16.mxu0 0
        %955 = vmatpush1.bf16.msra.mxu0 %v931
        %956 = vmatprep.subr.bf16.mxu0 0
        %957 = vmatpush1.bf16.msra.mxu0 0
        %958 = vmatprep.subr.bf16.mxu0 0
        %959 = vmatpush1.bf16.msra.mxu0 0
        %960 = vmatprep.subr.bf16.mxu0 0
        %961 = vmatpush1.bf16.msra.mxu0 0
        %962 = vmatprep.subr.bf16.mxu0 0
        %963 = vmatpush1.bf16.msra.mxu0 0
        %964 = vmatprep.subr.bf16.mxu0 0
        %965 = vmatpush1.bf16.msra.mxu0 0
        %966 = vmatprep.subr.bf16.mxu0 0
        %967 = vmatpush1.bf16.msra.mxu0 0
        %968 = vmatprep.subr.bf16.mxu0 0
        %969 = vmatpush1.bf16.msra.mxu0 0
        %970 = vmatprep.subr.bf16.mxu0 0
        %971 = vmatpush1.bf16.msra.mxu0 0
        %972 = vmatprep.mubr.bf16.mxu0 0
        %973 = vmatmul.mubr.bf16.gmra.mrb[0].mxu0 %v868
        %v974 = vpop.f32.mrb[0].mxu0
        %v975 = vadd.f32 %v890, %v974
        %v976 = vpop.f32.mrb[0].mxu0
        %v977 = vpop.f32.mrb[0].mxu0
        %v978 = vpop.f32.mrb[0].mxu0
        %979 = vdwg.mxu0
        %v980 = vpack.c.bf16 %v975, %v975
        %v981 = vld [vmem:[#allocation14] sm:$0xf]
        %v982 = vld [vmem:[#allocation14 + $0x4] sm:$0xf]
        %v983 = vld [vmem:[#allocation14 + $0x8] sm:$0xf]
        %v984 = vld [vmem:[#allocation14 + $0xc] sm:$0xf]
        %v985 = vld [vmem:[#allocation14 + $0x10] sm:$0xf]
        %v986 = vld [vmem:[#allocation14 + $0x14] sm:$0xf]
        %v987 = vld [vmem:[#allocation14 + $0x18] sm:$0xf]
        %v988 = vld [vmem:[#allocation14 + $0x1c] sm:$0xf]
        %v989 = vld [vmem:[#allocation14 + $0x20] sm:$0xf]
        %v990 = vld [vmem:[#allocation14 + $0x24] sm:$0xf]
        %v991 = vld [vmem:[#allocation14 + $0x28] sm:$0xf]
        %v992 = vld [vmem:[#allocation14 + $0x2c] sm:$0xf]
        %v993 = vld [vmem:[#allocation14 + $0x30] sm:$0xf]
        %v994 = vld [vmem:[#allocation14 + $0x34] sm:$0xf]
        %v995 = vld [vmem:[#allocation14 + $0x38] sm:$0xf]
        %v996 = vld [vmem:[#allocation14 + $0x3c] sm:$0xf]
        %v997 = vld [vmem:[%s7] sm:$0x1]
        %v999 = vlaneseq
        %v1000 = vshrl.u32 %v999, 7
        %v1001 = vsub.s32 0, %v1000
        %v1002 = vrot.slane %v997, %v1001
        %v1020 = vunpack.c.l.b16 %v981
        %v1021 = vunpack.c.l.b16 %v982
        %v1022 = vunpack.c.l.b16 %v983
        %v1023 = vunpack.c.l.b16 %v984
        %v1024 = vunpack.c.l.b16 %v985
        %v1025 = vunpack.c.l.b16 %v986
        %v1026 = vunpack.c.l.b16 %v987
        %v1027 = vunpack.c.l.b16 %v988
        %v1028 = vunpack.c.l.b16 %v989
        %v1029 = vunpack.c.l.b16 %v990
        %v1030 = vunpack.c.l.b16 %v991
        %v1031 = vunpack.c.l.b16 %v992
        %v1032 = vunpack.c.l.b16 %v993
        %v1033 = vunpack.c.l.b16 %v994
        %v1034 = vunpack.c.l.b16 %v995
        %v1035 = vunpack.c.l.b16 %v996
        %v1036 = vpack.c.b16 %v1021, %v1020
        %v1037 = vpack.c.b16 %v1023, %v1022
        %v1038 = vpack.c.b16 %v1025, %v1024
        %v1039 = vpack.c.b16 %v1027, %v1026
        %v1040 = vpack.c.b16 %v1029, %v1028
        %v1041 = vpack.c.b16 %v1031, %v1030
        %v1042 = vpack.c.b16 %v1033, %v1032
        %v1043 = vpack.c.b16 %v1035, %v1034
        %1052 = vmatprep.subr.bf16.mxu0 0
        %1053 = vmatpush1.bf16.msra.mxu0 %v1036
        %1054 = vmatprep.subr.bf16.mxu0 0
        %1055 = vmatpush1.bf16.msra.mxu0 %v1037
        %1056 = vmatprep.subr.bf16.mxu0 0
        %1057 = vmatpush1.bf16.msra.mxu0 %v1038
        %1058 = vmatprep.subr.bf16.mxu0 0
        %1059 = vmatpush1.bf16.msra.mxu0 %v1039
        %1060 = vmatprep.subr.bf16.mxu0 0
        %1061 = vmatpush1.bf16.msra.mxu0 %v1040
        %1062 = vmatprep.subr.bf16.mxu0 0
        %1063 = vmatpush1.bf16.msra.mxu0 %v1041
        %1064 = vmatprep.subr.bf16.mxu0 0
        %1065 = vmatpush1.bf16.msra.mxu0 %v1042
        %1066 = vmatprep.subr.bf16.mxu0 0
        %1067 = vmatpush1.bf16.msra.mxu0 %v1043
        %1068 = vmatprep.subr.bf16.mxu0 0
        %1069 = vmatpush1.bf16.msra.mxu0 0
        %1070 = vmatprep.subr.bf16.mxu0 0
        %1071 = vmatpush1.bf16.msra.mxu0 0
        %1072 = vmatprep.subr.bf16.mxu0 0
        %1073 = vmatpush1.bf16.msra.mxu0 0
        %1074 = vmatprep.subr.bf16.mxu0 0
        %1075 = vmatpush1.bf16.msra.mxu0 0
        %1076 = vmatprep.subr.bf16.mxu0 0
        %1077 = vmatpush1.bf16.msra.mxu0 0
        %1078 = vmatprep.subr.bf16.mxu0 0
        %1079 = vmatpush1.bf16.msra.mxu0 0
        %1080 = vmatprep.subr.bf16.mxu0 0
        %1081 = vmatpush1.bf16.msra.mxu0 0
        %1082 = vmatprep.subr.bf16.mxu0 0
        %1083 = vmatpush1.bf16.msra.mxu0 0
        %1084 = vmatprep.mubr.bf16.mxu0 0
        %1085 = vmatmul.mubr.bf16.gmra.mrb[0].mxu0 %v868
        %v1086 = vpop.f32.mrb[0].mxu0
        %v1087 = vadd.f32 %v1002, %v1086
        %v1088 = vpop.f32.mrb[0].mxu0
        %v1089 = vpop.f32.mrb[0].mxu0
        %v1090 = vpop.f32.mrb[0].mxu0
        %1091 = vdwg.mxu0
        %v1092 = vpack.c.bf16 %v1087, %v1087
        %v1093 = vld [vmem:[#allocation2] sm:$0xf]
        %1094 = vmatprep.subr.bf16.mxu0 0
        %1095 = vmatpush1.bf16.xpose.msra.mxu0 %v980
        %1096 = vmatprep.subr.bf16.mxu0 0
        %1097 = vmatpush1.bf16.xpose.msra.mxu0 0
        %1098 = vmatprep.subr.bf16.mxu0 0
        %1099 = vmatpush1.bf16.xpose.msra.mxu0 0
        %1100 = vmatprep.subr.bf16.mxu0 0
        %1101 = vmatpush1.bf16.xpose.msra.mxu0 0
        %1102 = vmatprep.subr.bf16.mxu0 0
        %1103 = vmatpush1.bf16.xpose.msra.mxu0 0
        %1104 = vmatprep.subr.bf16.mxu0 0
        %1105 = vmatpush1.bf16.xpose.msra.mxu0 0
        %1106 = vmatprep.subr.bf16.mxu0 0
        %1107 = vmatpush1.bf16.xpose.msra.mxu0 0
        %1108 = vmatprep.subr.bf16.mxu0 0
        %1109 = vmatpush1.bf16.xpose.msra.mxu0 0
        %1110 = vmatprep.subr.bf16.mxu0 0
        %1111 = vmatpush1.bf16.xpose.msra.mxu0 0
        %1112 = vmatprep.subr.bf16.mxu0 0
        %1113 = vmatpush1.bf16.xpose.msra.mxu0 0
        %1114 = vmatprep.subr.bf16.mxu0 0
        %1115 = vmatpush1.bf16.xpose.msra.mxu0 0
        %1116 = vmatprep.subr.bf16.mxu0 0
        %1117 = vmatpush1.bf16.xpose.msra.mxu0 0
        %1118 = vmatprep.subr.bf16.mxu0 0
        %1119 = vmatpush1.bf16.xpose.msra.mxu0 0
        %1120 = vmatprep.subr.bf16.mxu0 0
        %1121 = vmatpush1.bf16.xpose.msra.mxu0 0
        %1122 = vmatprep.subr.bf16.mxu0 0
        %1123 = vmatpush1.bf16.xpose.msra.mxu0 0
        %1124 = vmatprep.subr.bf16.mxu0 0
        %1125 = vmatpush1.bf16.xpose.msra.mxu0 0
        %1126 = vmatprep.mubr.bf16.mxu0 0
        %1127 = vmatmul.mubr.bf16.gmra.mrb[0].mxu0 %v1093
        %v1128 = vpop.f32.mrb[0].mxu0
        %v1129 = vadd.f32 0.0, %v1128
        %v1130 = vpop.f32.mrb[0].mxu0
        %v1131 = vpop.f32.mrb[0].mxu0
        %v1132 = vpop.f32.mrb[0].mxu0
        %1133 = vdwg.mxu0
        %v1134 = vld [vmem:[#allocation3] sm:$0xff]
        %vm1135 = vcmask 64512
        %v1136 = vsel %vm1135, %v1129, -inf
        %1137 = vmax.xlane.f32.xlu0 %v1136
        %v1138 = vpop.xlane.xlu0 %1137
        %v1139 = vmax.f32 %v1134, %v1138
        %v1140 = vsub.f32 %v1134, %v1139
        %v1141 = vmul.f32 %v1140, 1.442695
        %v1142 = vpow.pop %v1141
        %1144 = vset.pattern.permute.xlu0 0
        %1145 = vperm.xlu0 %1144, %v1139
        %v1146 = vpop.permute.xlu0 %1145
        %v1148 = vsub.f32 %v1129, %v1146
        %v1149 = vmul.f32 %v1148, 1.442695
        %v1150 = vpow.pop %v1149
        %v1151 = vld [vmem:[#allocation4] sm:$0xff]
        %v1152 = vmul.f32 %v1142, %v1151
        %v1153 = vsel %vm1135, %v1150, 0.0
        %1154 = vadd.xlane.f32.xlu0 %v1153
        %v1155 = vpop.xlane.xlu0 %1154
        %v1156 = vadd.f32 %v1152, %v1155
        %vm1157 = vcmask 7168
        %1158 = vst.msk [vmem:[#allocation4] sm:$0xff] %vm1157, %v1156
        %v1159 = vld [vmem:[#allocation5] sm:$0xff]
        %1161 = vset.pattern.permute.xlu0 0
        %1162 = vperm.xlu0 %1161, %v1142
        %v1163 = vpop.permute.xlu0 %1162
        %v1165 = vmul.f32 %v1163, %v1159
        %v1166 = vpack.c.bf16 %v1150, %v1150
        %v1168 = vsel %vm1135, %v1166, 0
        %vm1170 = vcmask 1043456
        %v1172 = vsel %vm1170, %v1092, 0
        %1174 = vmatprep.subr.bf16.mxu0 0
        %1175 = vmatpush1.bf16.msra.mxu0 %v1172
        %1176 = vmatprep.subr.bf16.mxu0 0
        %1177 = vmatpush1.bf16.msra.mxu0 0
        %1178 = vmatprep.subr.bf16.mxu0 0
        %1179 = vmatpush1.bf16.msra.mxu0 0
        %1180 = vmatprep.subr.bf16.mxu0 0
        %1181 = vmatpush1.bf16.msra.mxu0 0
        %1182 = vmatprep.subr.bf16.mxu0 0
        %1183 = vmatpush1.bf16.msra.mxu0 0
        %1184 = vmatprep.subr.bf16.mxu0 0
        %1185 = vmatpush1.bf16.msra.mxu0 0
        %1186 = vmatprep.subr.bf16.mxu0 0
        %1187 = vmatpush1.bf16.msra.mxu0 0
        %1188 = vmatprep.subr.bf16.mxu0 0
        %1189 = vmatpush1.bf16.msra.mxu0 0
        %1190 = vmatprep.subr.bf16.mxu0 0
        %1191 = vmatpush1.bf16.msra.mxu0 0
        %1192 = vmatprep.subr.bf16.mxu0 0
        %1193 = vmatpush1.bf16.msra.mxu0 0
        %1194 = vmatprep.subr.bf16.mxu0 0
        %1195 = vmatpush1.bf16.msra.mxu0 0
        %1196 = vmatprep.subr.bf16.mxu0 0
        %1197 = vmatpush1.bf16.msra.mxu0 0
        %1198 = vmatprep.subr.bf16.mxu0 0
        %1199 = vmatpush1.bf16.msra.mxu0 0
        %1200 = vmatprep.subr.bf16.mxu0 0
        %1201 = vmatpush1.bf16.msra.mxu0 0
        %1202 = vmatprep.subr.bf16.mxu0 0
        %1203 = vmatpush1.bf16.msra.mxu0 0
        %1204 = vmatprep.subr.bf16.mxu0 0
        %1205 = vmatpush1.bf16.msra.mxu0 0
        %1206 = vmatprep.mubr.bf16.mxu0 0
        %1207 = vmatmul.mubr.bf16.gmra.mrb[0].mxu0 %v1168
        %v1208 = vpop.f32.mrb[0].mxu0
        %v1209 = vadd.f32 0.0, %v1208
        %v1210 = vpop.f32.mrb[0].mxu0
        %v1211 = vpop.f32.mrb[0].mxu0
        %v1212 = vpop.f32.mrb[0].mxu0
        %1213 = vdwg.mxu0
        %v1214 = vadd.f32 %v1165, %v1209
        %1215 = vst [vmem:[#allocation5] sm:$0xff] %v1214
        %1216 = vst.msk [vmem:[#allocation3] sm:$0xff] %vm1157, %v1139
        // Predicated region
        $region129: #{tpu_custom_call.1} parent=91 // pred_check
          %p1217 = pneg %p743
        $region130: #{tpu_custom_call.1} parent=91 // pred_check_branch
          %1219 = sbr.rel (%p1217) target = $region132
        $region131: #{tpu_custom_call.1} parent=91 // pred_region
          %v1220 = vld [vmem:[#allocation5] sm:$0xff]
          %v1221 = vld [vmem:[#allocation4] sm:$0xff]
          %v1222 = vrcp.pop %v1221
          %1224 = vset.pattern.permute.xlu0 0
          %1225 = vperm.xlu0 %1224, %v1222
          %v1226 = vpop.permute.xlu0 %1225
          %v1228 = vmul.f32 %v1220, %v1226
          %v1229 = vpack.c.bf16 %v1228, %v1228
          %v1230 = vld [vmem:[#allocation15] sm:$0xf]
          %v1231 = vld [vmem:[#allocation15 + $0x4] sm:$0xf]
          %v1232 = vld [vmem:[#allocation15 + $0x8] sm:$0xf]
          %v1233 = vld [vmem:[#allocation15 + $0xc] sm:$0xf]
          %v1234 = vld [vmem:[#allocation15 + $0x10] sm:$0xf]
          %v1235 = vld [vmem:[#allocation15 + $0x14] sm:$0xf]
          %v1236 = vld [vmem:[#allocation15 + $0x18] sm:$0xf]
          %v1237 = vld [vmem:[#allocation15 + $0x1c] sm:$0xf]
          %v1238 = vld [vmem:[#allocation15 + $0x20] sm:$0xf]
          %v1239 = vld [vmem:[#allocation15 + $0x24] sm:$0xf]
          %v1240 = vld [vmem:[#allocation15 + $0x28] sm:$0xf]
          %v1241 = vld [vmem:[#allocation15 + $0x2c] sm:$0xf]
          %v1242 = vld [vmem:[#allocation15 + $0x30] sm:$0xf]
          %v1243 = vld [vmem:[#allocation15 + $0x34] sm:$0xf]
          %v1244 = vld [vmem:[#allocation15 + $0x38] sm:$0xf]
          %v1245 = vld [vmem:[#allocation15 + $0x3c] sm:$0xf]
          %v1246 = vld [vmem:[%s9] sm:$0x1]
          %v1248 = vlaneseq
          %v1249 = vshrl.u32 %v1248, 7
          %v1250 = vsub.s32 0, %v1249
          %v1251 = vrot.slane %v1246, %v1250
          %v1269 = vunpack.c.l.b16 %v1230
          %v1270 = vunpack.c.l.b16 %v1231
          %v1271 = vunpack.c.l.b16 %v1232
          %v1272 = vunpack.c.l.b16 %v1233
          %v1273 = vunpack.c.l.b16 %v1234
          %v1274 = vunpack.c.l.b16 %v1235
          %v1275 = vunpack.c.l.b16 %v1236
          %v1276 = vunpack.c.l.b16 %v1237
          %v1277 = vunpack.c.l.b16 %v1238
          %v1278 = vunpack.c.l.b16 %v1239
          %v1279 = vunpack.c.l.b16 %v1240
          %v1280 = vunpack.c.l.b16 %v1241
          %v1281 = vunpack.c.l.b16 %v1242
          %v1282 = vunpack.c.l.b16 %v1243
          %v1283 = vunpack.c.l.b16 %v1244
          %v1284 = vunpack.c.l.b16 %v1245
          %v1285 = vpack.c.b16 %v1270, %v1269
          %v1286 = vpack.c.b16 %v1272, %v1271
          %v1287 = vpack.c.b16 %v1274, %v1273
          %v1288 = vpack.c.b16 %v1276, %v1275
          %v1289 = vpack.c.b16 %v1278, %v1277
          %v1290 = vpack.c.b16 %v1280, %v1279
          %v1291 = vpack.c.b16 %v1282, %v1281
          %v1292 = vpack.c.b16 %v1284, %v1283
          %1301 = vmatprep.subr.bf16.mxu0 0
          %1302 = vmatpush1.bf16.msra.mxu0 %v1285
          %1303 = vmatprep.subr.bf16.mxu0 0
          %1304 = vmatpush1.bf16.msra.mxu0 %v1286
          %1305 = vmatprep.subr.bf16.mxu0 0
          %1306 = vmatpush1.bf16.msra.mxu0 %v1287
          %1307 = vmatprep.subr.bf16.mxu0 0
          %1308 = vmatpush1.bf16.msra.mxu0 %v1288
          %1309 = vmatprep.subr.bf16.mxu0 0
          %1310 = vmatpush1.bf16.msra.mxu0 %v1289
          %1311 = vmatprep.subr.bf16.mxu0 0
          %1312 = vmatpush1.bf16.msra.mxu0 %v1290
          %1313 = vmatprep.subr.bf16.mxu0 0
          %1314 = vmatpush1.bf16.msra.mxu0 %v1291
          %1315 = vmatprep.subr.bf16.mxu0 0
          %1316 = vmatpush1.bf16.msra.mxu0 %v1292
          %1317 = vmatprep.subr.bf16.mxu0 0
          %1318 = vmatpush1.bf16.msra.mxu0 0
          %1319 = vmatprep.subr.bf16.mxu0 0
          %1320 = vmatpush1.bf16.msra.mxu0 0
          %1321 = vmatprep.subr.bf16.mxu0 0
          %1322 = vmatpush1.bf16.msra.mxu0 0
          %1323 = vmatprep.subr.bf16.mxu0 0
          %1324 = vmatpush1.bf16.msra.mxu0 0
          %1325 = vmatprep.subr.bf16.mxu0 0
          %1326 = vmatpush1.bf16.msra.mxu0 0
          %1327 = vmatprep.subr.bf16.mxu0 0
          %1328 = vmatpush1.bf16.msra.mxu0 0
          %1329 = vmatprep.subr.bf16.mxu0 0
          %1330 = vmatpush1.bf16.msra.mxu0 0
          %1331 = vmatprep.subr.bf16.mxu0 0
          %1332 = vmatpush1.bf16.msra.mxu0 0
          %1333 = vmatprep.mubr.bf16.mxu0 0
          %1334 = vmatmul.mubr.bf16.gmra.mrb[0].mxu0 %v1229
          %v1335 = vpop.f32.mrb[0].mxu0
          %v1336 = vadd.f32 %v1251, %v1335
          %v1337 = vpop.f32.mrb[0].mxu0
          %v1338 = vpop.f32.mrb[0].mxu0
          %v1339 = vpop.f32.mrb[0].mxu0
          %1340 = vdwg.mxu0
          %v1341 = vld [vmem:[%s651] sm:$0xff]
          %v1342 = vadd.f32 %v1341, %v1336
          %v1343 = vld [vmem:[%s10] sm:$0x1]
          %v1344 = vld [vmem:[%s11] sm:$0x1]
          %1345 = vadd.xlane.f32.xlu0 %v1342
          %v1346 = vpop.xlane.xlu0 %1345
          %v1347 = vrcp.pop 128.0
          %v1348 = vmul.f32 %v1346, %v1347
          %v1349 = vsub.f32 %v1342, %v1348
          %v1350 = vmul.f32 %v1349, %v1349
          %1351 = vadd.xlane.f32.xlu0 %v1350
          %v1352 = vpop.xlane.xlu0 %1351
          %v1353 = vmul.f32 %v1352, %v1347
          %v1354 = vadd.f32 %v1353, 1e-05
          %v1355 = vrsqrt.pop %v1354
          %v1356 = vmul.f32 %v1349, %v1355
          %v1358 = vlaneseq
          %v1359 = vshrl.u32 %v1358, 7
          %v1360 = vsub.s32 0, %v1359
          %v1361 = vrot.slane %v1343, %v1360
          %v1363 = vmul.f32 %v1356, %v1361
          %v1365 = vlaneseq
          %v1366 = vshrl.u32 %v1365, 7
          %v1367 = vsub.s32 0, %v1366
          %v1368 = vrot.slane %v1344, %v1367
          %v1370 = vadd.f32 %v1363, %v1368
          %v1371 = vpack.c.bf16 %v1370, %v1370
          %v1372 = vld [vmem:[#allocation17] sm:$0xf]
          %v1373 = vld [vmem:[#allocation17 + $0x4] sm:$0xf]
          %v1374 = vld [vmem:[#allocation17 + $0x8] sm:$0xf]
          %v1375 = vld [vmem:[#allocation17 + $0xc] sm:$0xf]
          %v1376 = vld [vmem:[#allocation17 + $0x10] sm:$0xf]
          %v1377 = vld [vmem:[#allocation17 + $0x14] sm:$0xf]
          %v1378 = vld [vmem:[#allocation17 + $0x18] sm:$0xf]
          %v1379 = vld [vmem:[#allocation17 + $0x1c] sm:$0xf]
          %v1380 = vld [vmem:[#allocation17 + $0x20] sm:$0xf]
          %v1381 = vld [vmem:[#allocation17 + $0x24] sm:$0xf]
          %v1382 = vld [vmem:[#allocation17 + $0x28] sm:$0xf]
          %v1383 = vld [vmem:[#allocation17 + $0x2c] sm:$0xf]
          %v1384 = vld [vmem:[#allocation17 + $0x30] sm:$0xf]
          %v1385 = vld [vmem:[#allocation17 + $0x34] sm:$0xf]
          %v1386 = vld [vmem:[#allocation17 + $0x38] sm:$0xf]
          %v1387 = vld [vmem:[#allocation17 + $0x3c] sm:$0xf]
          %v1388 = vld [vmem:[%s13] sm:$0x1]
          %v1390 = vlaneseq
          %v1391 = vshrl.u32 %v1390, 7
          %v1392 = vsub.s32 0, %v1391
          %v1393 = vrot.slane %v1388, %v1392
          %v1411 = vunpack.c.l.b16 %v1372
          %v1412 = vunpack.c.l.b16 %v1373
          %v1413 = vunpack.c.l.b16 %v1374
          %v1414 = vunpack.c.l.b16 %v1375
          %v1415 = vunpack.c.l.b16 %v1376
          %v1416 = vunpack.c.l.b16 %v1377
          %v1417 = vunpack.c.l.b16 %v1378
          %v1418 = vunpack.c.l.b16 %v1379
          %v1419 = vunpack.c.l.b16 %v1380
          %v1420 = vunpack.c.l.b16 %v1381
          %v1421 = vunpack.c.l.b16 %v1382
          %v1422 = vunpack.c.l.b16 %v1383
          %v1423 = vunpack.c.l.b16 %v1384
          %v1424 = vunpack.c.l.b16 %v1385
          %v1425 = vunpack.c.l.b16 %v1386
          %v1426 = vunpack.c.l.b16 %v1387
          %v1427 = vpack.c.b16 %v1412, %v1411
          %v1428 = vpack.c.b16 %v1414, %v1413
          %v1429 = vpack.c.b16 %v1416, %v1415
          %v1430 = vpack.c.b16 %v1418, %v1417
          %v1431 = vpack.c.b16 %v1420, %v1419
          %v1432 = vpack.c.b16 %v1422, %v1421
          %v1433 = vpack.c.b16 %v1424, %v1423
          %v1434 = vpack.c.b16 %v1426, %v1425
          %1443 = vmatprep.subr.bf16.mxu0 0
          %1444 = vmatpush1.bf16.msra.mxu0 %v1427
          %1445 = vmatprep.subr.bf16.mxu0 0
          %1446 = vmatpush1.bf16.msra.mxu0 %v1428
          %1447 = vmatprep.subr.bf16.mxu0 0
          %1448 = vmatpush1.bf16.msra.mxu0 %v1429
          %1449 = vmatprep.subr.bf16.mxu0 0
          %1450 = vmatpush1.bf16.msra.mxu0 %v1430
          %1451 = vmatprep.subr.bf16.mxu0 0
          %1452 = vmatpush1.bf16.msra.mxu0 %v1431
          %1453 = vmatprep.subr.bf16.mxu0 0
          %1454 = vmatpush1.bf16.msra.mxu0 %v1432
          %1455 = vmatprep.subr.bf16.mxu0 0
          %1456 = vmatpush1.bf16.msra.mxu0 %v1433
          %1457 = vmatprep.subr.bf16.mxu0 0
          %1458 = vmatpush1.bf16.msra.mxu0 %v1434
          %1459 = vmatprep.subr.bf16.mxu0 0
          %1460 = vmatpush1.bf16.msra.mxu0 0
          %1461 = vmatprep.subr.bf16.mxu0 0
          %1462 = vmatpush1.bf16.msra.mxu0 0
          %1463 = vmatprep.subr.bf16.mxu0 0
          %1464 = vmatpush1.bf16.msra.mxu0 0
          %1465 = vmatprep.subr.bf16.mxu0 0
          %1466 = vmatpush1.bf16.msra.mxu0 0
          %1467 = vmatprep.subr.bf16.mxu0 0
          %1468 = vmatpush1.bf16.msra.mxu0 0
          %1469 = vmatprep.subr.bf16.mxu0 0
          %1470 = vmatpush1.bf16.msra.mxu0 0
          %1471 = vmatprep.subr.bf16.mxu0 0
          %1472 = vmatpush1.bf16.msra.mxu0 0
          %1473 = vmatprep.subr.bf16.mxu0 0
          %1474 = vmatpush1.bf16.msra.mxu0 0
          %1475 = vmatprep.mubr.bf16.mxu0 0
          %1476 = vmatmul.mubr.bf16.gmra.mrb[0].mxu0 %v1371
          %v1477 = vpop.f32.mrb[0].mxu0
          %v1478 = vadd.f32 %v1393, %v1477
          %v1479 = vpop.f32.mrb[0].mxu0
          %v1480 = vpop.f32.mrb[0].mxu0
          %v1481 = vpop.f32.mrb[0].mxu0
          %1482 = vdwg.mxu0
          %v1483 = vmax.f32 %v1478, 0.0
          %v1484 = vpack.c.bf16 %v1483, %v1483
          %v1485 = vld [vmem:[#allocation18] sm:$0xf]
          %v1486 = vld [vmem:[#allocation18 + $0x4] sm:$0xf]
          %v1487 = vld [vmem:[#allocation18 + $0x8] sm:$0xf]
          %v1488 = vld [vmem:[#allocation18 + $0xc] sm:$0xf]
          %v1489 = vld [vmem:[#allocation18 + $0x10] sm:$0xf]
          %v1490 = vld [vmem:[#allocation18 + $0x14] sm:$0xf]
          %v1491 = vld [vmem:[#allocation18 + $0x18] sm:$0xf]
          %v1492 = vld [vmem:[#allocation18 + $0x1c] sm:$0xf]
          %v1493 = vld [vmem:[#allocation18 + $0x20] sm:$0xf]
          %v1494 = vld [vmem:[#allocation18 + $0x24] sm:$0xf]
          %v1495 = vld [vmem:[#allocation18 + $0x28] sm:$0xf]
          %v1496 = vld [vmem:[#allocation18 + $0x2c] sm:$0xf]
          %v1497 = vld [vmem:[#allocation18 + $0x30] sm:$0xf]
          %v1498 = vld [vmem:[#allocation18 + $0x34] sm:$0xf]
          %v1499 = vld [vmem:[#allocation18 + $0x38] sm:$0xf]
          %v1500 = vld [vmem:[#allocation18 + $0x3c] sm:$0xf]
          %v1501 = vld [vmem:[%s15] sm:$0x1]
          %v1503 = vlaneseq
          %v1504 = vshrl.u32 %v1503, 7
          %v1505 = vsub.s32 0, %v1504
          %v1506 = vrot.slane %v1501, %v1505
          %v1524 = vunpack.c.l.b16 %v1485
          %v1525 = vunpack.c.l.b16 %v1486
          %v1526 = vunpack.c.l.b16 %v1487
          %v1527 = vunpack.c.l.b16 %v1488
          %v1528 = vunpack.c.l.b16 %v1489
          %v1529 = vunpack.c.l.b16 %v1490
          %v1530 = vunpack.c.l.b16 %v1491
          %v1531 = vunpack.c.l.b16 %v1492
          %v1532 = vunpack.c.l.b16 %v1493
          %v1533 = vunpack.c.l.b16 %v1494
          %v1534 = vunpack.c.l.b16 %v1495
          %v1535 = vunpack.c.l.b16 %v1496
          %v1536 = vunpack.c.l.b16 %v1497
          %v1537 = vunpack.c.l.b16 %v1498
          %v1538 = vunpack.c.l.b16 %v1499
          %v1539 = vunpack.c.l.b16 %v1500
          %v1540 = vpack.c.b16 %v1525, %v1524
          %v1541 = vpack.c.b16 %v1527, %v1526
          %v1542 = vpack.c.b16 %v1529, %v1528
          %v1543 = vpack.c.b16 %v1531, %v1530
          %v1544 = vpack.c.b16 %v1533, %v1532
          %v1545 = vpack.c.b16 %v1535, %v1534
          %v1546 = vpack.c.b16 %v1537, %v1536
          %v1547 = vpack.c.b16 %v1539, %v1538
          %1556 = vmatprep.subr.bf16.mxu0 0
          %1557 = vmatpush1.bf16.msra.mxu0 %v1540
          %1558 = vmatprep.subr.bf16.mxu0 0
          %1559 = vmatpush1.bf16.msra.mxu0 %v1541
          %1560 = vmatprep.subr.bf16.mxu0 0
          %1561 = vmatpush1.bf16.msra.mxu0 %v1542
          %1562 = vmatprep.subr.bf16.mxu0 0
          %1563 = vmatpush1.bf16.msra.mxu0 %v1543
          %1564 = vmatprep.subr.bf16.mxu0 0
          %1565 = vmatpush1.bf16.msra.mxu0 %v1544
          %1566 = vmatprep.subr.bf16.mxu0 0
          %1567 = vmatpush1.bf16.msra.mxu0 %v1545
          %1568 = vmatprep.subr.bf16.mxu0 0
          %1569 = vmatpush1.bf16.msra.mxu0 %v1546
          %1570 = vmatprep.subr.bf16.mxu0 0
          %1571 = vmatpush1.bf16.msra.mxu0 %v1547
          %1572 = vmatprep.subr.bf16.mxu0 0
          %1573 = vmatpush1.bf16.msra.mxu0 0
          %1574 = vmatprep.subr.bf16.mxu0 0
          %1575 = vmatpush1.bf16.msra.mxu0 0
          %1576 = vmatprep.subr.bf16.mxu0 0
          %1577 = vmatpush1.bf16.msra.mxu0 0
          %1578 = vmatprep.subr.bf16.mxu0 0
          %1579 = vmatpush1.bf16.msra.mxu0 0
          %1580 = vmatprep.subr.bf16.mxu0 0
          %1581 = vmatpush1.bf16.msra.mxu0 0
          %1582 = vmatprep.subr.bf16.mxu0 0
          %1583 = vmatpush1.bf16.msra.mxu0 0
          %1584 = vmatprep.subr.bf16.mxu0 0
          %1585 = vmatpush1.bf16.msra.mxu0 0
          %1586 = vmatprep.subr.bf16.mxu0 0
          %1587 = vmatpush1.bf16.msra.mxu0 0
          %1588 = vmatprep.mubr.bf16.mxu0 0
          %1589 = vmatmul.mubr.bf16.gmra.mrb[0].mxu0 %v1484
          %v1590 = vpop.f32.mrb[0].mxu0
          %v1591 = vadd.f32 %v1506, %v1590
          %v1592 = vpop.f32.mrb[0].mxu0
          %v1593 = vpop.f32.mrb[0].mxu0
          %v1594 = vpop.f32.mrb[0].mxu0
          %1595 = vdwg.mxu0
          %v1596 = vadd.f32 %v1370, %v1591
          %v1597 = vld [vmem:[%s16] sm:$0x1]
          %v1598 = vld [vmem:[%s17] sm:$0x1]
          %1599 = vadd.xlane.f32.xlu0 %v1596
          %v1600 = vpop.xlane.xlu0 %1599
          %v1601 = vmul.f32 %v1600, %v1347
          %v1602 = vsub.f32 %v1596, %v1601
          %v1603 = vmul.f32 %v1602, %v1602
          %1604 = vadd.xlane.f32.xlu0 %v1603
          %v1605 = vpop.xlane.xlu0 %1604
          %v1606 = vmul.f32 %v1605, %v1347
          %v1607 = vadd.f32 %v1606, 1e-05
          %v1608 = vrsqrt.pop %v1607
          %v1609 = vmul.f32 %v1602, %v1608
          %v1611 = vlaneseq
          %v1612 = vshrl.u32 %v1611, 7
          %v1613 = vsub.s32 0, %v1612
          %v1614 = vrot.slane %v1597, %v1613
          %v1616 = vmul.f32 %v1609, %v1614
          %v1618 = vlaneseq
          %v1619 = vshrl.u32 %v1618, 7
          %v1620 = vsub.s32 0, %v1619
          %v1621 = vrot.slane %v1598, %v1620
          %v1623 = vadd.f32 %v1616, %v1621
          %1624 = vst [vmem:[%s741] sm:$0xff] %v1623
        $region132: #{tpu_custom_call.1} parent=91 // pred_fallthru
          _
        %s1625 = sand.u32 %s462, 1
        %s1626 = scalar_lea.sflag [#allocation8], %s1625
        %s1627 = sand.u32 %s462, 1
        %s1628 = smul.addr %s1627, 8
        %s1629 = scalar_lea.vmem [#allocation20], %s1628
        // Predicated region
        $region133: #{tpu_custom_call.1} parent=91 // pred_check
          %p1630 = pneg %p472
        $region134: #{tpu_custom_call.1} parent=91 // pred_check_branch
          %1632 = sbr.rel (%p1630) target = $region136
        $region135: #{tpu_custom_call.1} parent=91 // pred_region
          %s1634 = ssub.s32 128, 128
          %1635 = vsyncadd %s1626, %s1634
          %s1636 = sadd.s32 %s47, %s46
          %s1637 = smul.addr %s1636, 128
          %s1638 = scalar_lea.hbm %s18, %s1637
          %s1640 = sshll.u32 %s1629, 4
          %s1641 = int_to_ptr.vmem [resolvable:$true] %s1640
          %1643 = dma.vmem_to_hbm [thread:$0]  %s1641, 128, %s1638, %s1626
        $region136: #{tpu_custom_call.1} parent=91 // pred_fallthru
          _
      $region92: #{tpu_custom_call.1} parent=5 // pred_fallthru
        _
      %p1644 = scmp.le.s32.totalorder 2, %s36
      // Predicated region
      $region137: #{tpu_custom_call.1} parent=5 // pred_check
        %p1645 = pneg %p1644
      $region138: #{tpu_custom_call.1} parent=5 // pred_check_branch
        %1647 = sbr.rel (%p1645) target = $region140
      $region139: #{tpu_custom_call.1} parent=5 // pred_region
        %s1648 = ssub.s32 %s36, 2
        // Predicated region
        $region141: #{tpu_custom_call.1} parent=139 // pred_check
          %p1649 = pneg %p478
        $region142: #{tpu_custom_call.1} parent=139 // pred_check_branch
          %1651 = sbr.rel (%p1649) target = $region144
        $region143: #{tpu_custom_call.1} parent=139 // pred_region
          %s1652 = sand.u32 %s463, 1
          %s1653 = scalar_lea.sflag [#allocation8], %s1652
          %s1654 = sand.u32 %s463, 1
          %s1655 = smul.addr %s1654, 8
          %s1656 = scalar_lea.vmem [#allocation20], %s1655
          %1657 = dma.done %s1653, 128
        $region144: #{tpu_custom_call.1} parent=139 // pred_fallthru
          _
      $region140: #{tpu_custom_call.1} parent=5 // pred_fallthru
        _
    $region6: #{tpu_custom_call.1} parent=1 // loop_footer
      %s40 = sadd.s32 1, %s36
    $region7: #{tpu_custom_call.1} parent=1 // loop_footer_branch
      %35 = sbr.rel target = $region3
    $region8: #{tpu_custom_call.1} parent=1 // loop_exit
      _
    %1658 = vsyncpa [#allocation7], 1
    %s1659 = scalar_lea.sflag [#allocation7], 1
    %1660 = vsyncpa %s1659, 1
    %1661 = vsyncpa [#allocation10], 1
    %s1662 = scalar_lea.sflag [#allocation10], 1
    %1663 = vsyncpa %s1662, 1
    %1664 = vsyncpa [#allocation13], 1
    %1665 = vsyncpa [#allocation16], 1
    %1666 = vsyncpa [#allocation19], 1
    %1667 = vsyncpa [#allocation8], 1
    %s1668 = scalar_lea.sflag [#allocation8], 1
    %1669 = vsyncpa %s1668, 1

// kernel: tpu_custom_call.1
$region0: #{tpu_custom_call.1}
  #allocation0 [shape = 'u32[]', space=smem, size = 0x4, offset = 0x4, fixed_abs, tag = 'smem constant byte address 0x4 - core index']
  #allocation1 [shape = 'u32[144,128]{1,0:T(1,128)}', space=vmem, size = 0x12000, scoped, tag = 'internal scratch']
  #allocation2 [shape = 'bf16[8,128]{1,0:T(8,128)(2,1)}', space=vmem, size = 0x800, scoped, tag = 'scratch operand']
  #allocation3 [shape = 'f32[8,1]{1,0:T(8,128)}', space=vmem, size = 0x1000, scoped, tag = 'scratch operand']
  #allocation4 [shape = 'f32[8,1]{1,0:T(8,128)}', space=vmem, size = 0x1000, scoped, tag = 'scratch operand']
  #allocation5 [shape = 'f32[8,128]{1,0:T(8,128)}', space=vmem, size = 0x1000, scoped, tag = 'scratch operand']
  %s0 = inlined_call_operand.hbm [shape: f32[2,8,128], index: 0, kind: input, shape index: {}]
  %s1 = inlined_call_operand.hbm [shape: f32[2,8,128], index: 1, kind: input, shape index: {}]
  %s2 = inlined_call_operand.hbm [shape: bf16[128,128], index: 2, kind: input, shape index: {}]
  %s3 = inlined_call_operand.vmem [shape: f32[1,128], index: 3, kind: input, shape index: {}]
  %s4 = inlined_call_operand.hbm [shape: bf16[128,128], index: 4, kind: input, shape index: {}]
  %s5 = inlined_call_operand.vmem [shape: f32[1,128], index: 5, kind: input, shape index: {}]
  %s6 = inlined_call_operand.hbm [shape: bf16[128,128], index: 6, kind: input, shape index: {}]
  %s7 = inlined_call_operand.vmem [shape: f32[1,128], index: 7, kind: input, shape index: {}]
  %s8 = inlined_call_operand.hbm [shape: bf16[128,128], index: 8, kind: input, shape index: {}]
  %s9 = inlined_call_operand.vmem [shape: f32[1,128], index: 9, kind: input, shape index: {}]
  %s10 = inlined_call_operand.vmem [shape: f32[1,128], index: 10, kind: input, shape index: {}]
  %s11 = inlined_call_operand.vmem [shape: f32[1,128], index: 11, kind: input, shape index: {}]
  %s12 = inlined_call_operand.hbm [shape: bf16[128,128], index: 12, kind: input, shape index: {}]
  %s13 = inlined_call_operand.vmem [shape: f32[1,128], index: 13, kind: input, shape index: {}]
  %s14 = inlined_call_operand.hbm [shape: bf16[128,128], index: 14, kind: input, shape index: {}]
  %s15 = inlined_call_operand.vmem [shape: f32[1,128], index: 15, kind: input, shape index: {}]
  %s16 = inlined_call_operand.vmem [shape: f32[1,128], index: 16, kind: input, shape index: {}]
  %s17 = inlined_call_operand.vmem [shape: f32[1,128], index: 17, kind: input, shape index: {}]
  %s18 = inlined_call_operand.hbm [shape: f32[2,8,128], index: 18, kind: output, shape index: {}]
  %s19 = sld [smem:[#allocation0]]
  $region145: #{tpu_custom_call.1} parent=0
    _
  %s21 = ssub.s32 1, %s19
  %s22 = scalar_select 0, %s21, %s19
  $region1: #{tpu_custom_call.1} parent=0
    #allocation6 [shape = 'u8[8192]{0}', space=vmem, size = 0x2000, scoped, tag = 'input window, operand 0']
    #allocation7 [shape = 's32[2]{0}', space=sflag, size = 0x8, scoped, tag = 'scoped memory for tpu_custom_call.1']
    #allocation8 [shape = 's32[2]{0}', space=sflag, size = 0x8, scoped, tag = 'scoped memory for tpu_custom_call.1']
    #allocation9 [shape = 'u8[8192]{0}', space=vmem, size = 0x2000, scoped, tag = 'input window, operand 1']
    #allocation10 [shape = 's32[2]{0}', space=sflag, size = 0x8, scoped, tag = 'scoped memory for tpu_custom_call.1']
    #allocation11 [shape = 'u8[32768]{0}', space=vmem, size = 0x8000, scoped, tag = 'input window, operand 2, single buffered']
    #allocation12 [shape = 'u8[32768]{0}', space=vmem, size = 0x8000, scoped, tag = 'input window, operand 4, single buffered']
    #allocation13 [shape = 's32[1]{0}', space=sflag, size = 0x4, scoped, tag = 'scoped memory for tpu_custom_call.1']
    #allocation14 [shape = 'u8[32768]{0}', space=vmem, size = 0x8000, scoped, tag = 'input window, operand 6, single buffered']
    #allocation15 [shape = 'u8[32768]{0}', space=vmem, size = 0x8000, scoped, tag = 'input window, operand 8, single buffered']
    #allocation16 [shape = 's32[1]{0}', space=sflag, size = 0x4, scoped, tag = 'scoped memory for tpu_custom_call.1']
    #allocation17 [shape = 'u8[32768]{0}', space=vmem, size = 0x8000, scoped, tag = 'input window, operand 12, single buffered']
    #allocation18 [shape = 'u8[32768]{0}', space=vmem, size = 0x8000, scoped, tag = 'input window, operand 14, single buffered']
    #allocation19 [shape = 's32[1]{0}', space=sflag, size = 0x4, scoped, tag = 'scoped memory for tpu_custom_call.1']
    #allocation20 [shape = 'u8[8192]{0}', space=vmem, size = 0x2000, scoped, tag = 'output window, operand 0']
    %23 = vsyncpa [#allocation7], 0
    %s24 = scalar_lea.sflag [#allocation7], 1
    %25 = vsyncpa %s24, 0
    %26 = vsyncpa [#allocation10], 0
    %s27 = scalar_lea.sflag [#allocation10], 1
    %28 = vsyncpa %s27, 0
    %29 = vsyncpa [#allocation13], 0
    %30 = vsyncpa [#allocation16], 0
    %31 = vsyncpa [#allocation19], 0
    %32 = vsyncpa [#allocation8], 0
    %s33 = scalar_lea.sflag [#allocation8], 1
    %34 = vsyncpa %s33, 0
    loop: start=0, step=1, limit=4
    $region2: #{tpu_custom_call.1} parent=1 // loop_pre_header
      _
    $region3: #{tpu_custom_call.1} parent=1 // loop_header
      %s36 = sphi 0, %s40
      %p37 = scmp.ge.s32.totalorder %s36, 4
      %s43 = sphi 0, %s62
      %s44 = sphi 0, %s58
      %s45 = sphi 0, %s54
      %s46 = sphi 0, %s43
      %s47 = sphi 0, %s44
      %s48 = sphi 0, %s45
      %s49 = sphi 0, %s46
      %s50 = sphi 0, %s47
      %s51 = sphi 0, %s48
      %s67 = sphi 0, %s69
      %s70 = sphi 0, %s67
      %s71 = sphi 0, %s70
      %s87 = sphi 0, %s71
      %s95 = sphi 0, %s97
      %s98 = sphi 0, %s95
      %s99 = sphi 0, %s98
      %s115 = sphi 0, %s99
      %s119 = sphi 0, %s119
      %s121 = sphi 0, %s119
      %s122 = sphi 0, %s121
      %s136 = sphi 0, %s122
      %s140 = sphi 0, %s140
      %s142 = sphi 0, %s140
      %s143 = sphi 0, %s142
      %s157 = sphi 0, %s143
      %s161 = sphi 0, %s161
      %s163 = sphi 0, %s161
      %s164 = sphi 0, %s163
      %s178 = sphi 0, %s164
      %s182 = sphi 0, %s182
      %s184 = sphi 0, %s182
      %s185 = sphi 0, %s184
      %s199 = sphi 0, %s185
      %s203 = sphi 0, %s203
      %s205 = sphi 0, %s203
      %s206 = sphi 0, %s205
      %s220 = sphi 0, %s206
      %s224 = sphi 0, %s224
      %s226 = sphi 0, %s224
      %s227 = sphi 0, %s226
      %s241 = sphi 0, %s227
      %s245 = sphi 0, %s245
      %s247 = sphi 0, %s245
      %s248 = sphi 0, %s247
      %s262 = sphi 0, %s248
      %s266 = sphi 0, %s266
      %s268 = sphi 0, %s266
      %s269 = sphi 0, %s268
      %s283 = sphi 0, %s269
      %s287 = sphi 0, %s287
      %s289 = sphi 0, %s287
      %s290 = sphi 0, %s289
      %s304 = sphi 0, %s290
      %s308 = sphi 0, %s308
      %s310 = sphi 0, %s308
      %s311 = sphi 0, %s310
      %s325 = sphi 0, %s311
      %s329 = sphi 0, %s329
      %s331 = sphi 0, %s329
      %s332 = sphi 0, %s331
      %s346 = sphi 0, %s332
      %s350 = sphi 0, %s350
      %s352 = sphi 0, %s350
      %s353 = sphi 0, %s352
      %s367 = sphi 0, %s353
      %s371 = sphi 0, %s371
      %s373 = sphi 0, %s371
      %s374 = sphi 0, %s373
      %s388 = sphi 0, %s374
      %s392 = sphi 0, %s392
      %s394 = sphi 0, %s392
      %s395 = sphi 0, %s394
      %s409 = sphi 0, %s395
      %s413 = sphi 0, %s413
      %s415 = sphi 0, %s413
      %s416 = sphi 0, %s415
      %s430 = sphi 0, %s416
      %s434 = sphi 0, %s434
      %s436 = sphi 0, %s434
      %s437 = sphi 0, %s436
      %s451 = sphi 0, %s437
      %s459 = sphi 0, %s461
      %s462 = sphi 0, %s459
      %s463 = sphi 0, %s462
      %s479 = sphi 0, %s463
    $region4: #{tpu_custom_call.1} parent=1 // loop_header_branch
      %39 = sbr.rel (%p37) target = $region8
    $region5: #{tpu_custom_call.1} parent=1 // loop_body
      %s41 = ssub.s32 %s36, 1
      %s42 = ssub.s32 %s36, 2
      %s52 = sadd.s32 1, %s45
      %p53 = scmp.ge.s32.totalorder %s52, 1
      %s54 = scalar_select %p53, 0, %s52
      %s55 = sadd.s32 1, %s44
      %s56 = scalar_select %p53, %s55, %s44
      %p57 = scmp.ge.s32.totalorder %s56, 1
      %s58 = scalar_select %p57, 0, %s56
      %s59 = sadd.s32 1, %s43
      %s60 = scalar_select %p57, %s59, %s43
      %p61 = scmp.ge.s32.totalorder %s60, 2
      %s62 = scalar_select %p61, 0, %s60
      %s63 = ssub.s32 %s43, %s62
      %s64 = ssub.s32 %s44, %s58
      %s65 = sor.u32 %s63, %s64
      %p66 = scmp.eq.s32.totalorder %s65, 0
      %s68 = sadd.s32 %s67, 1
      %s69 = scalar_select %p66, %s67, %s68
      %p72 = pneg %p66
      %p73 = scmp.eq.s32.totalorder %s36, 1
      %p74 = por %p72, %p73
      %p75 = scmp.ne.s32.totalorder %s67, %s70
      %p76 = scmp.eq.s32.totalorder %s36, 0
      %p77 = por %p75, %p76
      %p78 = scmp.ne.s32.totalorder %s67, %s70
      %p79 = scmp.eq.s32.totalorder %s41, 1
      %p80 = por %p78, %p79
      %p81 = scmp.ne.s32.totalorder %s70, %s71
      %p82 = scmp.eq.s32.totalorder %s41, 0
      %p83 = por %p81, %p82
      %p84 = scmp.ne.s32.totalorder %s70, %s71
      %p85 = scmp.eq.s32.totalorder %s42, 1
      %p86 = por %p84, %p85
      %p88 = scmp.ne.s32.totalorder %s71, %s87
      %p89 = scmp.eq.s32.totalorder %s42, 0
      %p90 = por %p88, %p89
      %s91 = ssub.s32 %s43, %s62
      %s92 = ssub.s32 %s45, %s54
      %s93 = sor.u32 %s91, %s92
      %p94 = scmp.eq.s32.totalorder %s93, 0
      %s96 = sadd.s32 %s95, 1
      %s97 = scalar_select %p94, %s95, %s96
      %p100 = pneg %p94
      %p101 = scmp.eq.s32.totalorder %s36, 1
      %p102 = por %p100, %p101
      %p103 = scmp.ne.s32.totalorder %s95, %s98
      %p104 = scmp.eq.s32.totalorder %s36, 0
      %p105 = por %p103, %p104
      %p106 = scmp.ne.s32.totalorder %s95, %s98
      %p107 = scmp.eq.s32.totalorder %s41, 1
      %p108 = por %p106, %p107
      %p109 = scmp.ne.s32.totalorder %s98, %s99
      %p110 = scmp.eq.s32.totalorder %s41, 0
      %p111 = por %p109, %p110
      %p112 = scmp.ne.s32.totalorder %s98, %s99
      %p113 = scmp.eq.s32.totalorder %s42, 1
      %p114 = por %p112, %p113
      %p116 = scmp.ne.s32.totalorder %s99, %s115
      %p117 = scmp.eq.s32.totalorder %s42, 0
      %p118 = por %p116, %p117
      %s120 = sadd.s32 %s119, 1
      %p123 = scmp.eq.s32.totalorder %s36, 1
      %p124 = scmp.ne.s32.totalorder %s119, %s121
      %p125 = scmp.eq.s32.totalorder %s36, 0
      %p126 = por %p124, %p125
      %p127 = scmp.ne.s32.totalorder %s119, %s121
      %p128 = scmp.eq.s32.totalorder %s41, 1
      %p129 = por %p127, %p128
      %p130 = scmp.ne.s32.totalorder %s121, %s122
      %p131 = scmp.eq.s32.totalorder %s41, 0
      %p132 = por %p130, %p131
      %p133 = scmp.ne.s32.totalorder %s121, %s122
      %p134 = scmp.eq.s32.totalorder %s42, 1
      %p135 = por %p133, %p134
      %p137 = scmp.ne.s32.totalorder %s122, %s136
      %p138 = scmp.eq.s32.totalorder %s42, 0
      %p139 = por %p137, %p138
      %s141 = sadd.s32 %s140, 1
      %p144 = scmp.eq.s32.totalorder %s36, 1
      %p145 = scmp.ne.s32.totalorder %s140, %s142
      %p146 = scmp.eq.s32.totalorder %s36, 0
      %p147 = por %p145, %p146
      %p148 = scmp.ne.s32.totalorder %s140, %s142
      %p149 = scmp.eq.s32.totalorder %s41, 1
      %p150 = por %p148, %p149
      %p151 = scmp.ne.s32.totalorder %s142, %s143
      %p152 = scmp.eq.s32.totalorder %s41, 0
      %p153 = por %p151, %p152
      %p154 = scmp.ne.s32.totalorder %s142, %s143
      %p155 = scmp.eq.s32.totalorder %s42, 1
      %p156 = por %p154, %p155
      %p158 = scmp.ne.s32.totalorder %s143, %s157
      %p159 = scmp.eq.s32.totalorder %s42, 0
      %p160 = por %p158, %p159
      %s162 = sadd.s32 %s161, 1
      %p165 = scmp.eq.s32.totalorder %s36, 1
      %p166 = scmp.ne.s32.totalorder %s161, %s163
      %p167 = scmp.eq.s32.totalorder %s36, 0
      %p168 = por %p166, %p167
      %p169 = scmp.ne.s32.totalorder %s161, %s163
      %p170 = scmp.eq.s32.totalorder %s41, 1
      %p171 = por %p169, %p170
      %p172 = scmp.ne.s32.totalorder %s163, %s164
      %p173 = scmp.eq.s32.totalorder %s41, 0
      %p174 = por %p172, %p173
      %p175 = scmp.ne.s32.totalorder %s163, %s164
      %p176 = scmp.eq.s32.totalorder %s42, 1
      %p177 = por %p175, %p176
      %p179 = scmp.ne.s32.totalorder %s164, %s178
      %p180 = scmp.eq.s32.totalorder %s42, 0
      %p181 = por %p179, %p180
      %s183 = sadd.s32 %s182, 1
      %p186 = scmp.eq.s32.totalorder %s36, 1
      %p187 = scmp.ne.s32.totalorder %s182, %s184
      %p188 = scmp.eq.s32.totalorder %s36, 0
      %p189 = por %p187, %p188
      %p190 = scmp.ne.s32.totalorder %s182, %s184
      %p191 = scmp.eq.s32.totalorder %s41, 1
      %p192 = por %p190, %p191
      %p193 = scmp.ne.s32.totalorder %s184, %s185
      %p194 = scmp.eq.s32.totalorder %s41, 0
      %p195 = por %p193, %p194
      %p196 = scmp.ne.s32.totalorder %s184, %s185
      %p197 = scmp.eq.s32.totalorder %s42, 1
      %p198 = por %p196, %p197
      %p200 = scmp.ne.s32.totalorder %s185, %s199
      %p201 = scmp.eq.s32.totalorder %s42, 0
      %p202 = por %p200, %p201
      %s204 = sadd.s32 %s203, 1
      %p207 = scmp.eq.s32.totalorder %s36, 1
      %p208 = scmp.ne.s32.totalorder %s203, %s205
      %p209 = scmp.eq.s32.totalorder %s36, 0
      %p210 = por %p208, %p209
      %p211 = scmp.ne.s32.totalorder %s203, %s205
      %p212 = scmp.eq.s32.totalorder %s41, 1
      %p213 = por %p211, %p212
      %p214 = scmp.ne.s32.totalorder %s205, %s206
      %p215 = scmp.eq.s32.totalorder %s41, 0
      %p216 = por %p214, %p215
      %p217 = scmp.ne.s32.totalorder %s205, %s206
      %p218 = scmp.eq.s32.totalorder %s42, 1
      %p219 = por %p217, %p218
      %p221 = scmp.ne.s32.totalorder %s206, %s220
      %p222 = scmp.eq.s32.totalorder %s42, 0
      %p223 = por %p221, %p222
      %s225 = sadd.s32 %s224, 1
      %p228 = scmp.eq.s32.totalorder %s36, 1
      %p229 = scmp.ne.s32.totalorder %s224, %s226
      %p230 = scmp.eq.s32.totalorder %s36, 0
      %p231 = por %p229, %p230
      %p232 = scmp.ne.s32.totalorder %s224, %s226
      %p233 = scmp.eq.s32.totalorder %s41, 1
      %p234 = por %p232, %p233
      %p235 = scmp.ne.s32.totalorder %s226, %s227
      %p236 = scmp.eq.s32.totalorder %s41, 0
      %p237 = por %p235, %p236
      %p238 = scmp.ne.s32.totalorder %s226, %s227
      %p239 = scmp.eq.s32.totalorder %s42, 1
      %p240 = por %p238, %p239
      %p242 = scmp.ne.s32.totalorder %s227, %s241
      %p243 = scmp.eq.s32.totalorder %s42, 0
      %p244 = por %p242, %p243
      %s246 = sadd.s32 %s245, 1
      %p249 = scmp.eq.s32.totalorder %s36, 1
      %p250 = scmp.ne.s32.totalorder %s245, %s247
      %p251 = scmp.eq.s32.totalorder %s36, 0
      %p252 = por %p250, %p251
      %p253 = scmp.ne.s32.totalorder %s245, %s247
      %p254 = scmp.eq.s32.totalorder %s41, 1
      %p255 = por %p253, %p254
      %p256 = scmp.ne.s32.totalorder %s247, %s248
      %p257 = scmp.eq.s32.totalorder %s41, 0
      %p258 = por %p256, %p257
      %p259 = scmp.ne.s32.totalorder %s247, %s248
      %p260 = scmp.eq.s32.totalorder %s42, 1
      %p261 = por %p259, %p260
      %p263 = scmp.ne.s32.totalorder %s248, %s262
      %p264 = scmp.eq.s32.totalorder %s42, 0
      %p265 = por %p263, %p264
      %s267 = sadd.s32 %s266, 1
      %p270 = scmp.eq.s32.totalorder %s36, 1
      %p271 = scmp.ne.s32.totalorder %s266, %s268
      %p272 = scmp.eq.s32.totalorder %s36, 0
      %p273 = por %p271, %p272
      %p274 = scmp.ne.s32.totalorder %s266, %s268
      %p275 = scmp.eq.s32.totalorder %s41, 1
      %p276 = por %p274, %p275
      %p277 = scmp.ne.s32.totalorder %s268, %s269
      %p278 = scmp.eq.s32.totalorder %s41, 0
      %p279 = por %p277, %p278
      %p280 = scmp.ne.s32.totalorder %s268, %s269
      %p281 = scmp.eq.s32.totalorder %s42, 1
      %p282 = por %p280, %p281
      %p284 = scmp.ne.s32.totalorder %s269, %s283
      %p285 = scmp.eq.s32.totalorder %s42, 0
      %p286 = por %p284, %p285
      %s288 = sadd.s32 %s287, 1
      %p291 = scmp.eq.s32.totalorder %s36, 1
      %p292 = scmp.ne.s32.totalorder %s287, %s289
      %p293 = scmp.eq.s32.totalorder %s36, 0
      %p294 = por %p292, %p293
      %p295 = scmp.ne.s32.totalorder %s287, %s289
      %p296 = scmp.eq.s32.totalorder %s41, 1
      %p297 = por %p295, %p296
      %p298 = scmp.ne.s32.totalorder %s289, %s290
      %p299 = scmp.eq.s32.totalorder %s41, 0
      %p300 = por %p298, %p299
      %p301 = scmp.ne.s32.totalorder %s289, %s290
      %p302 = scmp.eq.s32.totalorder %s42, 1
      %p303 = por %p301, %p302
      %p305 = scmp.ne.s32.totalorder %s290, %s304
      %p306 = scmp.eq.s32.totalorder %s42, 0
      %p307 = por %p305, %p306
      %s309 = sadd.s32 %s308, 1
      %p312 = scmp.eq.s32.totalorder %s36, 1
      %p313 = scmp.ne.s32.totalorder %s308, %s310
      %p314 = scmp.eq.s32.totalorder %s36, 0
      %p315 = por %p313, %p314
      %p316 = scmp.ne.s32.totalorder %s308, %s310
      %p317 = scmp.eq.s32.totalorder %s41, 1
      %p318 = por %p316, %p317
      %p319 = scmp.ne.s32.totalorder %s310, %s311
      %p320 = scmp.eq.s32.totalorder %s41, 0
      %p321 = por %p319, %p320
      %p322 = scmp.ne.s32.totalorder %s310, %s311
      %p323 = scmp.eq.s32.totalorder %s42, 1
      %p324 = por %p322, %p323
      %p326 = scmp.ne.s32.totalorder %s311, %s325
      %p327 = scmp.eq.s32.totalorder %s42, 0
      %p328 = por %p326, %p327
      %s330 = sadd.s32 %s329, 1
      %p333 = scmp.eq.s32.totalorder %s36, 1
      %p334 = scmp.ne.s32.totalorder %s329, %s331
      %p335 = scmp.eq.s32.totalorder %s36, 0
      %p336 = por %p334, %p335
      %p337 = scmp.ne.s32.totalorder %s329, %s331
      %p338 = scmp.eq.s32.totalorder %s41, 1
      %p339 = por %p337, %p338
      %p340 = scmp.ne.s32.totalorder %s331, %s332
      %p341 = scmp.eq.s32.totalorder %s41, 0
      %p342 = por %p340, %p341
      %p343 = scmp.ne.s32.totalorder %s331, %s332
      %p344 = scmp.eq.s32.totalorder %s42, 1
      %p345 = por %p343, %p344
      %p347 = scmp.ne.s32.totalorder %s332, %s346
      %p348 = scmp.eq.s32.totalorder %s42, 0
      %p349 = por %p347, %p348
      %s351 = sadd.s32 %s350, 1
      %p354 = scmp.eq.s32.totalorder %s36, 1
      %p355 = scmp.ne.s32.totalorder %s350, %s352
      %p356 = scmp.eq.s32.totalorder %s36, 0
      %p357 = por %p355, %p356
      %p358 = scmp.ne.s32.totalorder %s350, %s352
      %p359 = scmp.eq.s32.totalorder %s41, 1
      %p360 = por %p358, %p359
      %p361 = scmp.ne.s32.totalorder %s352, %s353
      %p362 = scmp.eq.s32.totalorder %s41, 0
      %p363 = por %p361, %p362
      %p364 = scmp.ne.s32.totalorder %s352, %s353
      %p365 = scmp.eq.s32.totalorder %s42, 1
      %p366 = por %p364, %p365
      %p368 = scmp.ne.s32.totalorder %s353, %s367
      %p369 = scmp.eq.s32.totalorder %s42, 0
      %p370 = por %p368, %p369
      %s372 = sadd.s32 %s371, 1
      %p375 = scmp.eq.s32.totalorder %s36, 1
      %p376 = scmp.ne.s32.totalorder %s371, %s373
      %p377 = scmp.eq.s32.totalorder %s36, 0
      %p378 = por %p376, %p377
      %p379 = scmp.ne.s32.totalorder %s371, %s373
      %p380 = scmp.eq.s32.totalorder %s41, 1
      %p381 = por %p379, %p380
      %p382 = scmp.ne.s32.totalorder %s373, %s374
      %p383 = scmp.eq.s32.totalorder %s41, 0
      %p384 = por %p382, %p383
      %p385 = scmp.ne.s32.totalorder %s373, %s374
      %p386 = scmp.eq.s32.totalorder %s42, 1
      %p387 = por %p385, %p386
      %p389 = scmp.ne.s32.totalorder %s374, %s388
      %p390 = scmp.eq.s32.totalorder %s42, 0
      %p391 = por %p389, %p390
      %s393 = sadd.s32 %s392, 1
      %p396 = scmp.eq.s32.totalorder %s36, 1
      %p397 = scmp.ne.s32.totalorder %s392, %s394
      %p398 = scmp.eq.s32.totalorder %s36, 0
      %p399 = por %p397, %p398
      %p400 = scmp.ne.s32.totalorder %s392, %s394
      %p401 = scmp.eq.s32.totalorder %s41, 1
      %p402 = por %p400, %p401
      %p403 = scmp.ne.s32.totalorder %s394, %s395
      %p404 = scmp.eq.s32.totalorder %s41, 0
      %p405 = por %p403, %p404
      %p406 = scmp.ne.s32.totalorder %s394, %s395
      %p407 = scmp.eq.s32.totalorder %s42, 1
      %p408 = por %p406, %p407
      %p410 = scmp.ne.s32.totalorder %s395, %s409
      %p411 = scmp.eq.s32.totalorder %s42, 0
      %p412 = por %p410, %p411
      %s414 = sadd.s32 %s413, 1
      %p417 = scmp.eq.s32.totalorder %s36, 1
      %p418 = scmp.ne.s32.totalorder %s413, %s415
      %p419 = scmp.eq.s32.totalorder %s36, 0
      %p420 = por %p418, %p419
      %p421 = scmp.ne.s32.totalorder %s413, %s415
      %p422 = scmp.eq.s32.totalorder %s41, 1
      %p423 = por %p421, %p422
      %p424 = scmp.ne.s32.totalorder %s415, %s416
      %p425 = scmp.eq.s32.totalorder %s41, 0
      %p426 = por %p424, %p425
      %p427 = scmp.ne.s32.totalorder %s415, %s416
      %p428 = scmp.eq.s32.totalorder %s42, 1
      %p429 = por %p427, %p428
      %p431 = scmp.ne.s32.totalorder %s416, %s430
      %p432 = scmp.eq.s32.totalorder %s42, 0
      %p433 = por %p431, %p432
      %s435 = sadd.s32 %s434, 1
      %p438 = scmp.eq.s32.totalorder %s36, 1
      %p439 = scmp.ne.s32.totalorder %s434, %s436
      %p440 = scmp.eq.s32.totalorder %s36, 0
      %p441 = por %p439, %p440
      %p442 = scmp.ne.s32.totalorder %s434, %s436
      %p443 = scmp.eq.s32.totalorder %s41, 1
      %p444 = por %p442, %p443
      %p445 = scmp.ne.s32.totalorder %s436, %s437
      %p446 = scmp.eq.s32.totalorder %s41, 0
      %p447 = por %p445, %p446
      %p448 = scmp.ne.s32.totalorder %s436, %s437
      %p449 = scmp.eq.s32.totalorder %s42, 1
      %p450 = por %p448, %p449
      %p452 = scmp.ne.s32.totalorder %s437, %s451
      %p453 = scmp.eq.s32.totalorder %s42, 0
      %p454 = por %p452, %p453
      %s455 = ssub.s32 %s43, %s62
      %s456 = ssub.s32 %s44, %s58
      %s457 = sor.u32 %s455, %s456
      %p458 = scmp.eq.s32.totalorder %s457, 0
      %s460 = sadd.s32 %s459, 1
      %s461 = scalar_select %p458, %s459, %s460
      %p464 = pneg %p458
      %p465 = scmp.eq.s32.totalorder %s36, 1
      %p466 = por %p464, %p465
      %p467 = scmp.ne.s32.totalorder %s459, %s462
      %p468 = scmp.eq.s32.totalorder %s36, 0
      %p469 = por %p467, %p468
      %p470 = scmp.ne.s32.totalorder %s459, %s462
      %p471 = scmp.eq.s32.totalorder %s41, 1
      %p472 = por %p470, %p471
      %p473 = scmp.ne.s32.totalorder %s462, %s463
      %p474 = scmp.eq.s32.totalorder %s41, 0
      %p475 = por %p473, %p474
      %p476 = scmp.ne.s32.totalorder %s462, %s463
      %p477 = scmp.eq.s32.totalorder %s42, 1
      %p478 = por %p476, %p477
      %p480 = scmp.ne.s32.totalorder %s463, %s479
      %p481 = scmp.eq.s32.totalorder %s42, 0
      %p482 = por %p480, %p481
      %p483 = scmp.le.s32.totalorder 1, %s36
      %p484 = scmp.lt.s32.totalorder %s36, 3
      %p485 = pnand %p483, %p484
      %p486 = pneg %p485
      // Predicated region
      $region9: #{tpu_custom_call.1} parent=5 // pred_check
        _
      $region10: #{tpu_custom_call.1} parent=5 // pred_check_branch
        %488 = sbr.rel (%p485) target = $region12
      $region11: #{tpu_custom_call.1} parent=5 // pred_region
        %s489 = ssub.s32 %s36, 1
        // Predicated region
        $region13: #{tpu_custom_call.1} parent=11 // pred_check
          %p490 = pneg %p132
        $region14: #{tpu_custom_call.1} parent=11 // pred_check_branch
          %492 = sbr.rel (%p490) target = $region16
        $region15: #{tpu_custom_call.1} parent=11 // pred_region
          %s494 = ssub.s32 1024, 1024
          %495 = vsyncadd [#allocation10], %s494
          %s496 = sshll.u32 [#allocation11], 4
          %s497 = int_to_ptr.vmem [resolvable:$true] %s496
          %502 = dma.hbm_to_vmem [thread:$0]  %s2, 1024, %s497, [#allocation10], 64, 64, 4
        $region16: #{tpu_custom_call.1} parent=11 // pred_fallthru
          _
        // Predicated region
        $region17: #{tpu_custom_call.1} parent=11 // pred_check
          %p503 = pneg %p153
        $region18: #{tpu_custom_call.1} parent=11 // pred_check_branch
          %505 = sbr.rel (%p503) target = $region20
        $region19: #{tpu_custom_call.1} parent=11 // pred_region
          _
        $region20: #{tpu_custom_call.1} parent=11 // pred_fallthru
          _
        // Predicated region
        $region21: #{tpu_custom_call.1} parent=11 // pred_check
          %p506 = pneg %p174
        $region22: #{tpu_custom_call.1} parent=11 // pred_check_branch
          %508 = sbr.rel (%p506) target = $region24
        $region23: #{tpu_custom_call.1} parent=11 // pred_region
          %s510 = ssub.s32 1024, 1024
          %511 = vsyncadd [#allocation13], %s510
          %s512 = sshll.u32 [#allocation12], 4
          %s513 = int_to_ptr.vmem [resolvable:$true] %s512
          %518 = dma.hbm_to_vmem [thread:$0]  %s4, 1024, %s513, [#allocation13], 64, 64, 4
        $region24: #{tpu_custom_call.1} parent=11 // pred_fallthru
          _
        // Predicated region
        $region25: #{tpu_custom_call.1} parent=11 // pred_check
          %p519 = pneg %p195
        $region26: #{tpu_custom_call.1} parent=11 // pred_check_branch
          %521 = sbr.rel (%p519) target = $region28
        $region27: #{tpu_custom_call.1} parent=11 // pred_region
          _
        $region28: #{tpu_custom_call.1} parent=11 // pred_fallthru
          _
        // Predicated region
        $region29: #{tpu_custom_call.1} parent=11 // pred_check
          %p522 = pneg %p216
        $region30: #{tpu_custom_call.1} parent=11 // pred_check_branch
          %524 = sbr.rel (%p522) target = $region32
        $region31: #{tpu_custom_call.1} parent=11 // pred_region
          %s526 = ssub.s32 1024, 1024
          %527 = vsyncadd [#allocation13], %s526
          %s528 = sshll.u32 [#allocation14], 4
          %s529 = int_to_ptr.vmem [resolvable:$true] %s528
          %534 = dma.hbm_to_vmem [thread:$0]  %s6, 1024, %s529, [#allocation13], 64, 64, 4
        $region32: #{tpu_custom_call.1} parent=11 // pred_fallthru
          _
        // Predicated region
        $region33: #{tpu_custom_call.1} parent=11 // pred_check
          %p535 = pneg %p237
        $region34: #{tpu_custom_call.1} parent=11 // pred_check_branch
          %537 = sbr.rel (%p535) target = $region36
        $region35: #{tpu_custom_call.1} parent=11 // pred_region
          _
        $region36: #{tpu_custom_call.1} parent=11 // pred_fallthru
          _
        // Predicated region
        $region37: #{tpu_custom_call.1} parent=11 // pred_check
          %p538 = pneg %p258
        $region38: #{tpu_custom_call.1} parent=11 // pred_check_branch
          %540 = sbr.rel (%p538) target = $region40
        $region39: #{tpu_custom_call.1} parent=11 // pred_region
          %s542 = ssub.s32 1024, 1024
          %543 = vsyncadd [#allocation16], %s542
          %s544 = sshll.u32 [#allocation15], 4
          %s545 = int_to_ptr.vmem [resolvable:$true] %s544
          %550 = dma.hbm_to_vmem [thread:$0]  %s8, 1024, %s545, [#allocation16], 64, 64, 4
        $region40: #{tpu_custom_call.1} parent=11 // pred_fallthru
          _
        // Predicated region
        $region41: #{tpu_custom_call.1} parent=11 // pred_check
          %p551 = pneg %p279
        $region42: #{tpu_custom_call.1} parent=11 // pred_check_branch
          %553 = sbr.rel (%p551) target = $region44
        $region43: #{tpu_custom_call.1} parent=11 // pred_region
          _
        $region44: #{tpu_custom_call.1} parent=11 // pred_fallthru
          _
        // Predicated region
        $region45: #{tpu_custom_call.1} parent=11 // pred_check
          %p554 = pneg %p300
        $region46: #{tpu_custom_call.1} parent=11 // pred_check_branch
          %556 = sbr.rel (%p554) target = $region48
        $region47: #{tpu_custom_call.1} parent=11 // pred_region
          _
        $region48: #{tpu_custom_call.1} parent=11 // pred_fallthru
          _
        // Predicated region
        $region49: #{tpu_custom_call.1} parent=11 // pred_check
          %p557 = pneg %p321
        $region50: #{tpu_custom_call.1} parent=11 // pred_check_branch
          %559 = sbr.rel (%p557) target = $region52
        $region51: #{tpu_custom_call.1} parent=11 // pred_region
          _
        $region52: #{tpu_custom_call.1} parent=11 // pred_fallthru
          _
        // Predicated region
        $region53: #{tpu_custom_call.1} parent=11 // pred_check
          %p560 = pneg %p342
        $region54: #{tpu_custom_call.1} parent=11 // pred_check_branch
          %562 = sbr.rel (%p560) target = $region56
        $region55: #{tpu_custom_call.1} parent=11 // pred_region
          %s564 = ssub.s32 1024, 1024
          %565 = vsyncadd [#allocation16], %s564
          %s566 = sshll.u32 [#allocation17], 4
          %s567 = int_to_ptr.vmem [resolvable:$true] %s566
          %572 = dma.hbm_to_vmem [thread:$0]  %s12, 1024, %s567, [#allocation16], 64, 64, 4
        $region56: #{tpu_custom_call.1} parent=11 // pred_fallthru
          _
        // Predicated region
        $region57: #{tpu_custom_call.1} parent=11 // pred_check
          %p573 = pneg %p363
        $region58: #{tpu_custom_call.1} parent=11 // pred_check_branch
          %575 = sbr.rel (%p573) target = $region60
        $region59: #{tpu_custom_call.1} parent=11 // pred_region
          _
        $region60: #{tpu_custom_call.1} parent=11 // pred_fallthru
          _
        // Predicated region
        $region61: #{tpu_custom_call.1} parent=11 // pred_check
          %p576 = pneg %p384
        $region62: #{tpu_custom_call.1} parent=11 // pred_check_branch
          %578 = sbr.rel (%p576) target = $region64
        $region63: #{tpu_custom_call.1} parent=11 // pred_region
          %s580 = ssub.s32 1024, 1024
          %581 = vsyncadd [#allocation19], %s580
          %s582 = sshll.u32 [#allocation18], 4
          %s583 = int_to_ptr.vmem [resolvable:$true] %s582
          %588 = dma.hbm_to_vmem [thread:$0]  %s14, 1024, %s583, [#allocation19], 64, 64, 4
        $region64: #{tpu_custom_call.1} parent=11 // pred_fallthru
          _
        // Predicated region
        $region65: #{tpu_custom_call.1} parent=11 // pred_check
          %p589 = pneg %p405
        $region66: #{tpu_custom_call.1} parent=11 // pred_check_branch
          %591 = sbr.rel (%p589) target = $region68
        $region67: #{tpu_custom_call.1} parent=11 // pred_region
          _
        $region68: #{tpu_custom_call.1} parent=11 // pred_fallthru
          _
        // Predicated region
        $region69: #{tpu_custom_call.1} parent=11 // pred_check
          %p592 = pneg %p426
        $region70: #{tpu_custom_call.1} parent=11 // pred_check_branch
          %594 = sbr.rel (%p592) target = $region72
        $region71: #{tpu_custom_call.1} parent=11 // pred_region
          _
        $region72: #{tpu_custom_call.1} parent=11 // pred_fallthru
          _
        // Predicated region
        $region73: #{tpu_custom_call.1} parent=11 // pred_check
          %p595 = pneg %p447
        $region74: #{tpu_custom_call.1} parent=11 // pred_check_branch
          %597 = sbr.rel (%p595) target = $region76
        $region75: #{tpu_custom_call.1} parent=11 // pred_region
          _
        $region76: #{tpu_custom_call.1} parent=11 // pred_fallthru
          _
      $region12: #{tpu_custom_call.1} parent=5 // pred_fallthru
        _
      %p598 = scmp.lt.s32.totalorder %s36, 2
      // Predicated region
      $region77: #{tpu_custom_call.1} parent=5 // pred_check
        %p599 = pneg %p598
      $region78: #{tpu_custom_call.1} parent=5 // pred_check_branch
        %601 = sbr.rel (%p599) target = $region80
      $region79: #{tpu_custom_call.1} parent=5 // pred_region
        // Predicated region
        $region81: #{tpu_custom_call.1} parent=79 // pred_check
          %p602 = pneg %p77
        $region82: #{tpu_custom_call.1} parent=79 // pred_check_branch
          %604 = sbr.rel (%p602) target = $region84
        $region83: #{tpu_custom_call.1} parent=79 // pred_region
          %s605 = sand.u32 %s67, 1
          %s606 = scalar_lea.sflag [#allocation7], %s605
          %s607 = sand.u32 %s67, 1
          %s608 = smul.addr %s607, 8
          %s609 = scalar_lea.vmem [#allocation6], %s608
          %s611 = ssub.s32 128, 128
          %612 = vsyncadd %s606, %s611
          %s613 = sadd.s32 %s44, %s43
          %s614 = smul.addr %s613, 128
          %s615 = scalar_lea.hbm %s0, %s614
          %s617 = sshll.u32 %s609, 4
          %s618 = int_to_ptr.vmem [resolvable:$true] %s617
          %620 = dma.hbm_to_vmem [thread:$0]  %s615, 128, %s618, %s606
        $region84: #{tpu_custom_call.1} parent=79 // pred_fallthru
          _
        // Predicated region
        $region85: #{tpu_custom_call.1} parent=79 // pred_check
          %p621 = pneg %p105
        $region86: #{tpu_custom_call.1} parent=79 // pred_check_branch
          %623 = sbr.rel (%p621) target = $region88
        $region87: #{tpu_custom_call.1} parent=79 // pred_region
          %s624 = sand.u32 %s36, 1
          %s625 = scalar_lea.sflag [#allocation10], %s624
          %s626 = sand.u32 %s95, 1
          %s627 = smul.addr %s626, 8
          %s628 = scalar_lea.vmem [#allocation9], %s627
          %s630 = ssub.s32 128, 128
          %631 = vsyncadd %s625, %s630
          %s632 = sadd.s32 %s45, %s43
          %s633 = smul.addr %s632, 128
          %s634 = scalar_lea.hbm %s1, %s633
          %s636 = sshll.u32 %s628, 4
          %s637 = int_to_ptr.vmem [resolvable:$true] %s636
          %639 = dma.hbm_to_vmem [thread:$0]  %s634, 128, %s637, %s625
        $region88: #{tpu_custom_call.1} parent=79 // pred_fallthru
          _
      $region80: #{tpu_custom_call.1} parent=5 // pred_fallthru
        _
      %p640 = scmp.le.s32.totalorder 1, %s36
      %p641 = scmp.lt.s32.totalorder %s36, 3
      %p642 = pnand %p640, %p641
      %p643 = pneg %p642
      // Predicated region
      $region89: #{tpu_custom_call.1} parent=5 // pred_check
        _
      $region90: #{tpu_custom_call.1} parent=5 // pred_check_branch
        %645 = sbr.rel (%p642) target = $region92
      $region91: #{tpu_custom_call.1} parent=5 // pred_region
        %s646 = ssub.s32 %s36, 1
        %s647 = sand.u32 %s70, 1
        %s648 = scalar_lea.sflag [#allocation7], %s647
        %s649 = sand.u32 %s70, 1
        %s650 = smul.addr %s649, 8
        %s651 = scalar_lea.vmem [#allocation6], %s650
        // Predicated region
        $region93: #{tpu_custom_call.1} parent=91 // pred_check
          %p652 = pneg %p83
        $region94: #{tpu_custom_call.1} parent=91 // pred_check_branch
          %654 = sbr.rel (%p652) target = $region96
        $region95: #{tpu_custom_call.1} parent=91 // pred_region
          %655 = dma.done %s648, 128
        $region96: #{tpu_custom_call.1} parent=91 // pred_fallthru
          _
        %s656 = sand.u32 %s41, 1
        %s657 = scalar_lea.sflag [#allocation10], %s656
        %s658 = sand.u32 %s98, 1
        %s659 = smul.addr %s658, 8
        %s660 = scalar_lea.vmem [#allocation9], %s659
        // Predicated region
        $region97: #{tpu_custom_call.1} parent=91 // pred_check
          %p661 = pneg %p111
        $region98: #{tpu_custom_call.1} parent=91 // pred_check_branch
          %663 = sbr.rel (%p661) target = $region100
        $region99: #{tpu_custom_call.1} parent=91 // pred_region
          %664 = dma.done %s657, 128
        $region100: #{tpu_custom_call.1} parent=91 // pred_fallthru
          _
        // Predicated region
        $region101: #{tpu_custom_call.1} parent=91 // pred_check
          %p665 = pneg %p132
        $region102: #{tpu_custom_call.1} parent=91 // pred_check_branch
          %667 = sbr.rel (%p665) target = $region104
        $region103: #{tpu_custom_call.1} parent=91 // pred_region
          %668 = dma.done [#allocation10], 1024
        $region104: #{tpu_custom_call.1} parent=91 // pred_fallthru
          _
        // Predicated region
        $region105: #{tpu_custom_call.1} parent=91 // pred_check
          %p669 = pneg %p174
        $region106: #{tpu_custom_call.1} parent=91 // pred_check_branch
          %671 = sbr.rel (%p669) target = $region108
        $region107: #{tpu_custom_call.1} parent=91 // pred_region
          %672 = dma.done [#allocation13], 1024
        $region108: #{tpu_custom_call.1} parent=91 // pred_fallthru
          _
        // Predicated region
        $region109: #{tpu_custom_call.1} parent=91 // pred_check
          %p673 = pneg %p216
        $region110: #{tpu_custom_call.1} parent=91 // pred_check_branch
          %675 = sbr.rel (%p673) target = $region112
        $region111: #{tpu_custom_call.1} parent=91 // pred_region
          %676 = dma.done [#allocation13], 1024
        $region112: #{tpu_custom_call.1} parent=91 // pred_fallthru
          _
        // Predicated region
        $region113: #{tpu_custom_call.1} parent=91 // pred_check
          %p677 = pneg %p258
        $region114: #{tpu_custom_call.1} parent=91 // pred_check_branch
          %679 = sbr.rel (%p677) target = $region116
        $region115: #{tpu_custom_call.1} parent=91 // pred_region
          %680 = dma.done [#allocation16], 1024
        $region116: #{tpu_custom_call.1} parent=91 // pred_fallthru
          _
        // Predicated region
        $region117: #{tpu_custom_call.1} parent=91 // pred_check
          %p681 = pneg %p342
        $region118: #{tpu_custom_call.1} parent=91 // pred_check_branch
          %683 = sbr.rel (%p681) target = $region120
        $region119: #{tpu_custom_call.1} parent=91 // pred_region
          %684 = dma.done [#allocation16], 1024
        $region120: #{tpu_custom_call.1} parent=91 // pred_fallthru
          _
        // Predicated region
        $region121: #{tpu_custom_call.1} parent=91 // pred_check
          %p685 = pneg %p384
        $region122: #{tpu_custom_call.1} parent=91 // pred_check_branch
          %687 = sbr.rel (%p685) target = $region124
        $region123: #{tpu_custom_call.1} parent=91 // pred_region
          %688 = dma.done [#allocation19], 1024
        $region124: #{tpu_custom_call.1} parent=91 // pred_fallthru
          _
        %s689 = sand.u32 %s70, 1
        %s690 = scalar_lea.sflag [#allocation7], %s689
        %s691 = sand.u32 %s70, 1
        %s692 = smul.addr %s691, 8
        %s693 = scalar_lea.vmem [#allocation6], %s692
        %p694 = pneg %p83
        %p695 = pneg %p80
        %s696 = sand.u32 %s41, 1
        %s697 = scalar_lea.sflag [#allocation10], %s696
        %s698 = sand.u32 %s98, 1
        %s699 = smul.addr %s698, 8
        %s700 = scalar_lea.vmem [#allocation9], %s699
        %p701 = pneg %p111
        %p702 = pneg %p108
        %p703 = pneg %p132
        %p704 = pneg %p129
        %p705 = pneg %p153
        %p706 = pneg %p150
        %p707 = pneg %p174
        %p708 = pneg %p171
        %p709 = pneg %p195
        %p710 = pneg %p192
        %p711 = pneg %p216
        %p712 = pneg %p213
        %p713 = pneg %p237
        %p714 = pneg %p234
        %p715 = pneg %p258
        %p716 = pneg %p255
        %p717 = pneg %p279
        %p718 = pneg %p276
        %p719 = pneg %p300
        %p720 = pneg %p297
        %p721 = pneg %p321
        %p722 = pneg %p318
        %p723 = pneg %p342
        %p724 = pneg %p339
        %p725 = pneg %p363
        %p726 = pneg %p360
        %p727 = pneg %p384
        %p728 = pneg %p381
        %p729 = pneg %p405
        %p730 = pneg %p402
        %p731 = pneg %p426
        %p732 = pneg %p423
        %p733 = pneg %p447
        %p734 = pneg %p444
        %p735 = pneg %p475
        %p736 = pneg %p472
        %s737 = sand.u32 %s462, 1
        %s738 = scalar_lea.sflag [#allocation8], %s737
        %s739 = sand.u32 %s462, 1
        %s740 = smul.addr %s739, 8
        %s741 = scalar_lea.vmem [#allocation20], %s740
        %p743 = scmp.eq.s32.totalorder %s48, 0
        // Predicated region
        $region125: #{tpu_custom_call.1} parent=91 // pred_check
          %p744 = pneg %p743
        $region126: #{tpu_custom_call.1} parent=91 // pred_check_branch
          %746 = sbr.rel (%p744) target = $region128
        $region127: #{tpu_custom_call.1} parent=91 // pred_region
          %v747 = vld [vmem:[%s651] sm:$0xff]
          %v748 = vpack.c.bf16 %v747, %v747
          %v749 = vld [vmem:[#allocation11] sm:$0xf]
          %v750 = vld [vmem:[#allocation11 + $0x4] sm:$0xf]
          %v751 = vld [vmem:[#allocation11 + $0x8] sm:$0xf]
          %v752 = vld [vmem:[#allocation11 + $0xc] sm:$0xf]
          %v753 = vld [vmem:[#allocation11 + $0x10] sm:$0xf]
          %v754 = vld [vmem:[#allocation11 + $0x14] sm:$0xf]
          %v755 = vld [vmem:[#allocation11 + $0x18] sm:$0xf]
          %v756 = vld [vmem:[#allocation11 + $0x1c] sm:$0xf]
          %v757 = vld [vmem:[#allocation11 + $0x20] sm:$0xf]
          %v758 = vld [vmem:[#allocation11 + $0x24] sm:$0xf]
          %v759 = vld [vmem:[#allocation11 + $0x28] sm:$0xf]
          %v760 = vld [vmem:[#allocation11 + $0x2c] sm:$0xf]
          %v761 = vld [vmem:[#allocation11 + $0x30] sm:$0xf]
          %v762 = vld [vmem:[#allocation11 + $0x34] sm:$0xf]
          %v763 = vld [vmem:[#allocation11 + $0x38] sm:$0xf]
          %v764 = vld [vmem:[#allocation11 + $0x3c] sm:$0xf]
          %v765 = vld [vmem:[%s3] sm:$0x1]
          %v767 = vlaneseq
          %v768 = vshrl.u32 %v767, 7
          %v769 = vsub.s32 0, %v768
          %v770 = vrot.slane %v765, %v769
          %v788 = vunpack.c.l.b16 %v749
          %v789 = vunpack.c.l.b16 %v750
          %v790 = vunpack.c.l.b16 %v751
          %v791 = vunpack.c.l.b16 %v752
          %v792 = vunpack.c.l.b16 %v753
          %v793 = vunpack.c.l.b16 %v754
          %v794 = vunpack.c.l.b16 %v755
          %v795 = vunpack.c.l.b16 %v756
          %v796 = vunpack.c.l.b16 %v757
          %v797 = vunpack.c.l.b16 %v758
          %v798 = vunpack.c.l.b16 %v759
          %v799 = vunpack.c.l.b16 %v760
          %v800 = vunpack.c.l.b16 %v761
          %v801 = vunpack.c.l.b16 %v762
          %v802 = vunpack.c.l.b16 %v763
          %v803 = vunpack.c.l.b16 %v764
          %v804 = vpack.c.b16 %v789, %v788
          %v805 = vpack.c.b16 %v791, %v790
          %v806 = vpack.c.b16 %v793, %v792
          %v807 = vpack.c.b16 %v795, %v794
          %v808 = vpack.c.b16 %v797, %v796
          %v809 = vpack.c.b16 %v799, %v798
          %v810 = vpack.c.b16 %v801, %v800
          %v811 = vpack.c.b16 %v803, %v802
          %820 = vmatprep.subr.bf16.mxu0 0
          %821 = vmatpush1.bf16.msra.mxu0 %v804
          %822 = vmatprep.subr.bf16.mxu0 0
          %823 = vmatpush1.bf16.msra.mxu0 %v805
          %824 = vmatprep.subr.bf16.mxu0 0
          %825 = vmatpush1.bf16.msra.mxu0 %v806
          %826 = vmatprep.subr.bf16.mxu0 0
          %827 = vmatpush1.bf16.msra.mxu0 %v807
          %828 = vmatprep.subr.bf16.mxu0 0
          %829 = vmatpush1.bf16.msra.mxu0 %v808
          %830 = vmatprep.subr.bf16.mxu0 0
          %831 = vmatpush1.bf16.msra.mxu0 %v809
          %832 = vmatprep.subr.bf16.mxu0 0
          %833 = vmatpush1.bf16.msra.mxu0 %v810
          %834 = vmatprep.subr.bf16.mxu0 0
          %835 = vmatpush1.bf16.msra.mxu0 %v811
          %836 = vmatprep.subr.bf16.mxu0 0
          %837 = vmatpush1.bf16.msra.mxu0 0
          %838 = vmatprep.subr.bf16.mxu0 0
          %839 = vmatpush1.bf16.msra.mxu0 0
          %840 = vmatprep.subr.bf16.mxu0 0
          %841 = vmatpush1.bf16.msra.mxu0 0
          %842 = vmatprep.subr.bf16.mxu0 0
          %843 = vmatpush1.bf16.msra.mxu0 0
          %844 = vmatprep.subr.bf16.mxu0 0
          %845 = vmatpush1.bf16.msra.mxu0 0
          %846 = vmatprep.subr.bf16.mxu0 0
          %847 = vmatpush1.bf16.msra.mxu0 0
          %848 = vmatprep.subr.bf16.mxu0 0
          %849 = vmatpush1.bf16.msra.mxu0 0
          %850 = vmatprep.subr.bf16.mxu0 0
          %851 = vmatpush1.bf16.msra.mxu0 0
          %852 = vmatprep.mubr.bf16.mxu0 0
          %853 = vmatmul.mubr.bf16.gmra.mrb[0].mxu0 %v748
          %v854 = vpop.f32.mrb[0].mxu0
          %v855 = vadd.f32 %v770, %v854
          %v856 = vpop.f32.mrb[0].mxu0
          %v857 = vpop.f32.mrb[0].mxu0
          %v858 = vpop.f32.mrb[0].mxu0
          %859 = vdwg.mxu0
          %v860 = vmul.f32 %v855, 0.088388346
          %v861 = vpack.c.bf16 %v860, %v860
          %862 = vst [vmem:[#allocation2] sm:$0xf] %v861
          %vm863 = vcmask 7168
          %864 = vst.msk [vmem:[#allocation3] sm:$0xff] %vm863, -inf
          %865 = vst.msk [vmem:[#allocation4] sm:$0xff] %vm863, 0.0
          %866 = vst [vmem:[#allocation5] sm:$0xff] 0.0
        $region128: #{tpu_custom_call.1} parent=91 // pred_fallthru
          _
        %v867 = vld [vmem:[%s660] sm:$0xff]
        %v868 = vpack.c.bf16 %v867, %v867
        %v869 = vld [vmem:[#allocation12] sm:$0xf]
        %v870 = vld [vmem:[#allocation12 + $0x4] sm:$0xf]
        %v871 = vld [vmem:[#allocation12 + $0x8] sm:$0xf]
        %v872 = vld [vmem:[#allocation12 + $0xc] sm:$0xf]
        %v873 = vld [vmem:[#allocation12 + $0x10] sm:$0xf]
        %v874 = vld [vmem:[#allocation12 + $0x14] sm:$0xf]
        %v875 = vld [vmem:[#allocation12 + $0x18] sm:$0xf]
        %v876 = vld [vmem:[#allocation12 + $0x1c] sm:$0xf]
        %v877 = vld [vmem:[#allocation12 + $0x20] sm:$0xf]
        %v878 = vld [vmem:[#allocation12 + $0x24] sm:$0xf]
        %v879 = vld [vmem:[#allocation12 + $0x28] sm:$0xf]
        %v880 = vld [vmem:[#allocation12 + $0x2c] sm:$0xf]
        %v881 = vld [vmem:[#allocation12 + $0x30] sm:$0xf]
        %v882 = vld [vmem:[#allocation12 + $0x34] sm:$0xf]
        %v883 = vld [vmem:[#allocation12 + $0x38] sm:$0xf]
        %v884 = vld [vmem:[#allocation12 + $0x3c] sm:$0xf]
        %v885 = vld [vmem:[%s5] sm:$0x1]
        %v887 = vlaneseq
        %v888 = vshrl.u32 %v887, 7
        %v889 = vsub.s32 0, %v888
        %v890 = vrot.slane %v885, %v889
        %v908 = vunpack.c.l.b16 %v869
        %v909 = vunpack.c.l.b16 %v870
        %v910 = vunpack.c.l.b16 %v871
        %v911 = vunpack.c.l.b16 %v872
        %v912 = vunpack.c.l.b16 %v873
        %v913 = vunpack.c.l.b16 %v874
        %v914 = vunpack.c.l.b16 %v875
        %v915 = vunpack.c.l.b16 %v876
        %v916 = vunpack.c.l.b16 %v877
        %v917 = vunpack.c.l.b16 %v878
        %v918 = vunpack.c.l.b16 %v879
        %v919 = vunpack.c.l.b16 %v880
        %v920 = vunpack.c.l.b16 %v881
        %v921 = vunpack.c.l.b16 %v882
        %v922 = vunpack.c.l.b16 %v883
        %v923 = vunpack.c.l.b16 %v884
        %v924 = vpack.c.b16 %v909, %v908
        %v925 = vpack.c.b16 %v911, %v910
        %v926 = vpack.c.b16 %v913, %v912
        %v927 = vpack.c.b16 %v915, %v914
        %v928 = vpack.c.b16 %v917, %v916
        %v929 = vpack.c.b16 %v919, %v918
        %v930 = vpack.c.b16 %v921, %v920
        %v931 = vpack.c.b16 %v923, %v922
        %940 = vmatprep.subr.bf16.mxu0 0
        %941 = vmatpush1.bf16.msra.mxu0 %v924
        %942 = vmatprep.subr.bf16.mxu0 0
        %943 = vmatpush1.bf16.msra.mxu0 %v925
        %944 = vmatprep.subr.bf16.mxu0 0
        %945 = vmatpush1.bf16.msra.mxu0 %v926
        %946 = vmatprep.subr.bf16.mxu0 0
        %947 = vmatpush1.bf16.msra.mxu0 %v927
        %948 = vmatprep.subr.bf16.mxu0 0
        %949 = vmatpush1.bf16.msra.mxu0 %v928
        %950 = vmatprep.subr.bf16.mxu0 0
        %951 = vmatpush1.bf16.msra.mxu0 %v929
        %952 = vmatprep.subr.bf16.mxu0 0
        %953 = vmatpush1.bf16.msra.mxu0 %v930
        %954 = vmatprep.subr.bf16.mxu0 0
        %955 = vmatpush1.bf16.msra.mxu0 %v931
        %956 = vmatprep.subr.bf16.mxu0 0
        %957 = vmatpush1.bf16.msra.mxu0 0
        %958 = vmatprep.subr.bf16.mxu0 0
        %959 = vmatpush1.bf16.msra.mxu0 0
        %960 = vmatprep.subr.bf16.mxu0 0
        %961 = vmatpush1.bf16.msra.mxu0 0
        %962 = vmatprep.subr.bf16.mxu0 0
        %963 = vmatpush1.bf16.msra.mxu0 0
        %964 = vmatprep.subr.bf16.mxu0 0
        %965 = vmatpush1.bf16.msra.mxu0 0
        %966 = vmatprep.subr.bf16.mxu0 0
        %967 = vmatpush1.bf16.msra.mxu0 0
        %968 = vmatprep.subr.bf16.mxu0 0
        %969 = vmatpush1.bf16.msra.mxu0 0
        %970 = vmatprep.subr.bf16.mxu0 0
        %971 = vmatpush1.bf16.msra.mxu0 0
        %972 = vmatprep.mubr.bf16.mxu0 0
        %973 = vmatmul.mubr.bf16.gmra.mrb[0].mxu0 %v868
        %v974 = vpop.f32.mrb[0].mxu0
        %v975 = vadd.f32 %v890, %v974
        %v976 = vpop.f32.mrb[0].mxu0
        %v977 = vpop.f32.mrb[0].mxu0
        %v978 = vpop.f32.mrb[0].mxu0
        %979 = vdwg.mxu0
        %v980 = vpack.c.bf16 %v975, %v975
        %v981 = vld [vmem:[#allocation14] sm:$0xf]
        %v982 = vld [vmem:[#allocation14 + $0x4] sm:$0xf]
        %v983 = vld [vmem:[#allocation14 + $0x8] sm:$0xf]
        %v984 = vld [vmem:[#allocation14 + $0xc] sm:$0xf]
        %v985 = vld [vmem:[#allocation14 + $0x10] sm:$0xf]
        %v986 = vld [vmem:[#allocation14 + $0x14] sm:$0xf]
        %v987 = vld [vmem:[#allocation14 + $0x18] sm:$0xf]
        %v988 = vld [vmem:[#allocation14 + $0x1c] sm:$0xf]
        %v989 = vld [vmem:[#allocation14 + $0x20] sm:$0xf]
        %v990 = vld [vmem:[#allocation14 + $0x24] sm:$0xf]
        %v991 = vld [vmem:[#allocation14 + $0x28] sm:$0xf]
        %v992 = vld [vmem:[#allocation14 + $0x2c] sm:$0xf]
        %v993 = vld [vmem:[#allocation14 + $0x30] sm:$0xf]
        %v994 = vld [vmem:[#allocation14 + $0x34] sm:$0xf]
        %v995 = vld [vmem:[#allocation14 + $0x38] sm:$0xf]
        %v996 = vld [vmem:[#allocation14 + $0x3c] sm:$0xf]
        %v997 = vld [vmem:[%s7] sm:$0x1]
        %v999 = vlaneseq
        %v1000 = vshrl.u32 %v999, 7
        %v1001 = vsub.s32 0, %v1000
        %v1002 = vrot.slane %v997, %v1001
        %v1020 = vunpack.c.l.b16 %v981
        %v1021 = vunpack.c.l.b16 %v982
        %v1022 = vunpack.c.l.b16 %v983
        %v1023 = vunpack.c.l.b16 %v984
        %v1024 = vunpack.c.l.b16 %v985
        %v1025 = vunpack.c.l.b16 %v986
        %v1026 = vunpack.c.l.b16 %v987
        %v1027 = vunpack.c.l.b16 %v988
        %v1028 = vunpack.c.l.b16 %v989
        %v1029 = vunpack.c.l.b16 %v990
        %v1030 = vunpack.c.l.b16 %v991
        %v1031 = vunpack.c.l.b16 %v992
        %v1032 = vunpack.c.l.b16 %v993
        %v1033 = vunpack.c.l.b16 %v994
        %v1034 = vunpack.c.l.b16 %v995
        %v1035 = vunpack.c.l.b16 %v996
        %v1036 = vpack.c.b16 %v1021, %v1020
        %v1037 = vpack.c.b16 %v1023, %v1022
        %v1038 = vpack.c.b16 %v1025, %v1024
        %v1039 = vpack.c.b16 %v1027, %v1026
        %v1040 = vpack.c.b16 %v1029, %v1028
        %v1041 = vpack.c.b16 %v1031, %v1030
        %v1042 = vpack.c.b16 %v1033, %v1032
        %v1043 = vpack.c.b16 %v1035, %v1034
        %1052 = vmatprep.subr.bf16.mxu0 0
        %1053 = vmatpush1.bf16.msra.mxu0 %v1036
        %1054 = vmatprep.subr.bf16.mxu0 0
        %1055 = vmatpush1.bf16.msra.mxu0 %v1037
        %1056 = vmatprep.subr.bf16.mxu0 0
        %1057 = vmatpush1.bf16.msra.mxu0 %v1038
        %1058 = vmatprep.subr.bf16.mxu0 0
        %1059 = vmatpush1.bf16.msra.mxu0 %v1039
        %1060 = vmatprep.subr.bf16.mxu0 0
        %1061 = vmatpush1.bf16.msra.mxu0 %v1040
        %1062 = vmatprep.subr.bf16.mxu0 0
        %1063 = vmatpush1.bf16.msra.mxu0 %v1041
        %1064 = vmatprep.subr.bf16.mxu0 0
        %1065 = vmatpush1.bf16.msra.mxu0 %v1042
        %1066 = vmatprep.subr.bf16.mxu0 0
        %1067 = vmatpush1.bf16.msra.mxu0 %v1043
        %1068 = vmatprep.subr.bf16.mxu0 0
        %1069 = vmatpush1.bf16.msra.mxu0 0
        %1070 = vmatprep.subr.bf16.mxu0 0
        %1071 = vmatpush1.bf16.msra.mxu0 0
        %1072 = vmatprep.subr.bf16.mxu0 0
        %1073 = vmatpush1.bf16.msra.mxu0 0
        %1074 = vmatprep.subr.bf16.mxu0 0
        %1075 = vmatpush1.bf16.msra.mxu0 0
        %1076 = vmatprep.subr.bf16.mxu0 0
        %1077 = vmatpush1.bf16.msra.mxu0 0
        %1078 = vmatprep.subr.bf16.mxu0 0
        %1079 = vmatpush1.bf16.msra.mxu0 0
        %1080 = vmatprep.subr.bf16.mxu0 0
        %1081 = vmatpush1.bf16.msra.mxu0 0
        %1082 = vmatprep.subr.bf16.mxu0 0
        %1083 = vmatpush1.bf16.msra.mxu0 0
        %1084 = vmatprep.mubr.bf16.mxu0 0
        %1085 = vmatmul.mubr.bf16.gmra.mrb[0].mxu0 %v868
        %v1086 = vpop.f32.mrb[0].mxu0
        %v1087 = vadd.f32 %v1002, %v1086
        %v1088 = vpop.f32.mrb[0].mxu0
        %v1089 = vpop.f32.mrb[0].mxu0
        %v1090 = vpop.f32.mrb[0].mxu0
        %1091 = vdwg.mxu0
        %v1092 = vpack.c.bf16 %v1087, %v1087
        %v1093 = vld [vmem:[#allocation2] sm:$0xf]
        %1094 = vmatprep.subr.bf16.mxu0 0
        %1095 = vmatpush1.bf16.xpose.msra.mxu0 %v980
        %1096 = vmatprep.subr.bf16.mxu0 0
        %1097 = vmatpush1.bf16.xpose.msra.mxu0 0
        %1098 = vmatprep.subr.bf16.mxu0 0
        %1099 = vmatpush1.bf16.xpose.msra.mxu0 0
        %1100 = vmatprep.subr.bf16.mxu0 0
        %1101 = vmatpush1.bf16.xpose.msra.mxu0 0
        %1102 = vmatprep.subr.bf16.mxu0 0
        %1103 = vmatpush1.bf16.xpose.msra.mxu0 0
        %1104 = vmatprep.subr.bf16.mxu0 0
        %1105 = vmatpush1.bf16.xpose.msra.mxu0 0
        %1106 = vmatprep.subr.bf16.mxu0 0
        %1107 = vmatpush1.bf16.xpose.msra.mxu0 0
        %1108 = vmatprep.subr.bf16.mxu0 0
        %1109 = vmatpush1.bf16.xpose.msra.mxu0 0
        %1110 = vmatprep.subr.bf16.mxu0 0
        %1111 = vmatpush1.bf16.xpose.msra.mxu0 0
        %1112 = vmatprep.subr.bf16.mxu0 0
        %1113 = vmatpush1.bf16.xpose.msra.mxu0 0
        %1114 = vmatprep.subr.bf16.mxu0 0
        %1115 = vmatpush1.bf16.xpose.msra.mxu0 0
        %1116 = vmatprep.subr.bf16.mxu0 0
        %1117 = vmatpush1.bf16.xpose.msra.mxu0 0
        %1118 = vmatprep.subr.bf16.mxu0 0
        %1119 = vmatpush1.bf16.xpose.msra.mxu0 0
        %1120 = vmatprep.subr.bf16.mxu0 0
        %1121 = vmatpush1.bf16.xpose.msra.mxu0 0
        %1122 = vmatprep.subr.bf16.mxu0 0
        %1123 = vmatpush1.bf16.xpose.msra.mxu0 0
        %1124 = vmatprep.subr.bf16.mxu0 0
        %1125 = vmatpush1.bf16.xpose.msra.mxu0 0
        %1126 = vmatprep.mubr.bf16.mxu0 0
        %1127 = vmatmul.mubr.bf16.gmra.mrb[0].mxu0 %v1093
        %v1128 = vpop.f32.mrb[0].mxu0
        %v1129 = vadd.f32 0.0, %v1128
        %v1130 = vpop.f32.mrb[0].mxu0
        %v1131 = vpop.f32.mrb[0].mxu0
        %v1132 = vpop.f32.mrb[0].mxu0
        %1133 = vdwg.mxu0
        %v1134 = vld [vmem:[#allocation3] sm:$0xff]
        %vm1135 = vcmask 64512
        %v1136 = vsel %vm1135, %v1129, -inf
        %1137 = vmax.xlane.f32.xlu0 %v1136
        %v1138 = vpop.xlane.xlu0 %1137
        %v1139 = vmax.f32 %v1134, %v1138
        %v1140 = vsub.f32 %v1134, %v1139
        %v1141 = vmul.f32 %v1140, 1.442695
        %v1142 = vpow.pop %v1141
        %1144 = vset.pattern.permute.xlu0 0
        %1145 = vperm.xlu0 %1144, %v1139
        %v1146 = vpop.permute.xlu0 %1145
        %v1148 = vsub.f32 %v1129, %v1146
        %v1149 = vmul.f32 %v1148, 1.442695
        %v1150 = vpow.pop %v1149
        %v1151 = vld [vmem:[#allocation4] sm:$0xff]
        %v1152 = vmul.f32 %v1142, %v1151
        %v1153 = vsel %vm1135, %v1150, 0.0
        %1154 = vadd.xlane.f32.xlu0 %v1153
        %v1155 = vpop.xlane.xlu0 %1154
        %v1156 = vadd.f32 %v1152, %v1155
        %vm1157 = vcmask 7168
        %1158 = vst.msk [vmem:[#allocation4] sm:$0xff] %vm1157, %v1156
        %v1159 = vld [vmem:[#allocation5] sm:$0xff]
        %1161 = vset.pattern.permute.xlu0 0
        %1162 = vperm.xlu0 %1161, %v1142
        %v1163 = vpop.permute.xlu0 %1162
        %v1165 = vmul.f32 %v1163, %v1159
        %v1166 = vpack.c.bf16 %v1150, %v1150
        %v1168 = vsel %vm1135, %v1166, 0
        %vm1170 = vcmask 1043456
        %v1172 = vsel %vm1170, %v1092, 0
        %1174 = vmatprep.subr.bf16.mxu0 0
        %1175 = vmatpush1.bf16.msra.mxu0 %v1172
        %1176 = vmatprep.subr.bf16.mxu0 0
        %1177 = vmatpush1.bf16.msra.mxu0 0
        %1178 = vmatprep.subr.bf16.mxu0 0
        %1179 = vmatpush1.bf16.msra.mxu0 0
        %1180 = vmatprep.subr.bf16.mxu0 0
        %1181 = vmatpush1.bf16.msra.mxu0 0
        %1182 = vmatprep.subr.bf16.mxu0 0
        %1183 = vmatpush1.bf16.msra.mxu0 0
        %1184 = vmatprep.subr.bf16.mxu0 0
        %1185 = vmatpush1.bf16.msra.mxu0 0
        %1186 = vmatprep.subr.bf16.mxu0 0
        %1187 = vmatpush1.bf16.msra.mxu0 0
        %1188 = vmatprep.subr.bf16.mxu0 0
        %1189 = vmatpush1.bf16.msra.mxu0 0
        %1190 = vmatprep.subr.bf16.mxu0 0
        %1191 = vmatpush1.bf16.msra.mxu0 0
        %1192 = vmatprep.subr.bf16.mxu0 0
        %1193 = vmatpush1.bf16.msra.mxu0 0
        %1194 = vmatprep.subr.bf16.mxu0 0
        %1195 = vmatpush1.bf16.msra.mxu0 0
        %1196 = vmatprep.subr.bf16.mxu0 0
        %1197 = vmatpush1.bf16.msra.mxu0 0
        %1198 = vmatprep.subr.bf16.mxu0 0
        %1199 = vmatpush1.bf16.msra.mxu0 0
        %1200 = vmatprep.subr.bf16.mxu0 0
        %1201 = vmatpush1.bf16.msra.mxu0 0
        %1202 = vmatprep.subr.bf16.mxu0 0
        %1203 = vmatpush1.bf16.msra.mxu0 0
        %1204 = vmatprep.subr.bf16.mxu0 0
        %1205 = vmatpush1.bf16.msra.mxu0 0
        %1206 = vmatprep.mubr.bf16.mxu0 0
        %1207 = vmatmul.mubr.bf16.gmra.mrb[0].mxu0 %v1168
        %v1208 = vpop.f32.mrb[0].mxu0
        %v1209 = vadd.f32 0.0, %v1208
        %v1210 = vpop.f32.mrb[0].mxu0
        %v1211 = vpop.f32.mrb[0].mxu0
        %v1212 = vpop.f32.mrb[0].mxu0
        %1213 = vdwg.mxu0
        %v1214 = vadd.f32 %v1165, %v1209
        %1215 = vst [vmem:[#allocation5] sm:$0xff] %v1214
        %1216 = vst.msk [vmem:[#allocation3] sm:$0xff] %vm1157, %v1139
        // Predicated region
        $region129: #{tpu_custom_call.1} parent=91 // pred_check
          %p1217 = pneg %p743
        $region130: #{tpu_custom_call.1} parent=91 // pred_check_branch
          %1219 = sbr.rel (%p1217) target = $region132
        $region131: #{tpu_custom_call.1} parent=91 // pred_region
          %v1220 = vld [vmem:[#allocation5] sm:$0xff]
          %v1221 = vld [vmem:[#allocation4] sm:$0xff]
          %v1222 = vrcp.pop %v1221
          %1224 = vset.pattern.permute.xlu0 0
          %1225 = vperm.xlu0 %1224, %v1222
          %v1226 = vpop.permute.xlu0 %1225
          %v1228 = vmul.f32 %v1220, %v1226
          %v1229 = vpack.c.bf16 %v1228, %v1228
          %v1230 = vld [vmem:[#allocation15] sm:$0xf]
          %v1231 = vld [vmem:[#allocation15 + $0x4] sm:$0xf]
          %v1232 = vld [vmem:[#allocation15 + $0x8] sm:$0xf]
          %v1233 = vld [vmem:[#allocation15 + $0xc] sm:$0xf]
          %v1234 = vld [vmem:[#allocation15 + $0x10] sm:$0xf]
          %v1235 = vld [vmem:[#allocation15 + $0x14] sm:$0xf]
          %v1236 = vld [vmem:[#allocation15 + $0x18] sm:$0xf]
          %v1237 = vld [vmem:[#allocation15 + $0x1c] sm:$0xf]
          %v1238 = vld [vmem:[#allocation15 + $0x20] sm:$0xf]
          %v1239 = vld [vmem:[#allocation15 + $0x24] sm:$0xf]
          %v1240 = vld [vmem:[#allocation15 + $0x28] sm:$0xf]
          %v1241 = vld [vmem:[#allocation15 + $0x2c] sm:$0xf]
          %v1242 = vld [vmem:[#allocation15 + $0x30] sm:$0xf]
          %v1243 = vld [vmem:[#allocation15 + $0x34] sm:$0xf]
          %v1244 = vld [vmem:[#allocation15 + $0x38] sm:$0xf]
          %v1245 = vld [vmem:[#allocation15 + $0x3c] sm:$0xf]
          %v1246 = vld [vmem:[%s9] sm:$0x1]
          %v1248 = vlaneseq
          %v1249 = vshrl.u32 %v1248, 7
          %v1250 = vsub.s32 0, %v1249
          %v1251 = vrot.slane %v1246, %v1250
          %v1269 = vunpack.c.l.b16 %v1230
          %v1270 = vunpack.c.l.b16 %v1231
          %v1271 = vunpack.c.l.b16 %v1232
          %v1272 = vunpack.c.l.b16 %v1233
          %v1273 = vunpack.c.l.b16 %v1234
          %v1274 = vunpack.c.l.b16 %v1235
          %v1275 = vunpack.c.l.b16 %v1236
          %v1276 = vunpack.c.l.b16 %v1237
          %v1277 = vunpack.c.l.b16 %v1238
          %v1278 = vunpack.c.l.b16 %v1239
          %v1279 = vunpack.c.l.b16 %v1240
          %v1280 = vunpack.c.l.b16 %v1241
          %v1281 = vunpack.c.l.b16 %v1242
          %v1282 = vunpack.c.l.b16 %v1243
          %v1283 = vunpack.c.l.b16 %v1244
          %v1284 = vunpack.c.l.b16 %v1245
          %v1285 = vpack.c.b16 %v1270, %v1269
          %v1286 = vpack.c.b16 %v1272, %v1271
          %v1287 = vpack.c.b16 %v1274, %v1273
          %v1288 = vpack.c.b16 %v1276, %v1275
          %v1289 = vpack.c.b16 %v1278, %v1277
          %v1290 = vpack.c.b16 %v1280, %v1279
          %v1291 = vpack.c.b16 %v1282, %v1281
          %v1292 = vpack.c.b16 %v1284, %v1283
          %1301 = vmatprep.subr.bf16.mxu0 0
          %1302 = vmatpush1.bf16.msra.mxu0 %v1285
          %1303 = vmatprep.subr.bf16.mxu0 0
          %1304 = vmatpush1.bf16.msra.mxu0 %v1286
          %1305 = vmatprep.subr.bf16.mxu0 0
          %1306 = vmatpush1.bf16.msra.mxu0 %v1287
          %1307 = vmatprep.subr.bf16.mxu0 0
          %1308 = vmatpush1.bf16.msra.mxu0 %v1288
          %1309 = vmatprep.subr.bf16.mxu0 0
          %1310 = vmatpush1.bf16.msra.mxu0 %v1289
          %1311 = vmatprep.subr.bf16.mxu0 0
          %1312 = vmatpush1.bf16.msra.mxu0 %v1290
          %1313 = vmatprep.subr.bf16.mxu0 0
          %1314 = vmatpush1.bf16.msra.mxu0 %v1291
          %1315 = vmatprep.subr.bf16.mxu0 0
          %1316 = vmatpush1.bf16.msra.mxu0 %v1292
          %1317 = vmatprep.subr.bf16.mxu0 0
          %1318 = vmatpush1.bf16.msra.mxu0 0
          %1319 = vmatprep.subr.bf16.mxu0 0
          %1320 = vmatpush1.bf16.msra.mxu0 0
          %1321 = vmatprep.subr.bf16.mxu0 0
          %1322 = vmatpush1.bf16.msra.mxu0 0
          %1323 = vmatprep.subr.bf16.mxu0 0
          %1324 = vmatpush1.bf16.msra.mxu0 0
          %1325 = vmatprep.subr.bf16.mxu0 0
          %1326 = vmatpush1.bf16.msra.mxu0 0
          %1327 = vmatprep.subr.bf16.mxu0 0
          %1328 = vmatpush1.bf16.msra.mxu0 0
          %1329 = vmatprep.subr.bf16.mxu0 0
          %1330 = vmatpush1.bf16.msra.mxu0 0
          %1331 = vmatprep.subr.bf16.mxu0 0
          %1332 = vmatpush1.bf16.msra.mxu0 0
          %1333 = vmatprep.mubr.bf16.mxu0 0
          %1334 = vmatmul.mubr.bf16.gmra.mrb[0].mxu0 %v1229
          %v1335 = vpop.f32.mrb[0].mxu0
          %v1336 = vadd.f32 %v1251, %v1335
          %v1337 = vpop.f32.mrb[0].mxu0
          %v1338 = vpop.f32.mrb[0].mxu0
          %v1339 = vpop.f32.mrb[0].mxu0
          %1340 = vdwg.mxu0
          %v1341 = vld [vmem:[%s651] sm:$0xff]
          %v1342 = vadd.f32 %v1341, %v1336
          %v1343 = vld [vmem:[%s10] sm:$0x1]
          %v1344 = vld [vmem:[%s11] sm:$0x1]
          %1345 = vadd.xlane.f32.xlu0 %v1342
          %v1346 = vpop.xlane.xlu0 %1345
          %v1347 = vrcp.pop 128.0
          %v1348 = vmul.f32 %v1346, %v1347
          %v1349 = vsub.f32 %v1342, %v1348
          %v1350 = vmul.f32 %v1349, %v1349
          %1351 = vadd.xlane.f32.xlu0 %v1350
          %v1352 = vpop.xlane.xlu0 %1351
          %v1353 = vmul.f32 %v1352, %v1347
          %v1354 = vadd.f32 %v1353, 1e-05
          %v1355 = vrsqrt.pop %v1354
          %v1356 = vmul.f32 %v1349, %v1355
          %v1358 = vlaneseq
          %v1359 = vshrl.u32 %v1358, 7
          %v1360 = vsub.s32 0, %v1359
          %v1361 = vrot.slane %v1343, %v1360
          %v1363 = vmul.f32 %v1356, %v1361
          %v1365 = vlaneseq
          %v1366 = vshrl.u32 %v1365, 7
          %v1367 = vsub.s32 0, %v1366
          %v1368 = vrot.slane %v1344, %v1367
          %v1370 = vadd.f32 %v1363, %v1368
          %v1371 = vpack.c.bf16 %v1370, %v1370
          %v1372 = vld [vmem:[#allocation17] sm:$0xf]
          %v1373 = vld [vmem:[#allocation17 + $0x4] sm:$0xf]
          %v1374 = vld [vmem:[#allocation17 + $0x8] sm:$0xf]
          %v1375 = vld [vmem:[#allocation17 + $0xc] sm:$0xf]
          %v1376 = vld [vmem:[#allocation17 + $0x10] sm:$0xf]
          %v1377 = vld [vmem:[#allocation17 + $0x14] sm:$0xf]
          %v1378 = vld [vmem:[#allocation17 + $0x18] sm:$0xf]
          %v1379 = vld [vmem:[#allocation17 + $0x1c] sm:$0xf]
          %v1380 = vld [vmem:[#allocation17 + $0x20] sm:$0xf]
          %v1381 = vld [vmem:[#allocation17 + $0x24] sm:$0xf]
          %v1382 = vld [vmem:[#allocation17 + $0x28] sm:$0xf]
          %v1383 = vld [vmem:[#allocation17 + $0x2c] sm:$0xf]
          %v1384 = vld [vmem:[#allocation17 + $0x30] sm:$0xf]
          %v1385 = vld [vmem:[#allocation17 + $0x34] sm:$0xf]
          %v1386 = vld [vmem:[#allocation17 + $0x38] sm:$0xf]
          %v1387 = vld [vmem:[#allocation17 + $0x3c] sm:$0xf]
          %v1388 = vld [vmem:[%s13] sm:$0x1]
          %v1390 = vlaneseq
          %v1391 = vshrl.u32 %v1390, 7
          %v1392 = vsub.s32 0, %v1391
          %v1393 = vrot.slane %v1388, %v1392
          %v1411 = vunpack.c.l.b16 %v1372
          %v1412 = vunpack.c.l.b16 %v1373
          %v1413 = vunpack.c.l.b16 %v1374
          %v1414 = vunpack.c.l.b16 %v1375
          %v1415 = vunpack.c.l.b16 %v1376
          %v1416 = vunpack.c.l.b16 %v1377
          %v1417 = vunpack.c.l.b16 %v1378
          %v1418 = vunpack.c.l.b16 %v1379
          %v1419 = vunpack.c.l.b16 %v1380
          %v1420 = vunpack.c.l.b16 %v1381
          %v1421 = vunpack.c.l.b16 %v1382
          %v1422 = vunpack.c.l.b16 %v1383
          %v1423 = vunpack.c.l.b16 %v1384
          %v1424 = vunpack.c.l.b16 %v1385
          %v1425 = vunpack.c.l.b16 %v1386
          %v1426 = vunpack.c.l.b16 %v1387
          %v1427 = vpack.c.b16 %v1412, %v1411
          %v1428 = vpack.c.b16 %v1414, %v1413
          %v1429 = vpack.c.b16 %v1416, %v1415
          %v1430 = vpack.c.b16 %v1418, %v1417
          %v1431 = vpack.c.b16 %v1420, %v1419
          %v1432 = vpack.c.b16 %v1422, %v1421
          %v1433 = vpack.c.b16 %v1424, %v1423
          %v1434 = vpack.c.b16 %v1426, %v1425
          %1443 = vmatprep.subr.bf16.mxu0 0
          %1444 = vmatpush1.bf16.msra.mxu0 %v1427
          %1445 = vmatprep.subr.bf16.mxu0 0
          %1446 = vmatpush1.bf16.msra.mxu0 %v1428
          %1447 = vmatprep.subr.bf16.mxu0 0
          %1448 = vmatpush1.bf16.msra.mxu0 %v1429
          %1449 = vmatprep.subr.bf16.mxu0 0
          %1450 = vmatpush1.bf16.msra.mxu0 %v1430
          %1451 = vmatprep.subr.bf16.mxu0 0
          %1452 = vmatpush1.bf16.msra.mxu0 %v1431
          %1453 = vmatprep.subr.bf16.mxu0 0
          %1454 = vmatpush1.bf16.msra.mxu0 %v1432
          %1455 = vmatprep.subr.bf16.mxu0 0
          %1456 = vmatpush1.bf16.msra.mxu0 %v1433
          %1457 = vmatprep.subr.bf16.mxu0 0
          %1458 = vmatpush1.bf16.msra.mxu0 %v1434
          %1459 = vmatprep.subr.bf16.mxu0 0
          %1460 = vmatpush1.bf16.msra.mxu0 0
          %1461 = vmatprep.subr.bf16.mxu0 0
          %1462 = vmatpush1.bf16.msra.mxu0 0
          %1463 = vmatprep.subr.bf16.mxu0 0
          %1464 = vmatpush1.bf16.msra.mxu0 0
          %1465 = vmatprep.subr.bf16.mxu0 0
          %1466 = vmatpush1.bf16.msra.mxu0 0
          %1467 = vmatprep.subr.bf16.mxu0 0
          %1468 = vmatpush1.bf16.msra.mxu0 0
          %1469 = vmatprep.subr.bf16.mxu0 0
          %1470 = vmatpush1.bf16.msra.mxu0 0
          %1471 = vmatprep.subr.bf16.mxu0 0
          %1472 = vmatpush1.bf16.msra.mxu0 0
          %1473 = vmatprep.subr.bf16.mxu0 0
          %1474 = vmatpush1.bf16.msra.mxu0 0
          %1475 = vmatprep.mubr.bf16.mxu0 0
          %1476 = vmatmul.mubr.bf16.gmra.mrb[0].mxu0 %v1371
          %v1477 = vpop.f32.mrb[0].mxu0
          %v1478 = vadd.f32 %v1393, %v1477
          %v1479 = vpop.f32.mrb[0].mxu0
          %v1480 = vpop.f32.mrb[0].mxu0
          %v1481 = vpop.f32.mrb[0].mxu0
          %1482 = vdwg.mxu0
          %v1483 = vmax.f32 %v1478, 0.0
          %v1484 = vpack.c.bf16 %v1483, %v1483
          %v1485 = vld [vmem:[#allocation18] sm:$0xf]
          %v1486 = vld [vmem:[#allocation18 + $0x4] sm:$0xf]
          %v1487 = vld [vmem:[#allocation18 + $0x8] sm:$0xf]
          %v1488 = vld [vmem:[#allocation18 + $0xc] sm:$0xf]
          %v1489 = vld [vmem:[#allocation18 + $0x10] sm:$0xf]
          %v1490 = vld [vmem:[#allocation18 + $0x14] sm:$0xf]
          %v1491 = vld [vmem:[#allocation18 + $0x18] sm:$0xf]
          %v1492 = vld [vmem:[#allocation18 + $0x1c] sm:$0xf]
          %v1493 = vld [vmem:[#allocation18 + $0x20] sm:$0xf]
          %v1494 = vld [vmem:[#allocation18 + $0x24] sm:$0xf]
          %v1495 = vld [vmem:[#allocation18 + $0x28] sm:$0xf]
          %v1496 = vld [vmem:[#allocation18 + $0x2c] sm:$0xf]
          %v1497 = vld [vmem:[#allocation18 + $0x30] sm:$0xf]
          %v1498 = vld [vmem:[#allocation18 + $0x34] sm:$0xf]
          %v1499 = vld [vmem:[#allocation18 + $0x38] sm:$0xf]
          %v1500 = vld [vmem:[#allocation18 + $0x3c] sm:$0xf]
          %v1501 = vld [vmem:[%s15] sm:$0x1]
          %v1503 = vlaneseq
          %v1504 = vshrl.u32 %v1503, 7
          %v1505 = vsub.s32 0, %v1504
          %v1506 = vrot.slane %v1501, %v1505
          %v1524 = vunpack.c.l.b16 %v1485
          %v1525 = vunpack.c.l.b16 %v1486
          %v1526 = vunpack.c.l.b16 %v1487
          %v1527 = vunpack.c.l.b16 %v1488
          %v1528 = vunpack.c.l.b16 %v1489
          %v1529 = vunpack.c.l.b16 %v1490
          %v1530 = vunpack.c.l.b16 %v1491
          %v1531 = vunpack.c.l.b16 %v1492
          %v1532 = vunpack.c.l.b16 %v1493
          %v1533 = vunpack.c.l.b16 %v1494
          %v1534 = vunpack.c.l.b16 %v1495
          %v1535 = vunpack.c.l.b16 %v1496
          %v1536 = vunpack.c.l.b16 %v1497
          %v1537 = vunpack.c.l.b16 %v1498
          %v1538 = vunpack.c.l.b16 %v1499
          %v1539 = vunpack.c.l.b16 %v1500
          %v1540 = vpack.c.b16 %v1525, %v1524
          %v1541 = vpack.c.b16 %v1527, %v1526
          %v1542 = vpack.c.b16 %v1529, %v1528
          %v1543 = vpack.c.b16 %v1531, %v1530
          %v1544 = vpack.c.b16 %v1533, %v1532
          %v1545 = vpack.c.b16 %v1535, %v1534
          %v1546 = vpack.c.b16 %v1537, %v1536
          %v1547 = vpack.c.b16 %v1539, %v1538
          %1556 = vmatprep.subr.bf16.mxu0 0
          %1557 = vmatpush1.bf16.msra.mxu0 %v1540
          %1558 = vmatprep.subr.bf16.mxu0 0
          %1559 = vmatpush1.bf16.msra.mxu0 %v1541
          %1560 = vmatprep.subr.bf16.mxu0 0
          %1561 = vmatpush1.bf16.msra.mxu0 %v1542
          %1562 = vmatprep.subr.bf16.mxu0 0
          %1563 = vmatpush1.bf16.msra.mxu0 %v1543
          %1564 = vmatprep.subr.bf16.mxu0 0
          %1565 = vmatpush1.bf16.msra.mxu0 %v1544
          %1566 = vmatprep.subr.bf16.mxu0 0
          %1567 = vmatpush1.bf16.msra.mxu0 %v1545
          %1568 = vmatprep.subr.bf16.mxu0 0
          %1569 = vmatpush1.bf16.msra.mxu0 %v1546
          %1570 = vmatprep.subr.bf16.mxu0 0
          %1571 = vmatpush1.bf16.msra.mxu0 %v1547
          %1572 = vmatprep.subr.bf16.mxu0 0
          %1573 = vmatpush1.bf16.msra.mxu0 0
          %1574 = vmatprep.subr.bf16.mxu0 0
          %1575 = vmatpush1.bf16.msra.mxu0 0
          %1576 = vmatprep.subr.bf16.mxu0 0
          %1577 = vmatpush1.bf16.msra.mxu0 0
          %1578 = vmatprep.subr.bf16.mxu0 0
          %1579 = vmatpush1.bf16.msra.mxu0 0
          %1580 = vmatprep.subr.bf16.mxu0 0
          %1581 = vmatpush1.bf16.msra.mxu0 0
          %1582 = vmatprep.subr.bf16.mxu0 0
          %1583 = vmatpush1.bf16.msra.mxu0 0
          %1584 = vmatprep.subr.bf16.mxu0 0
          %1585 = vmatpush1.bf16.msra.mxu0 0
          %1586 = vmatprep.subr.bf16.mxu0 0
          %1587 = vmatpush1.bf16.msra.mxu0 0
          %1588 = vmatprep.mubr.bf16.mxu0 0
          %1589 = vmatmul.mubr.bf16.gmra.mrb[0].mxu0 %v1484
          %v1590 = vpop.f32.mrb[0].mxu0
          %v1591 = vadd.f32 %v1506, %v1590
          %v1592 = vpop.f32.mrb[0].mxu0
          %v1593 = vpop.f32.mrb[0].mxu0
          %v1594 = vpop.f32.mrb[0].mxu0
          %1595 = vdwg.mxu0
          %v1596 = vadd.f32 %v1370, %v1591
          %v1597 = vld [vmem:[%s16] sm:$0x1]
          %v1598 = vld [vmem:[%s17] sm:$0x1]
          %1599 = vadd.xlane.f32.xlu0 %v1596
          %v1600 = vpop.xlane.xlu0 %1599
          %v1601 = vmul.f32 %v1600, %v1347
          %v1602 = vsub.f32 %v1596, %v1601
          %v1603 = vmul.f32 %v1602, %v1602
          %1604 = vadd.xlane.f32.xlu0 %v1603
          %v1605 = vpop.xlane.xlu0 %1604
          %v1606 = vmul.f32 %v1605, %v1347
          %v1607 = vadd.f32 %v1606, 1e-05
          %v1608 = vrsqrt.pop %v1607
          %v1609 = vmul.f32 %v1602, %v1608
          %v1611 = vlaneseq
          %v1612 = vshrl.u32 %v1611, 7
          %v1613 = vsub.s32 0, %v1612
          %v1614 = vrot.slane %v1597, %v1613
          %v1616 = vmul.f32 %v1609, %v1614
          %v1618 = vlaneseq
          %v1619 = vshrl.u32 %v1618, 7
          %v1620 = vsub.s32 0, %v1619
          %v1621 = vrot.slane %v1598, %v1620
          %v1623 = vadd.f32 %v1616, %v1621
          %1624 = vst [vmem:[%s741] sm:$0xff] %v1623
        $region132: #{tpu_custom_call.1} parent=91 // pred_fallthru
          _
        %s1625 = sand.u32 %s462, 1
        %s1626 = scalar_lea.sflag [#allocation8], %s1625
        %s1627 = sand.u32 %s462, 1
        %s1628 = smul.addr %s1627, 8
        %s1629 = scalar_lea.vmem [#allocation20], %s1628
        // Predicated region
        $region133: #{tpu_custom_call.1} parent=91 // pred_check
          %p1630 = pneg %p472
        $region134: #{tpu_custom_call.1} parent=91 // pred_check_branch
          %1632 = sbr.rel (%p1630) target = $region136
        $region135: #{tpu_custom_call.1} parent=91 // pred_region
          %s1634 = ssub.s32 128, 128
          %1635 = vsyncadd %s1626, %s1634
          %s1636 = sadd.s32 %s47, %s46
          %s1637 = smul.addr %s1636, 128
          %s1638 = scalar_lea.hbm %s18, %s1637
          %s1640 = sshll.u32 %s1629, 4
          %s1641 = int_to_ptr.vmem [resolvable:$true] %s1640
          %1643 = dma.vmem_to_hbm [thread:$0]  %s1641, 128, %s1638, %s1626
        $region136: #{tpu_custom_call.1} parent=91 // pred_fallthru
          _
      $region92: #{tpu_custom_call.1} parent=5 // pred_fallthru
        _
      %p1644 = scmp.le.s32.totalorder 2, %s36
      // Predicated region
      $region137: #{tpu_custom_call.1} parent=5 // pred_check
        %p1645 = pneg %p1644
      $region138: #{tpu_custom_call.1} parent=5 // pred_check_branch
        %1647 = sbr.rel (%p1645) target = $region140
      $region139: #{tpu_custom_call.1} parent=5 // pred_region
        %s1648 = ssub.s32 %s36, 2
        // Predicated region
        $region141: #{tpu_custom_call.1} parent=139 // pred_check
          %p1649 = pneg %p478
        $region142: #{tpu_custom_call.1} parent=139 // pred_check_branch
          %1651 = sbr.rel (%p1649) target = $region144
        $region143: #{tpu_custom_call.1} parent=139 // pred_region
          %s1652 = sand.u32 %s463, 1
          %s1653 = scalar_lea.sflag [#allocation8], %s1652
          %s1654 = sand.u32 %s463, 1
          %s1655 = smul.addr %s1654, 8
          %s1656 = scalar_lea.vmem [#allocation20], %s1655
          %1657 = dma.done %s1653, 128
        $region144: #{tpu_custom_call.1} parent=139 // pred_fallthru
          _
      $region140: #{tpu_custom_call.1} parent=5 // pred_fallthru
        _
    $region6: #{tpu_custom_call.1} parent=1 // loop_footer
      %s40 = sadd.s32 1, %s36
    $region7: #{tpu_custom_call.1} parent=1 // loop_footer_branch
      %35 = sbr.rel target = $region3
    $region8: #{tpu_custom_call.1} parent=1 // loop_exit
      _
    %1658 = vsyncpa [#allocation7], 1
    %s1659 = scalar_lea.sflag [#allocation7], 1
    %1660 = vsyncpa %s1659, 1
    %1661 = vsyncpa [#allocation10], 1
    %s1662 = scalar_lea.sflag [#allocation10], 1
    %1663 = vsyncpa %s1662, 1
    %1664 = vsyncpa [#allocation13], 1
    %1665 = vsyncpa [#allocation16], 1
    %1666 = vsyncpa [#allocation19], 1
    %1667 = vsyncpa [#allocation8], 1
    %s1668 = scalar_lea.sflag [#allocation8], 1
    %1669 = vsyncpa %s1668, 1

</llo_original>
